<compile_context>
chip_gen: v5e
topology: v5e:2x2
jax: 0.10.0
libtpu: 0.0.40
codegen_flags: <defaults>
</compile_context>

<pallas_src>
import functools
import math

import numpy as np
import jax
import jax.numpy as jnp
from jax import lax
from jax.experimental import pallas as pl
from jax.experimental.pallas import tpu as pltpu

N_CONVS = 4  # SliceEmbedding: 4 x (Conv2d(kernel=2, stride=2) + ReLU)


# ----------------------------------------------------------------------------
# Input row permutation: with rows keyed by (g1, g2, g3, final_pixel, n) and
# the four conv1 taps (g0) on lanes, every conv level consumes 4 contiguous
# row blocks and produces rows already in the order the next level needs.
# g_j = 2*h_j + w_j is the j-th "Morton digit" of the pixel (h, w).
# ----------------------------------------------------------------------------
def _build_pixel_index(image_size):
    assert image_size % 16 == 0, "need 4 stride-2 convs to divide the image"
    H = W = image_size
    Wf = W >> N_CONVS
    Hf = H >> N_CONVS
    S1 = (H // 2) * (W // 2)
    idx = np.zeros((S1, 4), dtype=np.int32)
    for h in range(H):
        for w in range(W):
            g = [2 * ((h >> j) & 1) + ((w >> j) & 1) for j in range(N_CONVS)]
            f = (h >> N_CONVS) * Wf + (w >> N_CONVS)   # final pixel, row-major
            r1 = ((g[1] * 4 + g[2]) * 4 + g[3]) * (Hf * Wf) + f
            idx[r1, g[0]] = h * W + w
    assert np.array_equal(np.sort(idx.reshape(-1)), np.arange(H * W))
    return idx


# ----------------------------------------------------------------------------
# The single fused kernel.
# ----------------------------------------------------------------------------
def _rpn_kernel(
    i_ref, x0_ref,
    w1_ref, b1_ref, w2_ref, b2_ref, w3_ref, b3_ref, w4_ref, b4_ref,
    wmlp_ref, bmlp_ref, pe_ref,
    wq_ref, bq_ref, wk_ref, bk_ref, wv_ref, bv_ref,
    tmat_ref, hmask_ref, wo_ref, bo_ref, g1_ref, be1_ref,
    wff1_ref, bff1_ref, wff2_ref, bff2_ref, g2_ref, be2_ref,
    wfc_ref, bfc_ref,
    out_ref,
    *, nh):
    f32 = jnp.float32
    M1 = x0_ref.shape[0]
    M2, M3, M4 = M1 // 4, M1 // 16, M1 // 64
    N, D = pe_ref.shape
    S = N + 1
    final_d = wmlp_ref.shape[0]
    hd = D // nh
    C1 = w2_ref.shape[0] // 4
    C2 = w3_ref.shape[0] // 4
    assert M4 == final_d * N

    # ---- SliceEmbedding: fused conv stack ----------------------------------
    w1 = w1_ref[...]                        # (4, 64) position-major conv1
    b1 = b1_ref[...]                        # (1, 64)

    def conv1(xblk):                        # (M2, 4) -> (M2, 64) on the VPU
        acc = xblk[:, 0:1] * w1[0:1, :]
        for g0 in range(1, 4):
            acc = acc + xblk[:, g0:g0 + 1] * w1[g0:g0 + 1, :]
        return jnp.maximum(acc + b1, 0.0)

    # conv2: accumulate the 4 kernel positions (contiguous row blocks) on MXU.
    a2 = jnp.dot(conv1(x0_ref[0:M2, :]), w2_ref[0:C1, :],
                 preferred_element_type=f32)
    for p in range(1, 4):
        a2 = a2 + jnp.dot(conv1(x0_ref[p * M2:(p + 1) * M2, :]),
                          w2_ref[p * C1:(p + 1) * C1, :],
                          preferred_element_type=f32)
    a2 = jnp.maximum(a2 + b2_ref[...], 0.0)                    # (M2, 32)

    # conv3
    a3 = jnp.dot(a2[0:M3, :], w3_ref[0:C2, :], preferred_element_type=f32)
    for p in range(1, 4):
        a3 = a3 + jnp.dot(a2[p * M3:(p + 1) * M3, :],
                          w3_ref[p * C2:(p + 1) * C2, :],
                          preferred_element_type=f32)
    a3 = jnp.maximum(a3 + b3_ref[...], 0.0)                    # (M3, 24)

    # conv4 (Cout = 1): lane reduction instead of a K x 1 MXU pass.
    a4 = jnp.sum(a3[0:M4, :] * w4_ref[0:1, :], axis=-1, keepdims=True)
    for p in range(1, 4):
        a4 = a4 + jnp.sum(a3[p * M4:(p + 1) * M4, :] * w4_ref[p:p + 1, :],
                          axis=-1, keepdims=True)
    a4 = jnp.maximum(a4 + b4_ref[...], 0.0)                    # (M4, 1) rows=(f, n)

    # ---- SliceEmbedding.mlp (final_d -> D) + positional encoding -----------
    sl = a4[0:N, :] * wmlp_ref[0:1, :]
    for q in range(1, final_d):
        sl = sl + a4[q * N:(q + 1) * N, :] * wmlp_ref[q:q + 1, :]
    sl = sl + bmlp_ref[...] + pe_ref[...]                      # (N, D)

    # ---- concat((slices, slices[i])) via a tiny selection matmul -----------
    idx = i_ref[0]
    rr = lax.broadcasted_iota(jnp.int32, (S, N), 0)
    cc = lax.broadcasted_iota(jnp.int32, (S, N), 1)
    esel = jnp.where((rr == cc) | ((rr == N) & (cc == idx)), 1.0, 0.0)
    seq = jnp.dot(esel, sl, preferred_element_type=f32)        # (S, D)

    # ---- TransformerEncoderLayer (post-norm, ReLU FFN, eval) ---------------
    # q projection is pre-scaled by 1/sqrt(hd) in the wrapper.
    q_p = jnp.dot(seq, wq_ref[...], preferred_element_type=f32) + bq_ref[...]
    k_p = jnp.dot(seq, wk_ref[...], preferred_element_type=f32) + bk_ref[...]
    v_p = jnp.dot(seq, wv_ref[...], preferred_element_type=f32) + bv_ref[...]

    tmat = tmat_ref[...]       # (nh*S, S): one replica of K/V rows per head
    hmask = hmask_ref[...]     # (nh*S, D): 1 where row-head == lane-head
    kb = jnp.dot(tmat, k_p, preferred_element_type=f32) * hmask
    vb = jnp.dot(tmat, v_p, preferred_element_type=f32) * hmask

    # All heads' scores in a single MXU pass: sc[t, h*S + j] = <q_h[t], k_h[j]>
    sc = lax.dot_general(q_p, kb, (((1,), (1,)), ((), ())),
                         preferred_element_type=f32)           # (S, nh*S)
    sc = sc - jnp.max(sc, axis=-1, keepdims=True)
    ex = jnp.exp(sc)
    denom = jnp.dot(ex, hmask, preferred_element_type=f32)     # per-head sums
    attn = (jnp.dot(ex, vb, preferred_element_type=f32)
            * pl.reciprocal(denom, approx=True))               # (S, D)
    attn = jnp.dot(attn, wo_ref[...], preferred_element_type=f32) + bo_ref[...]

    def layernorm(u, g, b):
        mu = jnp.mean(u, axis=-1, keepdims=True)
        var = jnp.mean((u - mu) ** 2, axis=-1, keepdims=True)
        return (u - mu) * lax.rsqrt(var + 1e-5) * g + b

    x1 = layernorm(seq + attn, g1_ref[...], be1_ref[...])
    ff = jnp.maximum(jnp.dot(x1, wff1_ref[...], preferred_element_type=f32)
                     + bff1_ref[...], 0.0)
    ff = jnp.dot(ff, wff2_ref[...], preferred_element_type=f32) + bff2_ref[...]
    y = layernorm(x1 + ff, g2_ref[...], be2_ref[...])

    # ---- fc (Linear + Sigmoid) epilogue on the appended global row ---------
    out = (jnp.dot(y[S - 1:S, :], wfc_ref[...], preferred_element_type=f32)
           + bfc_ref[...])
    out_ref[...] = jax.nn.sigmoid(out)


# ----------------------------------------------------------------------------
# Parameter construction (deterministic, synthetic, PyTorch-layout).
# ----------------------------------------------------------------------------
def init_params(key, input_dim, output_dim, image_size, nh, dim_ff):
    keys = iter(jax.random.split(key, 64))

    def u(shape, fan_in):
        lim = 1.0 / math.sqrt(max(fan_in, 1))
        return jax.random.uniform(next(keys), shape, jnp.float32, -lim, lim)

    conv_chs = [(1, 64), (64, 32), (32, 24), (24, 1)]
    convs = [{"w": u((co, ci, 2, 2), ci * 4), "b": u((co,), ci * 4)}
             for ci, co in conv_chs]

    sp = image_size
    for _ in conv_chs:
        sp //= 2
    final_d = sp * sp          # out_channels == 1

    params = {
        "convs": convs,
        "final_d": final_d,
        "mlp_w": u((final_d, input_dim), final_d),
        "mlp_b": u((input_dim,), final_d),
        "enc": {
            "w_qkv": u((input_dim, 3 * input_dim), input_dim),
            "b_qkv": u((3 * input_dim,), input_dim),
            "w_o":   u((input_dim, input_dim), input_dim),
            "b_o":   u((input_dim,), input_dim),
            "ln1_g": jnp.ones((input_dim,), jnp.float32),
            "ln1_b": jnp.zeros((input_dim,), jnp.float32),
            "w_ff1": u((input_dim, dim_ff), input_dim),
            "b_ff1": u((dim_ff,), input_dim),
            "w_ff2": u((dim_ff, input_dim), dim_ff),
            "b_ff2": u((input_dim,), dim_ff),
            "ln2_g": jnp.ones((input_dim,), jnp.float32),
            "ln2_b": jnp.zeros((input_dim,), jnp.float32),
        },
        "fc_w": u((input_dim, output_dim), input_dim),
        "fc_b": u((output_dim,), input_dim),
    }

    max_len = 5000
    position = jnp.arange(max_len, dtype=jnp.float32)[:, None]
    div_term = jnp.exp(jnp.arange(0, input_dim, 2, dtype=jnp.float32)
                       * (-math.log(10000.0) / input_dim))
    pe = jnp.zeros((max_len, 1, input_dim), jnp.float32)
    pe = pe.at[:, 0, 0::2].set(jnp.sin(position * div_term))
    pe = pe.at[:, 0, 1::2].set(jnp.cos(position * div_term))
    params["pe"] = pe
    return params


# ----------------------------------------------------------------------------
# One-time repack of the PyTorch-layout parameters into the kernel layout.
# ----------------------------------------------------------------------------
def prepare_kernel_params(params, N, nh, image_size):
    D = params["mlp_w"].shape[1]
    S = N + 1
    hd = D // nh
    convs = params["convs"]

    def conv_pos_major(w):               # (Cout, Cin, 2, 2) -> (4, Cin, Cout)
        co, ci = w.shape[0], w.shape[1]
        return jnp.transpose(w.reshape(co, ci, 4), (2, 1, 0))

    w2 = conv_pos_major(convs[1]["w"])   # (4, 64, 32)
    w3 = conv_pos_major(convs[2]["w"])   # (4, 32, 24)

    enc = params["enc"]
    scale = 1.0 / math.sqrt(hd)
    wqkv, bqkv = enc["w_qkv"], enc["b_qkv"]

    t_head = np.arange(nh * S)[:, None] // S
    d_head = np.arange(D)[None, :] // hd
    hmask = jnp.asarray((t_head == d_head).astype(np.float32))      # (nh*S, D)
    tmat = jnp.asarray((np.arange(nh * S)[:, None] % S
                        == np.arange(S)[None, :]).astype(np.float32))  # (nh*S, S)

    return dict(
        pix_idx=jnp.asarray(_build_pixel_index(image_size).reshape(-1)),
        w1=conv_pos_major(convs[0]["w"])[:, 0, :],            # (4, 64)
        b1=convs[0]["b"].reshape(1, -1),
        w2=w2.reshape(4 * w2.shape[1], w2.shape[2]),          # (256, 32)
        b2=convs[1]["b"].reshape(1, -1),
        w3=w3.reshape(4 * w3.shape[1], w3.shape[2]),          # (128, 24)
        b3=convs[2]["b"].reshape(1, -1),
        w4=conv_pos_major(convs[3]["w"])[:, :, 0],            # (4, 24)
        b4=convs[3]["b"].reshape(1, 1),
        wmlp=params["mlp_w"], bmlp=params["mlp_b"].reshape(1, -1),
        pe=params["pe"][:N, 0, :],
        wq=wqkv[:, :D] * scale, bq=(bqkv[:D] * scale).reshape(1, -1),
        wk=wqkv[:, D:2 * D], bk=bqkv[D:2 * D].reshape(1, -1),
        wv=wqkv[:, 2 * D:], bv=bqkv[2 * D:].reshape(1, -1),
        tmat=tmat, hmask=hmask,
        wo=enc["w_o"], bo=enc["b_o"].reshape(1, -1),
        g1=enc["ln1_g"].reshape(1, -1), be1=enc["ln1_b"].reshape(1, -1),
        wff1=enc["w_ff1"], bff1=enc["b_ff1"].reshape(1, -1),
        wff2=enc["w_ff2"], bff2=enc["b_ff2"].reshape(1, -1),
        g2=enc["ln2_g"].reshape(1, -1), be2=enc["ln2_b"].reshape(1, -1),
        wfc=params["fc_w"], bfc=params["fc_b"].reshape(1, -1),
    )


# ----------------------------------------------------------------------------
# Forward: one input relayout + one fused pallas_call.
# ----------------------------------------------------------------------------
@functools.partial(jax.jit, static_argnames=("nh", "output_dim"))
def rpn_forward(x, i, kparams, nh, output_dim):
    N, _, H, W = x.shape
    S1 = (H // 2) * (W // 2)
    # Single cheap relayout of the tiny input image into the fused-conv layout.
    xg = x.reshape(N, H * W)[:, kparams["pix_idx"]].reshape(N, S1, 4)
    x0 = jnp.transpose(xg, (1, 0, 2)).reshape(S1 * N, 4).astype(jnp.float32)
    i_arr = jnp.reshape(jnp.asarray(i, dtype=jnp.int32), (1,))

    order = ("w1", "b1", "w2", "b2", "w3", "b3", "w4", "b4",
             "wmlp", "bmlp", "pe",
             "wq", "bq", "wk", "bk", "wv", "bv",
             "tmat", "hmask", "wo", "bo", "g1", "be1",
             "wff1", "bff1", "wff2", "bff2", "g2", "be2", "wfc", "bfc")
    args = (i_arr, x0) + tuple(kparams[k] for k in order)

    return pl.pallas_call(
        functools.partial(_rpn_kernel, nh=nh),
        out_shape=jax.ShapeDtypeStruct((1, output_dim), jnp.float32),
        in_specs=([pl.BlockSpec(memory_space=pltpu.MemorySpace.SMEM)]
                  + [pl.BlockSpec(memory_space=pltpu.MemorySpace.VMEM)]
                  * (len(args) - 1)),
        out_specs=pl.BlockSpec(memory_space=pltpu.MemorySpace.VMEM),
    )(*args)


# ----------------------------------------------------------------------------
# Pure-JAX (XLA) reference of the PyTorch forward, for validation only.
# ----------------------------------------------------------------------------
def rpn_reference(x, i, params, nh):
    P = lax.Precision.HIGHEST
    N = x.shape[0]
    h = x
    for c in params["convs"]:
        h = lax.conv_general_dilated(h, c["w"], (2, 2), "VALID",
                                     dimension_numbers=("NCHW", "OIHW", "NCHW"),
                                     precision=P)
        h = jnp.maximum(h + c["b"].reshape(1, -1, 1, 1), 0.0)
    h = h.reshape(N, -1)                                       # Flatten(2), Cout==1
    sl = jnp.dot(h, params["mlp_w"], precision=P) + params["mlp_b"]
    sl = sl + params["pe"][:N, 0, :]
    seq = jnp.concatenate([sl, sl[i][None]], axis=0)

    enc = params["enc"]
    D = sl.shape[1]
    S = N + 1
    hd = D // nh
    q = jnp.dot(seq, enc["w_qkv"][:, :D], precision=P) + enc["b_qkv"][:D]
    k = jnp.dot(seq, enc["w_qkv"][:, D:2 * D], precision=P) + enc["b_qkv"][D:2 * D]
    v = jnp.dot(seq, enc["w_qkv"][:, 2 * D:], precision=P) + enc["b_qkv"][2 * D:]
    qh = q.reshape(S, nh, hd).transpose(1, 0, 2)
    kh = k.reshape(S, nh, hd).transpose(1, 0, 2)
    vh = v.reshape(S, nh, hd).transpose(1, 0, 2)
    sc = jnp.einsum("hqe,hke->hqk", qh, kh, precision=P) / math.sqrt(hd)
    pw = jax.nn.softmax(sc, axis=-1)
    ao = jnp.einsum("hqk,hke->hqe", pw, vh,
                    precision=P).transpose(1, 0, 2).reshape(S, D)
    attn = jnp.dot(ao, enc["w_o"], precision=P) + enc["b_o"]

    def ln(u, g, b):
        mu = u.mean(-1, keepdims=True)
        var = ((u - mu) ** 2).mean(-1, keepdims=True)
        return (u - mu) * lax.rsqrt(var + 1e-5) * g + b

    x1 = ln(seq + attn, enc["ln1_g"], enc["ln1_b"])
    ff = jnp.maximum(jnp.dot(x1, enc["w_ff1"], precision=P) + enc["b_ff1"], 0.0)
    ff = jnp.dot(ff, enc["w_ff2"], precision=P) + enc["b_ff2"]
    y = ln(x1 + ff, enc["ln2_g"], enc["ln2_b"])
    return jax.nn.sigmoid(jnp.dot(y[-1:], params["fc_w"], precision=P)
                          + params["fc_b"])


# ----------------------------------------------------------------------------
if __name__ == "__main__":
    input_dim = 40      # d_model (divisible by nh=5)
    output_dim = 8
    image_size = 32     # 4 stride-2 convs -> final_d = (32 // 16) ** 2 = 4
    nh = 5
    dim_ff = 64
    N = 4               # number of slices (sequence length before the concat)
    i = 2               # reference slice index

    key = jax.random.PRNGKey(0)
    pkey, xkey = jax.random.split(key)
    params = init_params(pkey, input_dim, output_dim, image_size, nh, dim_ff)
    x = jax.random.normal(xkey, (N, 1, image_size, image_size), jnp.float32)

    kparams = prepare_kernel_params(params, N, nh, image_size)
    out = rpn_forward(x, i, kparams, nh=nh, output_dim=output_dim)
    out = jax.block_until_ready(out)

    assert out.shape == (1, output_dim)
    assert bool(jnp.all(jnp.isfinite(out)))
    assert bool(jnp.all((out >= 0.0) & (out <= 1.0)))     # sigmoid range
    ref = rpn_reference(x, i, params, nh)
    err = float(jnp.max(jnp.abs(out - ref)))
    assert err < 2e-2, f"kernel/reference mismatch: max abs err = {err}"
    print("KERNEL_OK")
</pallas_src>

<mosaic_0001>
module attributes {stable_mosaic.version = 11 : i64} {
  func.func @_rpn_kernel(%arg0: memref<1xi32, #tpu.memory_space<smem>>, %arg1: memref<1024x4xf32, #tpu.memory_space<vmem>>, %arg2: memref<4x64xf32, #tpu.memory_space<vmem>>, %arg3: memref<1x64xf32, #tpu.memory_space<vmem>>, %arg4: memref<256x32xf32, #tpu.memory_space<vmem>>, %arg5: memref<1x32xf32, #tpu.memory_space<vmem>>, %arg6: memref<128x24xf32, #tpu.memory_space<vmem>>, %arg7: memref<1x24xf32, #tpu.memory_space<vmem>>, %arg8: memref<4x24xf32, #tpu.memory_space<vmem>>, %arg9: memref<1x1xf32, #tpu.memory_space<vmem>>, %arg10: memref<4x40xf32, #tpu.memory_space<vmem>>, %arg11: memref<1x40xf32, #tpu.memory_space<vmem>>, %arg12: memref<4x40xf32, #tpu.memory_space<vmem>>, %arg13: memref<40x40xf32, #tpu.memory_space<vmem>>, %arg14: memref<1x40xf32, #tpu.memory_space<vmem>>, %arg15: memref<40x40xf32, #tpu.memory_space<vmem>>, %arg16: memref<1x40xf32, #tpu.memory_space<vmem>>, %arg17: memref<40x40xf32, #tpu.memory_space<vmem>>, %arg18: memref<1x40xf32, #tpu.memory_space<vmem>>, %arg19: memref<25x5xf32, #tpu.memory_space<vmem>>, %arg20: memref<25x40xf32, #tpu.memory_space<vmem>>, %arg21: memref<40x40xf32, #tpu.memory_space<vmem>>, %arg22: memref<1x40xf32, #tpu.memory_space<vmem>>, %arg23: memref<1x40xf32, #tpu.memory_space<vmem>>, %arg24: memref<1x40xf32, #tpu.memory_space<vmem>>, %arg25: memref<40x64xf32, #tpu.memory_space<vmem>>, %arg26: memref<1x64xf32, #tpu.memory_space<vmem>>, %arg27: memref<64x40xf32, #tpu.memory_space<vmem>>, %arg28: memref<1x40xf32, #tpu.memory_space<vmem>>, %arg29: memref<1x40xf32, #tpu.memory_space<vmem>>, %arg30: memref<1x40xf32, #tpu.memory_space<vmem>>, %arg31: memref<40x8xf32, #tpu.memory_space<vmem>>, %arg32: memref<1x8xf32, #tpu.memory_space<vmem>>, %arg33: memref<1x8xf32, #tpu.memory_space<vmem>>) attributes {dimension_semantics = [], scalar_prefetch = 0 : i64, scratch_operands = 0 : i64, tpu.core_type = #tpu.core_type<tc>} {
    %c0 = arith.constant 0 : index
    %c0_0 = arith.constant 0 : index
    %0 = vector.load %arg2[%c0, %c0_0] : memref<4x64xf32, #tpu.memory_space<vmem>>, vector<4x64xf32>
    %c0_1 = arith.constant 0 : index
    %c0_2 = arith.constant 0 : index
    %1 = vector.load %arg3[%c0_1, %c0_2] : memref<1x64xf32, #tpu.memory_space<vmem>>, vector<1x64xf32>
    %c0_3 = arith.constant 0 : index
    %c0_4 = arith.constant 0 : index
    %2 = vector.load %arg1[%c0_3, %c0_4] : memref<1024x4xf32, #tpu.memory_space<vmem>>, vector<256x4xf32>
    %3 = vector.extract_strided_slice %2 {offsets = [0, 0], sizes = [256, 1], strides = [1, 1]} : vector<256x4xf32> to vector<256x1xf32>
    %4 = vector.extract_strided_slice %0 {offsets = [0, 0], sizes = [1, 64], strides = [1, 1]} : vector<4x64xf32> to vector<1x64xf32>
    %5 = vector.broadcast %3 : vector<256x1xf32> to vector<256x64xf32>
    %6 = vector.broadcast %4 : vector<1x64xf32> to vector<256x64xf32>
    %7 = arith.mulf %5, %6 : vector<256x64xf32>
    %8 = vector.extract_strided_slice %2 {offsets = [0, 1], sizes = [256, 1], strides = [1, 1]} : vector<256x4xf32> to vector<256x1xf32>
    %9 = vector.extract_strided_slice %0 {offsets = [1, 0], sizes = [1, 64], strides = [1, 1]} : vector<4x64xf32> to vector<1x64xf32>
    %10 = vector.broadcast %8 : vector<256x1xf32> to vector<256x64xf32>
    %11 = vector.broadcast %9 : vector<1x64xf32> to vector<256x64xf32>
    %12 = arith.mulf %10, %11 : vector<256x64xf32>
    %13 = arith.addf %7, %12 : vector<256x64xf32>
    %14 = vector.extract_strided_slice %2 {offsets = [0, 2], sizes = [256, 1], strides = [1, 1]} : vector<256x4xf32> to vector<256x1xf32>
    %15 = vector.extract_strided_slice %0 {offsets = [2, 0], sizes = [1, 64], strides = [1, 1]} : vector<4x64xf32> to vector<1x64xf32>
    %16 = vector.broadcast %14 : vector<256x1xf32> to vector<256x64xf32>
    %17 = vector.broadcast %15 : vector<1x64xf32> to vector<256x64xf32>
    %18 = arith.mulf %16, %17 : vector<256x64xf32>
    %19 = arith.addf %13, %18 : vector<256x64xf32>
    %20 = vector.extract_strided_slice %2 {offsets = [0, 3], sizes = [256, 1], strides = [1, 1]} : vector<256x4xf32> to vector<256x1xf32>
    %21 = vector.extract_strided_slice %0 {offsets = [3, 0], sizes = [1, 64], strides = [1, 1]} : vector<4x64xf32> to vector<1x64xf32>
    %22 = vector.broadcast %20 : vector<256x1xf32> to vector<256x64xf32>
    %23 = vector.broadcast %21 : vector<1x64xf32> to vector<256x64xf32>
    %24 = arith.mulf %22, %23 : vector<256x64xf32>
    %25 = arith.addf %19, %24 : vector<256x64xf32>
    %26 = vector.broadcast %1 : vector<1x64xf32> to vector<256x64xf32>
    %27 = arith.addf %25, %26 : vector<256x64xf32>
    %cst = arith.constant 0.000000e+00 : f32
    %28 = vector.broadcast %cst : f32 to vector<256x64xf32>
    %29 = arith.maximumf %27, %28 : vector<256x64xf32>
    %c0_5 = arith.constant 0 : index
    %c0_6 = arith.constant 0 : index
    %30 = vector.load %arg4[%c0_5, %c0_6] : memref<256x32xf32, #tpu.memory_space<vmem>>, vector<64x32xf32>
    %cst_7 = arith.constant dense<0.000000e+00> : vector<256x32xf32>
    %31 = tpu.matmul %29, %30, %cst_7 {dimension_numbers = #tpu.dot_dimension_numbers<[1], [0], [0], [1], [0, 0, 1, 1], [], []>} : vector<256x64xf32>, vector<64x32xf32>, vector<256x32xf32> -> vector<256x32xf32>
    %c256 = arith.constant 256 : index
    %c0_8 = arith.constant 0 : index
    %32 = vector.load %arg1[%c256, %c0_8] : memref<1024x4xf32, #tpu.memory_space<vmem>>, vector<256x4xf32>
    %33 = vector.extract_strided_slice %32 {offsets = [0, 0], sizes = [256, 1], strides = [1, 1]} : vector<256x4xf32> to vector<256x1xf32>
    %34 = vector.extract_strided_slice %0 {offsets = [0, 0], sizes = [1, 64], strides = [1, 1]} : vector<4x64xf32> to vector<1x64xf32>
    %35 = vector.broadcast %33 : vector<256x1xf32> to vector<256x64xf32>
    %36 = vector.broadcast %34 : vector<1x64xf32> to vector<256x64xf32>
    %37 = arith.mulf %35, %36 : vector<256x64xf32>
    %38 = vector.extract_strided_slice %32 {offsets = [0, 1], sizes = [256, 1], strides = [1, 1]} : vector<256x4xf32> to vector<256x1xf32>
    %39 = vector.extract_strided_slice %0 {offsets = [1, 0], sizes = [1, 64], strides = [1, 1]} : vector<4x64xf32> to vector<1x64xf32>
    %40 = vector.broadcast %38 : vector<256x1xf32> to vector<256x64xf32>
    %41 = vector.broadcast %39 : vector<1x64xf32> to vector<256x64xf32>
    %42 = arith.mulf %40, %41 : vector<256x64xf32>
    %43 = arith.addf %37, %42 : vector<256x64xf32>
    %44 = vector.extract_strided_slice %32 {offsets = [0, 2], sizes = [256, 1], strides = [1, 1]} : vector<256x4xf32> to vector<256x1xf32>
    %45 = vector.extract_strided_slice %0 {offsets = [2, 0], sizes = [1, 64], strides = [1, 1]} : vector<4x64xf32> to vector<1x64xf32>
    %46 = vector.broadcast %44 : vector<256x1xf32> to vector<256x64xf32>
    %47 = vector.broadcast %45 : vector<1x64xf32> to vector<256x64xf32>
    %48 = arith.mulf %46, %47 : vector<256x64xf32>
    %49 = arith.addf %43, %48 : vector<256x64xf32>
    %50 = vector.extract_strided_slice %32 {offsets = [0, 3], sizes = [256, 1], strides = [1, 1]} : vector<256x4xf32> to vector<256x1xf32>
    %51 = vector.extract_strided_slice %0 {offsets = [3, 0], sizes = [1, 64], strides = [1, 1]} : vector<4x64xf32> to vector<1x64xf32>
    %52 = vector.broadcast %50 : vector<256x1xf32> to vector<256x64xf32>
    %53 = vector.broadcast %51 : vector<1x64xf32> to vector<256x64xf32>
    %54 = arith.mulf %52, %53 : vector<256x64xf32>
    %55 = arith.addf %49, %54 : vector<256x64xf32>
    %56 = vector.broadcast %1 : vector<1x64xf32> to vector<256x64xf32>
    %57 = arith.addf %55, %56 : vector<256x64xf32>
    %cst_9 = arith.constant 0.000000e+00 : f32
    %58 = vector.broadcast %cst_9 : f32 to vector<256x64xf32>
    %59 = arith.maximumf %57, %58 : vector<256x64xf32>
    %c64 = arith.constant 64 : index
    %c0_10 = arith.constant 0 : index
    %60 = vector.load %arg4[%c64, %c0_10] : memref<256x32xf32, #tpu.memory_space<vmem>>, vector<64x32xf32>
    %cst_11 = arith.constant dense<0.000000e+00> : vector<256x32xf32>
    %61 = tpu.matmul %59, %60, %cst_11 {dimension_numbers = #tpu.dot_dimension_numbers<[1], [0], [0], [1], [0, 0, 1, 1], [], []>} : vector<256x64xf32>, vector<64x32xf32>, vector<256x32xf32> -> vector<256x32xf32>
    %62 = arith.addf %31, %61 : vector<256x32xf32>
    %c512 = arith.constant 512 : index
    %c0_12 = arith.constant 0 : index
    %63 = vector.load %arg1[%c512, %c0_12] : memref<1024x4xf32, #tpu.memory_space<vmem>>, vector<256x4xf32>
    %64 = vector.extract_strided_slice %63 {offsets = [0, 0], sizes = [256, 1], strides = [1, 1]} : vector<256x4xf32> to vector<256x1xf32>
    %65 = vector.extract_strided_slice %0 {offsets = [0, 0], sizes = [1, 64], strides = [1, 1]} : vector<4x64xf32> to vector<1x64xf32>
    %66 = vector.broadcast %64 : vector<256x1xf32> to vector<256x64xf32>
    %67 = vector.broadcast %65 : vector<1x64xf32> to vector<256x64xf32>
    %68 = arith.mulf %66, %67 : vector<256x64xf32>
    %69 = vector.extract_strided_slice %63 {offsets = [0, 1], sizes = [256, 1], strides = [1, 1]} : vector<256x4xf32> to vector<256x1xf32>
    %70 = vector.extract_strided_slice %0 {offsets = [1, 0], sizes = [1, 64], strides = [1, 1]} : vector<4x64xf32> to vector<1x64xf32>
    %71 = vector.broadcast %69 : vector<256x1xf32> to vector<256x64xf32>
    %72 = vector.broadcast %70 : vector<1x64xf32> to vector<256x64xf32>
    %73 = arith.mulf %71, %72 : vector<256x64xf32>
    %74 = arith.addf %68, %73 : vector<256x64xf32>
    %75 = vector.extract_strided_slice %63 {offsets = [0, 2], sizes = [256, 1], strides = [1, 1]} : vector<256x4xf32> to vector<256x1xf32>
    %76 = vector.extract_strided_slice %0 {offsets = [2, 0], sizes = [1, 64], strides = [1, 1]} : vector<4x64xf32> to vector<1x64xf32>
    %77 = vector.broadcast %75 : vector<256x1xf32> to vector<256x64xf32>
    %78 = vector.broadcast %76 : vector<1x64xf32> to vector<256x64xf32>
    %79 = arith.mulf %77, %78 : vector<256x64xf32>
    %80 = arith.addf %74, %79 : vector<256x64xf32>
    %81 = vector.extract_strided_slice %63 {offsets = [0, 3], sizes = [256, 1], strides = [1, 1]} : vector<256x4xf32> to vector<256x1xf32>
    %82 = vector.extract_strided_slice %0 {offsets = [3, 0], sizes = [1, 64], strides = [1, 1]} : vector<4x64xf32> to vector<1x64xf32>
    %83 = vector.broadcast %81 : vector<256x1xf32> to vector<256x64xf32>
    %84 = vector.broadcast %82 : vector<1x64xf32> to vector<256x64xf32>
    %85 = arith.mulf %83, %84 : vector<256x64xf32>
    %86 = arith.addf %80, %85 : vector<256x64xf32>
    %87 = vector.broadcast %1 : vector<1x64xf32> to vector<256x64xf32>
    %88 = arith.addf %86, %87 : vector<256x64xf32>
    %cst_13 = arith.constant 0.000000e+00 : f32
    %89 = vector.broadcast %cst_13 : f32 to vector<256x64xf32>
    %90 = arith.maximumf %88, %89 : vector<256x64xf32>
    %c128 = arith.constant 128 : index
    %c0_14 = arith.constant 0 : index
    %91 = vector.load %arg4[%c128, %c0_14] : memref<256x32xf32, #tpu.memory_space<vmem>>, vector<64x32xf32>
    %cst_15 = arith.constant dense<0.000000e+00> : vector<256x32xf32>
    %92 = tpu.matmul %90, %91, %cst_15 {dimension_numbers = #tpu.dot_dimension_numbers<[1], [0], [0], [1], [0, 0, 1, 1], [], []>} : vector<256x64xf32>, vector<64x32xf32>, vector<256x32xf32> -> vector<256x32xf32>
    %93 = arith.addf %62, %92 : vector<256x32xf32>
    %c768 = arith.constant 768 : index
    %c0_16 = arith.constant 0 : index
    %94 = vector.load %arg1[%c768, %c0_16] : memref<1024x4xf32, #tpu.memory_space<vmem>>, vector<256x4xf32>
    %95 = vector.extract_strided_slice %94 {offsets = [0, 0], sizes = [256, 1], strides = [1, 1]} : vector<256x4xf32> to vector<256x1xf32>
    %96 = vector.extract_strided_slice %0 {offsets = [0, 0], sizes = [1, 64], strides = [1, 1]} : vector<4x64xf32> to vector<1x64xf32>
    %97 = vector.broadcast %95 : vector<256x1xf32> to vector<256x64xf32>
    %98 = vector.broadcast %96 : vector<1x64xf32> to vector<256x64xf32>
    %99 = arith.mulf %97, %98 : vector<256x64xf32>
    %100 = vector.extract_strided_slice %94 {offsets = [0, 1], sizes = [256, 1], strides = [1, 1]} : vector<256x4xf32> to vector<256x1xf32>
    %101 = vector.extract_strided_slice %0 {offsets = [1, 0], sizes = [1, 64], strides = [1, 1]} : vector<4x64xf32> to vector<1x64xf32>
    %102 = vector.broadcast %100 : vector<256x1xf32> to vector<256x64xf32>
    %103 = vector.broadcast %101 : vector<1x64xf32> to vector<256x64xf32>
    %104 = arith.mulf %102, %103 : vector<256x64xf32>
    %105 = arith.addf %99, %104 : vector<256x64xf32>
    %106 = vector.extract_strided_slice %94 {offsets = [0, 2], sizes = [256, 1], strides = [1, 1]} : vector<256x4xf32> to vector<256x1xf32>
    %107 = vector.extract_strided_slice %0 {offsets = [2, 0], sizes = [1, 64], strides = [1, 1]} : vector<4x64xf32> to vector<1x64xf32>
    %108 = vector.broadcast %106 : vector<256x1xf32> to vector<256x64xf32>
    %109 = vector.broadcast %107 : vector<1x64xf32> to vector<256x64xf32>
    %110 = arith.mulf %108, %109 : vector<256x64xf32>
    %111 = arith.addf %105, %110 : vector<256x64xf32>
    %112 = vector.extract_strided_slice %94 {offsets = [0, 3], sizes = [256, 1], strides = [1, 1]} : vector<256x4xf32> to vector<256x1xf32>
    %113 = vector.extract_strided_slice %0 {offsets = [3, 0], sizes = [1, 64], strides = [1, 1]} : vector<4x64xf32> to vector<1x64xf32>
    %114 = vector.broadcast %112 : vector<256x1xf32> to vector<256x64xf32>
    %115 = vector.broadcast %113 : vector<1x64xf32> to vector<256x64xf32>
    %116 = arith.mulf %114, %115 : vector<256x64xf32>
    %117 = arith.addf %111, %116 : vector<256x64xf32>
    %118 = vector.broadcast %1 : vector<1x64xf32> to vector<256x64xf32>
    %119 = arith.addf %117, %118 : vector<256x64xf32>
    %cst_17 = arith.constant 0.000000e+00 : f32
    %120 = vector.broadcast %cst_17 : f32 to vector<256x64xf32>
    %121 = arith.maximumf %119, %120 : vector<256x64xf32>
    %c192 = arith.constant 192 : index
    %c0_18 = arith.constant 0 : index
    %122 = vector.load %arg4[%c192, %c0_18] : memref<256x32xf32, #tpu.memory_space<vmem>>, vector<64x32xf32>
    %cst_19 = arith.constant dense<0.000000e+00> : vector<256x32xf32>
    %123 = tpu.matmul %121, %122, %cst_19 {dimension_numbers = #tpu.dot_dimension_numbers<[1], [0], [0], [1], [0, 0, 1, 1], [], []>} : vector<256x64xf32>, vector<64x32xf32>, vector<256x32xf32> -> vector<256x32xf32>
    %124 = arith.addf %93, %123 : vector<256x32xf32>
    %c0_20 = arith.constant 0 : index
    %c0_21 = arith.constant 0 : index
    %125 = vector.load %arg5[%c0_20, %c0_21] : memref<1x32xf32, #tpu.memory_space<vmem>>, vector<1x32xf32>
    %126 = vector.broadcast %125 : vector<1x32xf32> to vector<256x32xf32>
    %127 = arith.addf %124, %126 : vector<256x32xf32>
    %cst_22 = arith.constant 0.000000e+00 : f32
    %128 = vector.broadcast %cst_22 : f32 to vector<256x32xf32>
    %129 = arith.maximumf %127, %128 : vector<256x32xf32>
    %130 = vector.extract_strided_slice %129 {offsets = [0, 0], sizes = [64, 32], strides = [1, 1]} : vector<256x32xf32> to vector<64x32xf32>
    %c0_23 = arith.constant 0 : index
    %c0_24 = arith.constant 0 : index
    %131 = vector.load %arg6[%c0_23, %c0_24] : memref<128x24xf32, #tpu.memory_space<vmem>>, vector<32x24xf32>
    %cst_25 = arith.constant dense<0.000000e+00> : vector<64x24xf32>
    %132 = tpu.matmul %130, %131, %cst_25 {dimension_numbers = #tpu.dot_dimension_numbers<[1], [0], [0], [1], [0, 0, 1, 1], [], []>} : vector<64x32xf32>, vector<32x24xf32>, vector<64x24xf32> -> vector<64x24xf32>
    %133 = vector.extract_strided_slice %129 {offsets = [64, 0], sizes = [64, 32], strides = [1, 1]} : vector<256x32xf32> to vector<64x32xf32>
    %c32 = arith.constant 32 : index
    %c0_26 = arith.constant 0 : index
    %134 = vector.load %arg6[%c32, %c0_26] : memref<128x24xf32, #tpu.memory_space<vmem>>, vector<32x24xf32>
    %cst_27 = arith.constant dense<0.000000e+00> : vector<64x24xf32>
    %135 = tpu.matmul %133, %134, %cst_27 {dimension_numbers = #tpu.dot_dimension_numbers<[1], [0], [0], [1], [0, 0, 1, 1], [], []>} : vector<64x32xf32>, vector<32x24xf32>, vector<64x24xf32> -> vector<64x24xf32>
    %136 = arith.addf %132, %135 : vector<64x24xf32>
    %137 = vector.extract_strided_slice %129 {offsets = [128, 0], sizes = [64, 32], strides = [1, 1]} : vector<256x32xf32> to vector<64x32xf32>
    %c64_28 = arith.constant 64 : index
    %c0_29 = arith.constant 0 : index
    %138 = vector.load %arg6[%c64_28, %c0_29] : memref<128x24xf32, #tpu.memory_space<vmem>>, vector<32x24xf32>
    %cst_30 = arith.constant dense<0.000000e+00> : vector<64x24xf32>
    %139 = tpu.matmul %137, %138, %cst_30 {dimension_numbers = #tpu.dot_dimension_numbers<[1], [0], [0], [1], [0, 0, 1, 1], [], []>} : vector<64x32xf32>, vector<32x24xf32>, vector<64x24xf32> -> vector<64x24xf32>
    %140 = arith.addf %136, %139 : vector<64x24xf32>
    %141 = vector.extract_strided_slice %129 {offsets = [192, 0], sizes = [64, 32], strides = [1, 1]} : vector<256x32xf32> to vector<64x32xf32>
    %c96 = arith.constant 96 : index
    %c0_31 = arith.constant 0 : index
    %142 = vector.load %arg6[%c96, %c0_31] : memref<128x24xf32, #tpu.memory_space<vmem>>, vector<32x24xf32>
    %cst_32 = arith.constant dense<0.000000e+00> : vector<64x24xf32>
    %143 = tpu.matmul %141, %142, %cst_32 {dimension_numbers = #tpu.dot_dimension_numbers<[1], [0], [0], [1], [0, 0, 1, 1], [], []>} : vector<64x32xf32>, vector<32x24xf32>, vector<64x24xf32> -> vector<64x24xf32>
    %144 = arith.addf %140, %143 : vector<64x24xf32>
    %c0_33 = arith.constant 0 : index
    %c0_34 = arith.constant 0 : index
    %145 = vector.load %arg7[%c0_33, %c0_34] : memref<1x24xf32, #tpu.memory_space<vmem>>, vector<1x24xf32>
    %146 = vector.broadcast %145 : vector<1x24xf32> to vector<64x24xf32>
    %147 = arith.addf %144, %146 : vector<64x24xf32>
    %cst_35 = arith.constant 0.000000e+00 : f32
    %148 = vector.broadcast %cst_35 : f32 to vector<64x24xf32>
    %149 = arith.maximumf %147, %148 : vector<64x24xf32>
    %150 = vector.extract_strided_slice %149 {offsets = [0, 0], sizes = [16, 24], strides = [1, 1]} : vector<64x24xf32> to vector<16x24xf32>
    %c0_36 = arith.constant 0 : index
    %c0_37 = arith.constant 0 : index
    %151 = vector.load %arg8[%c0_36, %c0_37] : memref<4x24xf32, #tpu.memory_space<vmem>>, vector<1x24xf32>
    %152 = vector.broadcast %151 : vector<1x24xf32> to vector<16x24xf32>
    %153 = arith.mulf %150, %152 : vector<16x24xf32>
    %cst_38 = arith.constant dense<0.000000e+00> : vector<16xf32>
    %154 = vector.multi_reduction <add>, %153, %cst_38 [1] : vector<16x24xf32> to vector<16xf32>
    %155 = vector.shape_cast %154 : vector<16xf32> to vector<16x1xf32>
    %156 = vector.extract_strided_slice %149 {offsets = [16, 0], sizes = [16, 24], strides = [1, 1]} : vector<64x24xf32> to vector<16x24xf32>
    %c1 = arith.constant 1 : index
    %c0_39 = arith.constant 0 : index
    %157 = vector.load %arg8[%c1, %c0_39] : memref<4x24xf32, #tpu.memory_space<vmem>>, vector<1x24xf32>
    %158 = vector.broadcast %157 : vector<1x24xf32> to vector<16x24xf32>
    %159 = arith.mulf %156, %158 : vector<16x24xf32>
    %cst_40 = arith.constant dense<0.000000e+00> : vector<16xf32>
    %160 = vector.multi_reduction <add>, %159, %cst_40 [1] : vector<16x24xf32> to vector<16xf32>
    %161 = vector.shape_cast %160 : vector<16xf32> to vector<16x1xf32>
    %162 = arith.addf %155, %161 : vector<16x1xf32>
    %163 = vector.extract_strided_slice %149 {offsets = [32, 0], sizes = [16, 24], strides = [1, 1]} : vector<64x24xf32> to vector<16x24xf32>
    %c2 = arith.constant 2 : index
    %c0_41 = arith.constant 0 : index
    %164 = vector.load %arg8[%c2, %c0_41] : memref<4x24xf32, #tpu.memory_space<vmem>>, vector<1x24xf32>
    %165 = vector.broadcast %164 : vector<1x24xf32> to vector<16x24xf32>
    %166 = arith.mulf %163, %165 : vector<16x24xf32>
    %cst_42 = arith.constant dense<0.000000e+00> : vector<16xf32>
    %167 = vector.multi_reduction <add>, %166, %cst_42 [1] : vector<16x24xf32> to vector<16xf32>
    %168 = vector.shape_cast %167 : vector<16xf32> to vector<16x1xf32>
    %169 = arith.addf %162, %168 : vector<16x1xf32>
    %170 = vector.extract_strided_slice %149 {offsets = [48, 0], sizes = [16, 24], strides = [1, 1]} : vector<64x24xf32> to vector<16x24xf32>
    %c3 = arith.constant 3 : index
    %c0_43 = arith.constant 0 : index
    %171 = vector.load %arg8[%c3, %c0_43] : memref<4x24xf32, #tpu.memory_space<vmem>>, vector<1x24xf32>
    %172 = vector.broadcast %171 : vector<1x24xf32> to vector<16x24xf32>
    %173 = arith.mulf %170, %172 : vector<16x24xf32>
    %cst_44 = arith.constant dense<0.000000e+00> : vector<16xf32>
    %174 = vector.multi_reduction <add>, %173, %cst_44 [1] : vector<16x24xf32> to vector<16xf32>
    %175 = vector.shape_cast %174 : vector<16xf32> to vector<16x1xf32>
    %176 = arith.addf %169, %175 : vector<16x1xf32>
    %c0_45 = arith.constant 0 : index
    %c0_46 = arith.constant 0 : index
    %177 = vector.load %arg9[%c0_45, %c0_46] : memref<1x1xf32, #tpu.memory_space<vmem>>, vector<1x1xf32>
    %178 = vector.broadcast %177 : vector<1x1xf32> to vector<16x1xf32>
    %179 = arith.addf %176, %178 : vector<16x1xf32>
    %cst_47 = arith.constant 0.000000e+00 : f32
    %180 = vector.broadcast %cst_47 : f32 to vector<16x1xf32>
    %181 = arith.maximumf %179, %180 : vector<16x1xf32>
    %182 = vector.extract_strided_slice %181 {offsets = [0, 0], sizes = [4, 1], strides = [1, 1]} : vector<16x1xf32> to vector<4x1xf32>
    %c0_48 = arith.constant 0 : index
    %c0_49 = arith.constant 0 : index
    %183 = vector.load %arg10[%c0_48, %c0_49] : memref<4x40xf32, #tpu.memory_space<vmem>>, vector<1x40xf32>
    %184 = vector.broadcast %182 : vector<4x1xf32> to vector<4x40xf32>
    %185 = vector.broadcast %183 : vector<1x40xf32> to vector<4x40xf32>
    %186 = arith.mulf %184, %185 : vector<4x40xf32>
    %187 = vector.extract_strided_slice %181 {offsets = [4, 0], sizes = [4, 1], strides = [1, 1]} : vector<16x1xf32> to vector<4x1xf32>
    %c1_50 = arith.constant 1 : index
    %c0_51 = arith.constant 0 : index
    %188 = vector.load %arg10[%c1_50, %c0_51] : memref<4x40xf32, #tpu.memory_space<vmem>>, vector<1x40xf32>
    %189 = vector.broadcast %187 : vector<4x1xf32> to vector<4x40xf32>
    %190 = vector.broadcast %188 : vector<1x40xf32> to vector<4x40xf32>
    %191 = arith.mulf %189, %190 : vector<4x40xf32>
    %192 = arith.addf %186, %191 : vector<4x40xf32>
    %193 = vector.extract_strided_slice %181 {offsets = [8, 0], sizes = [4, 1], strides = [1, 1]} : vector<16x1xf32> to vector<4x1xf32>
    %c2_52 = arith.constant 2 : index
    %c0_53 = arith.constant 0 : index
    %194 = vector.load %arg10[%c2_52, %c0_53] : memref<4x40xf32, #tpu.memory_space<vmem>>, vector<1x40xf32>
    %195 = vector.broadcast %193 : vector<4x1xf32> to vector<4x40xf32>
    %196 = vector.broadcast %194 : vector<1x40xf32> to vector<4x40xf32>
    %197 = arith.mulf %195, %196 : vector<4x40xf32>
    %198 = arith.addf %192, %197 : vector<4x40xf32>
    %199 = vector.extract_strided_slice %181 {offsets = [12, 0], sizes = [4, 1], strides = [1, 1]} : vector<16x1xf32> to vector<4x1xf32>
    %c3_54 = arith.constant 3 : index
    %c0_55 = arith.constant 0 : index
    %200 = vector.load %arg10[%c3_54, %c0_55] : memref<4x40xf32, #tpu.memory_space<vmem>>, vector<1x40xf32>
    %201 = vector.broadcast %199 : vector<4x1xf32> to vector<4x40xf32>
    %202 = vector.broadcast %200 : vector<1x40xf32> to vector<4x40xf32>
    %203 = arith.mulf %201, %202 : vector<4x40xf32>
    %204 = arith.addf %198, %203 : vector<4x40xf32>
    %c0_56 = arith.constant 0 : index
    %c0_57 = arith.constant 0 : index
    %205 = vector.load %arg11[%c0_56, %c0_57] : memref<1x40xf32, #tpu.memory_space<vmem>>, vector<1x40xf32>
    %206 = vector.broadcast %205 : vector<1x40xf32> to vector<4x40xf32>
    %207 = arith.addf %204, %206 : vector<4x40xf32>
    %c0_58 = arith.constant 0 : index
    %c0_59 = arith.constant 0 : index
    %208 = vector.load %arg12[%c0_58, %c0_59] : memref<4x40xf32, #tpu.memory_space<vmem>>, vector<4x40xf32>
    %209 = arith.addf %207, %208 : vector<4x40xf32>
    %c0_60 = arith.constant 0 : index
    %210 = memref.load %arg0[%c0_60] : memref<1xi32, #tpu.memory_space<smem>>
    %211 = tpu.iota {dimensions = array<i32: 0>} : vector<5x4xi32>
    %212 = tpu.iota {dimensions = array<i32: 1>} : vector<5x4xi32>
    %213 = arith.cmpi eq, %211, %212 : vector<5x4xi32>
    %c4_i32 = arith.constant 4 : i32
    %214 = vector.broadcast %c4_i32 : i32 to vector<5x4xi32>
    %215 = arith.cmpi eq, %211, %214 : vector<5x4xi32>
    %216 = vector.broadcast %210 : i32 to vector<5x4xi32>
    %217 = arith.cmpi eq, %212, %216 : vector<5x4xi32>
    %218 = arith.andi %215, %217 : vector<5x4xi1>
    %219 = arith.ori %213, %218 : vector<5x4xi1>
    %cst_61 = arith.constant 1.000000e+00 : f32
    %cst_62 = arith.constant 0.000000e+00 : f32
    %220 = vector.broadcast %cst_61 : f32 to vector<5x4xf32>
    %221 = vector.broadcast %cst_62 : f32 to vector<5x4xf32>
    %222 = arith.select %219, %220, %221 : vector<5x4xi1>, vector<5x4xf32>
    %cst_63 = arith.constant dense<0.000000e+00> : vector<5x40xf32>
    %223 = tpu.matmul %222, %209, %cst_63 {dimension_numbers = #tpu.dot_dimension_numbers<[1], [0], [0], [1], [0, 0, 1, 1], [], []>} : vector<5x4xf32>, vector<4x40xf32>, vector<5x40xf32> -> vector<5x40xf32>
    %c0_64 = arith.constant 0 : index
    %c0_65 = arith.constant 0 : index
    %224 = vector.load %arg13[%c0_64, %c0_65] : memref<40x40xf32, #tpu.memory_space<vmem>>, vector<40x40xf32>
    %cst_66 = arith.constant dense<0.000000e+00> : vector<5x40xf32>
    %225 = tpu.matmul %223, %224, %cst_66 {dimension_numbers = #tpu.dot_dimension_numbers<[1], [0], [0], [1], [0, 0, 1, 1], [], []>} : vector<5x40xf32>, vector<40x40xf32>, vector<5x40xf32> -> vector<5x40xf32>
    %c0_67 = arith.constant 0 : index
    %c0_68 = arith.constant 0 : index
    %226 = vector.load %arg14[%c0_67, %c0_68] : memref<1x40xf32, #tpu.memory_space<vmem>>, vector<1x40xf32>
    %227 = vector.broadcast %226 : vector<1x40xf32> to vector<5x40xf32>
    %228 = arith.addf %225, %227 : vector<5x40xf32>
    %c0_69 = arith.constant 0 : index
    %c0_70 = arith.constant 0 : index
    %229 = vector.load %arg15[%c0_69, %c0_70] : memref<40x40xf32, #tpu.memory_space<vmem>>, vector<40x40xf32>
    %cst_71 = arith.constant dense<0.000000e+00> : vector<5x40xf32>
    %230 = tpu.matmul %223, %229, %cst_71 {dimension_numbers = #tpu.dot_dimension_numbers<[1], [0], [0], [1], [0, 0, 1, 1], [], []>} : vector<5x40xf32>, vector<40x40xf32>, vector<5x40xf32> -> vector<5x40xf32>
    %c0_72 = arith.constant 0 : index
    %c0_73 = arith.constant 0 : index
    %231 = vector.load %arg16[%c0_72, %c0_73] : memref<1x40xf32, #tpu.memory_space<vmem>>, vector<1x40xf32>
    %232 = vector.broadcast %231 : vector<1x40xf32> to vector<5x40xf32>
    %233 = arith.addf %230, %232 : vector<5x40xf32>
    %c0_74 = arith.constant 0 : index
    %c0_75 = arith.constant 0 : index
    %234 = vector.load %arg17[%c0_74, %c0_75] : memref<40x40xf32, #tpu.memory_space<vmem>>, vector<40x40xf32>
    %cst_76 = arith.constant dense<0.000000e+00> : vector<5x40xf32>
    %235 = tpu.matmul %223, %234, %cst_76 {dimension_numbers = #tpu.dot_dimension_numbers<[1], [0], [0], [1], [0, 0, 1, 1], [], []>} : vector<5x40xf32>, vector<40x40xf32>, vector<5x40xf32> -> vector<5x40xf32>
    %c0_77 = arith.constant 0 : index
    %c0_78 = arith.constant 0 : index
    %236 = vector.load %arg18[%c0_77, %c0_78] : memref<1x40xf32, #tpu.memory_space<vmem>>, vector<1x40xf32>
    %237 = vector.broadcast %236 : vector<1x40xf32> to vector<5x40xf32>
    %238 = arith.addf %235, %237 : vector<5x40xf32>
    %c0_79 = arith.constant 0 : index
    %c0_80 = arith.constant 0 : index
    %239 = vector.load %arg19[%c0_79, %c0_80] : memref<25x5xf32, #tpu.memory_space<vmem>>, vector<25x5xf32>
    %c0_81 = arith.constant 0 : index
    %c0_82 = arith.constant 0 : index
    %240 = vector.load %arg20[%c0_81, %c0_82] : memref<25x40xf32, #tpu.memory_space<vmem>>, vector<25x40xf32>
    %cst_83 = arith.constant dense<0.000000e+00> : vector<25x40xf32>
    %241 = tpu.matmul %239, %233, %cst_83 {dimension_numbers = #tpu.dot_dimension_numbers<[1], [0], [0], [1], [0, 0, 1, 1], [], []>} : vector<25x5xf32>, vector<5x40xf32>, vector<25x40xf32> -> vector<25x40xf32>
    %242 = arith.mulf %241, %240 : vector<25x40xf32>
    %cst_84 = arith.constant dense<0.000000e+00> : vector<25x40xf32>
    %243 = tpu.matmul %239, %238, %cst_84 {dimension_numbers = #tpu.dot_dimension_numbers<[1], [0], [0], [1], [0, 0, 1, 1], [], []>} : vector<25x5xf32>, vector<5x40xf32>, vector<25x40xf32> -> vector<25x40xf32>
    %244 = arith.mulf %243, %240 : vector<25x40xf32>
    %cst_85 = arith.constant dense<0.000000e+00> : vector<5x25xf32>
    %245 = tpu.matmul %228, %242, %cst_85 {dimension_numbers = #tpu.dot_dimension_numbers<[1], [1], [0], [0], [0, 0, 1, 0], [], []>} : vector<5x40xf32>, vector<25x40xf32>, vector<5x25xf32> -> vector<5x25xf32>
    %cst_86 = arith.constant dense<0xFF800000> : vector<5xf32>
    %246 = vector.multi_reduction <maximumf>, %245, %cst_86 [1] : vector<5x25xf32> to vector<5xf32>
    %247 = vector.shape_cast %246 : vector<5xf32> to vector<5x1xf32>
    %248 = vector.broadcast %247 : vector<5x1xf32> to vector<5x25xf32>
    %249 = arith.subf %245, %248 : vector<5x25xf32>
    %250 = math.exp %249 : vector<5x25xf32>
    %cst_87 = arith.constant dense<0.000000e+00> : vector<5x40xf32>
    %251 = tpu.matmul %250, %240, %cst_87 {dimension_numbers = #tpu.dot_dimension_numbers<[1], [0], [0], [1], [0, 0, 1, 1], [], []>} : vector<5x25xf32>, vector<25x40xf32>, vector<5x40xf32> -> vector<5x40xf32>
    %cst_88 = arith.constant dense<0.000000e+00> : vector<5x40xf32>
    %252 = tpu.matmul %250, %244, %cst_88 {dimension_numbers = #tpu.dot_dimension_numbers<[1], [0], [0], [1], [0, 0, 1, 1], [], []>} : vector<5x25xf32>, vector<25x40xf32>, vector<5x40xf32> -> vector<5x40xf32>
    %253 = tpu.reciprocal %251 {approx = true} : vector<5x40xf32> -> vector<5x40xf32>
    %254 = arith.mulf %252, %253 : vector<5x40xf32>
    %c0_89 = arith.constant 0 : index
    %c0_90 = arith.constant 0 : index
    %255 = vector.load %arg21[%c0_89, %c0_90] : memref<40x40xf32, #tpu.memory_space<vmem>>, vector<40x40xf32>
    %cst_91 = arith.constant dense<0.000000e+00> : vector<5x40xf32>
    %256 = tpu.matmul %254, %255, %cst_91 {dimension_numbers = #tpu.dot_dimension_numbers<[1], [0], [0], [1], [0, 0, 1, 1], [], []>} : vector<5x40xf32>, vector<40x40xf32>, vector<5x40xf32> -> vector<5x40xf32>
    %c0_92 = arith.constant 0 : index
    %c0_93 = arith.constant 0 : index
    %257 = vector.load %arg22[%c0_92, %c0_93] : memref<1x40xf32, #tpu.memory_space<vmem>>, vector<1x40xf32>
    %258 = vector.broadcast %257 : vector<1x40xf32> to vector<5x40xf32>
    %259 = arith.addf %256, %258 : vector<5x40xf32>
    %260 = arith.addf %223, %259 : vector<5x40xf32>
    %c0_94 = arith.constant 0 : index
    %c0_95 = arith.constant 0 : index
    %261 = vector.load %arg23[%c0_94, %c0_95] : memref<1x40xf32, #tpu.memory_space<vmem>>, vector<1x40xf32>
    %c0_96 = arith.constant 0 : index
    %c0_97 = arith.constant 0 : index
    %262 = vector.load %arg24[%c0_96, %c0_97] : memref<1x40xf32, #tpu.memory_space<vmem>>, vector<1x40xf32>
    %cst_98 = arith.constant dense<0.000000e+00> : vector<5xf32>
    %263 = vector.multi_reduction <add>, %260, %cst_98 [1] : vector<5x40xf32> to vector<5xf32>
    %264 = vector.shape_cast %263 : vector<5xf32> to vector<5x1xf32>
    %cst_99 = arith.constant 4.000000e+01 : f32
    %265 = vector.broadcast %cst_99 : f32 to vector<5x1xf32>
    %266 = arith.divf %264, %265 : vector<5x1xf32>
    %267 = vector.broadcast %266 : vector<5x1xf32> to vector<5x40xf32>
    %268 = arith.subf %260, %267 : vector<5x40xf32>
    %269 = arith.mulf %268, %268 : vector<5x40xf32>
    %cst_100 = arith.constant dense<0.000000e+00> : vector<5xf32>
    %270 = vector.multi_reduction <add>, %269, %cst_100 [1] : vector<5x40xf32> to vector<5xf32>
    %271 = vector.shape_cast %270 : vector<5xf32> to vector<5x1xf32>
    %cst_101 = arith.constant 4.000000e+01 : f32
    %272 = vector.broadcast %cst_101 : f32 to vector<5x1xf32>
    %273 = arith.divf %271, %272 : vector<5x1xf32>
    %274 = vector.broadcast %266 : vector<5x1xf32> to vector<5x40xf32>
    %275 = arith.subf %260, %274 : vector<5x40xf32>
    %cst_102 = arith.constant 9.99999974E-6 : f32
    %276 = vector.broadcast %cst_102 : f32 to vector<5x1xf32>
    %277 = arith.addf %273, %276 : vector<5x1xf32>
    %278 = math.rsqrt %277 : vector<5x1xf32>
    %279 = vector.broadcast %278 : vector<5x1xf32> to vector<5x40xf32>
    %280 = arith.mulf %275, %279 : vector<5x40xf32>
    %281 = vector.broadcast %261 : vector<1x40xf32> to vector<5x40xf32>
    %282 = arith.mulf %280, %281 : vector<5x40xf32>
    %283 = vector.broadcast %262 : vector<1x40xf32> to vector<5x40xf32>
    %284 = arith.addf %282, %283 : vector<5x40xf32>
    %c0_103 = arith.constant 0 : index
    %c0_104 = arith.constant 0 : index
    %285 = vector.load %arg25[%c0_103, %c0_104] : memref<40x64xf32, #tpu.memory_space<vmem>>, vector<40x64xf32>
    %cst_105 = arith.constant dense<0.000000e+00> : vector<5x64xf32>
    %286 = tpu.matmul %284, %285, %cst_105 {dimension_numbers = #tpu.dot_dimension_numbers<[1], [0], [0], [1], [0, 0, 1, 1], [], []>} : vector<5x40xf32>, vector<40x64xf32>, vector<5x64xf32> -> vector<5x64xf32>
    %c0_106 = arith.constant 0 : index
    %c0_107 = arith.constant 0 : index
    %287 = vector.load %arg26[%c0_106, %c0_107] : memref<1x64xf32, #tpu.memory_space<vmem>>, vector<1x64xf32>
    %288 = vector.broadcast %287 : vector<1x64xf32> to vector<5x64xf32>
    %289 = arith.addf %286, %288 : vector<5x64xf32>
    %cst_108 = arith.constant 0.000000e+00 : f32
    %290 = vector.broadcast %cst_108 : f32 to vector<5x64xf32>
    %291 = arith.maximumf %289, %290 : vector<5x64xf32>
    %c0_109 = arith.constant 0 : index
    %c0_110 = arith.constant 0 : index
    %292 = vector.load %arg27[%c0_109, %c0_110] : memref<64x40xf32, #tpu.memory_space<vmem>>, vector<64x40xf32>
    %cst_111 = arith.constant dense<0.000000e+00> : vector<5x40xf32>
    %293 = tpu.matmul %291, %292, %cst_111 {dimension_numbers = #tpu.dot_dimension_numbers<[1], [0], [0], [1], [0, 0, 1, 1], [], []>} : vector<5x64xf32>, vector<64x40xf32>, vector<5x40xf32> -> vector<5x40xf32>
    %c0_112 = arith.constant 0 : index
    %c0_113 = arith.constant 0 : index
    %294 = vector.load %arg28[%c0_112, %c0_113] : memref<1x40xf32, #tpu.memory_space<vmem>>, vector<1x40xf32>
    %295 = vector.broadcast %294 : vector<1x40xf32> to vector<5x40xf32>
    %296 = arith.addf %293, %295 : vector<5x40xf32>
    %297 = arith.addf %284, %296 : vector<5x40xf32>
    %c0_114 = arith.constant 0 : index
    %c0_115 = arith.constant 0 : index
    %298 = vector.load %arg29[%c0_114, %c0_115] : memref<1x40xf32, #tpu.memory_space<vmem>>, vector<1x40xf32>
    %c0_116 = arith.constant 0 : index
    %c0_117 = arith.constant 0 : index
    %299 = vector.load %arg30[%c0_116, %c0_117] : memref<1x40xf32, #tpu.memory_space<vmem>>, vector<1x40xf32>
    %cst_118 = arith.constant dense<0.000000e+00> : vector<5xf32>
    %300 = vector.multi_reduction <add>, %297, %cst_118 [1] : vector<5x40xf32> to vector<5xf32>
    %301 = vector.shape_cast %300 : vector<5xf32> to vector<5x1xf32>
    %cst_119 = arith.constant 4.000000e+01 : f32
    %302 = vector.broadcast %cst_119 : f32 to vector<5x1xf32>
    %303 = arith.divf %301, %302 : vector<5x1xf32>
    %304 = vector.broadcast %303 : vector<5x1xf32> to vector<5x40xf32>
    %305 = arith.subf %297, %304 : vector<5x40xf32>
    %306 = arith.mulf %305, %305 : vector<5x40xf32>
    %cst_120 = arith.constant dense<0.000000e+00> : vector<5xf32>
    %307 = vector.multi_reduction <add>, %306, %cst_120 [1] : vector<5x40xf32> to vector<5xf32>
    %308 = vector.shape_cast %307 : vector<5xf32> to vector<5x1xf32>
    %cst_121 = arith.constant 4.000000e+01 : f32
    %309 = vector.broadcast %cst_121 : f32 to vector<5x1xf32>
    %310 = arith.divf %308, %309 : vector<5x1xf32>
    %311 = vector.broadcast %303 : vector<5x1xf32> to vector<5x40xf32>
    %312 = arith.subf %297, %311 : vector<5x40xf32>
    %cst_122 = arith.constant 9.99999974E-6 : f32
    %313 = vector.broadcast %cst_122 : f32 to vector<5x1xf32>
    %314 = arith.addf %310, %313 : vector<5x1xf32>
    %315 = math.rsqrt %314 : vector<5x1xf32>
    %316 = vector.broadcast %315 : vector<5x1xf32> to vector<5x40xf32>
    %317 = arith.mulf %312, %316 : vector<5x40xf32>
    %318 = vector.broadcast %298 : vector<1x40xf32> to vector<5x40xf32>
    %319 = arith.mulf %317, %318 : vector<5x40xf32>
    %320 = vector.broadcast %299 : vector<1x40xf32> to vector<5x40xf32>
    %321 = arith.addf %319, %320 : vector<5x40xf32>
    %322 = vector.extract_strided_slice %321 {offsets = [4, 0], sizes = [1, 40], strides = [1, 1]} : vector<5x40xf32> to vector<1x40xf32>
    %c0_123 = arith.constant 0 : index
    %c0_124 = arith.constant 0 : index
    %323 = vector.load %arg31[%c0_123, %c0_124] : memref<40x8xf32, #tpu.memory_space<vmem>>, vector<40x8xf32>
    %cst_125 = arith.constant dense<0.000000e+00> : vector<1x8xf32>
    %324 = tpu.matmul %322, %323, %cst_125 {dimension_numbers = #tpu.dot_dimension_numbers<[1], [0], [0], [1], [0, 0, 1, 1], [], []>} : vector<1x40xf32>, vector<40x8xf32>, vector<1x8xf32> -> vector<1x8xf32>
    %c0_126 = arith.constant 0 : index
    %c0_127 = arith.constant 0 : index
    %325 = vector.load %arg32[%c0_126, %c0_127] : memref<1x8xf32, #tpu.memory_space<vmem>>, vector<1x8xf32>
    %326 = arith.addf %324, %325 : vector<1x8xf32>
    %327 = arith.negf %326 : vector<1x8xf32>
    %328 = math.exp %327 : vector<1x8xf32>
    %cst_128 = arith.constant 1.000000e+00 : f32
    %329 = vector.broadcast %cst_128 : f32 to vector<1x8xf32>
    %330 = arith.addf %329, %328 : vector<1x8xf32>
    %331 = arith.divf %329, %330 : vector<1x8xf32>
    %c0_129 = arith.constant 0 : index
    %c0_130 = arith.constant 0 : index
    %332 = vector.load %arg33[%c0_129, %c0_130] : memref<1x8xf32, #tpu.memory_space<vmem>>, vector<1x8xf32>
    tpu.vector_store %arg33[%c0_129, %c0_130], %331 {strides = array<i32>} : memref<1x8xf32, #tpu.memory_space<vmem>>, vector<1x8xf32>,
    return
  }
}

</mosaic_0001>

<llo_original>
// kernel: rpn_forward.1
$region0: #{rpn_forward.1}
  #allocation0 [shape = 'u32[]', space=smem, size = 0x4, offset = 0x4, fixed_abs, tag = 'smem constant byte address 0x4 - core index']
  #allocation1 [shape = 'u32[72,128]{1,0:T(1,128)}', space=vmem, size = 0x9000, scoped, tag = 'internal scratch']
  #allocation2 [shape = 's32[1]{0:T(128)S(6)}', space=smem, size = 0x200, scoped, tag = 'scoped memory for rpn_forward.1']
  #allocation3 [shape = 'f32[1,1]{1,0:T(1,128)S(1)}', space=vmem, size = 0x200, scoped, tag = 'scoped memory for rpn_forward.1']
  %s0 = inlined_call_operand.smem [shape: u32[34], index: -1, kind: input, shape index: {}]
  %s1 = sld [smem:[%s0]]
  %s2 = scalar_lea.smem %s0, 1
  %s3 = sld [smem:[%s2]]
  %s4 = scalar_lea.smem %s0, 2
  %s5 = sld [smem:[%s4]]
  %s6 = scalar_lea.smem %s0, 3
  %s7 = sld [smem:[%s6]]
  %s8 = scalar_lea.smem %s0, 4
  %s9 = sld [smem:[%s8]]
  %s10 = scalar_lea.smem %s0, 5
  %s11 = sld [smem:[%s10]]
  %s12 = scalar_lea.smem %s0, 6
  %s13 = sld [smem:[%s12]]
  %s14 = scalar_lea.smem %s0, 7
  %s15 = sld [smem:[%s14]]
  %s16 = scalar_lea.smem %s0, 8
  %s17 = sld [smem:[%s16]]
  %s18 = scalar_lea.smem %s0, 9
  %s19 = sld [smem:[%s18]]
  %s20 = scalar_lea.smem %s0, 10
  %s21 = sld [smem:[%s20]]
  %s22 = scalar_lea.smem %s0, 11
  %s23 = sld [smem:[%s22]]
  %s24 = scalar_lea.smem %s0, 12
  %s25 = sld [smem:[%s24]]
  %s26 = scalar_lea.smem %s0, 13
  %s27 = sld [smem:[%s26]]
  %s28 = scalar_lea.smem %s0, 14
  %s29 = sld [smem:[%s28]]
  %s30 = scalar_lea.smem %s0, 15
  %s31 = sld [smem:[%s30]]
  %s32 = scalar_lea.smem %s0, 16
  %s33 = sld [smem:[%s32]]
  %s34 = scalar_lea.smem %s0, 17
  %s35 = sld [smem:[%s34]]
  %s36 = scalar_lea.smem %s0, 18
  %s37 = sld [smem:[%s36]]
  %s38 = scalar_lea.smem %s0, 19
  %s39 = sld [smem:[%s38]]
  %s40 = scalar_lea.smem %s0, 20
  %s41 = sld [smem:[%s40]]
  %s42 = scalar_lea.smem %s0, 21
  %s43 = sld [smem:[%s42]]
  %s44 = scalar_lea.smem %s0, 22
  %s45 = sld [smem:[%s44]]
  %s46 = scalar_lea.smem %s0, 23
  %s47 = sld [smem:[%s46]]
  %s48 = scalar_lea.smem %s0, 24
  %s49 = sld [smem:[%s48]]
  %s50 = scalar_lea.smem %s0, 25
  %s51 = sld [smem:[%s50]]
  %s52 = scalar_lea.smem %s0, 26
  %s53 = sld [smem:[%s52]]
  %s54 = scalar_lea.smem %s0, 27
  %s55 = sld [smem:[%s54]]
  %s56 = scalar_lea.smem %s0, 28
  %s57 = sld [smem:[%s56]]
  %s58 = scalar_lea.smem %s0, 29
  %s59 = sld [smem:[%s58]]
  %s60 = scalar_lea.smem %s0, 30
  %s61 = sld [smem:[%s60]]
  %s62 = scalar_lea.smem %s0, 31
  %s63 = sld [smem:[%s62]]
  %s64 = scalar_lea.smem %s0, 32
  %s65 = sld [smem:[%s64]]
  %s66 = scalar_lea.smem %s0, 33
  %s67 = sld [smem:[%s66]]
  %s68 = sld [smem:[#allocation0]]
  $region142: #{rpn_forward.1} parent=0
    _
  %s70 = ssub.s32 1, %s68
  %s71 = scalar_select 0, %s70, %s68
  %72 = sst [smem:[#allocation2]] %s1
  %v73 = vstv %s19
  %74 = vst [vmem:[#allocation3] sm:$0x1] %v73
  $region1: #{rpn_forward.1} parent=0
    #allocation4 [shape = 'u8[512]{0}', space=vmem, size = 0x400, scoped, tag = 'output window, operand 0, single buffered']
    #allocation5 [shape = 's32[1]{0}', space=sflag, size = 0x4, scoped, tag = 'scoped memory for rpn_forward.1']
    %75 = vsyncpa [#allocation5], 0
    // Predicated region
    $region2: #{rpn_forward.1} parent=1 // pred_check
      _
    $region3: #{rpn_forward.1} parent=1 // pred_check_branch
      %77 = sbr.rel (0) target = $region5
    $region4: #{rpn_forward.1} parent=1 // pred_region
      _
    $region5: #{rpn_forward.1} parent=1 // pred_fallthru
      _
    // Predicated region
    $region6: #{rpn_forward.1} parent=1 // pred_check
      _
    $region7: #{rpn_forward.1} parent=1 // pred_check_branch
      %79 = sbr.rel (0) target = $region9
    $region8: #{rpn_forward.1} parent=1 // pred_region
      _
    $region9: #{rpn_forward.1} parent=1 // pred_fallthru
      _
    // Predicated region
    $region10: #{rpn_forward.1} parent=1 // pred_check
      _
    $region11: #{rpn_forward.1} parent=1 // pred_check_branch
      %81 = sbr.rel (0) target = $region13
    $region12: #{rpn_forward.1} parent=1 // pred_region
      _
    $region13: #{rpn_forward.1} parent=1 // pred_fallthru
      _
    // Predicated region
    $region14: #{rpn_forward.1} parent=1 // pred_check
      _
    $region15: #{rpn_forward.1} parent=1 // pred_check_branch
      %83 = sbr.rel (0) target = $region17
    $region16: #{rpn_forward.1} parent=1 // pred_region
      _
    $region17: #{rpn_forward.1} parent=1 // pred_fallthru
      _
    // Predicated region
    $region18: #{rpn_forward.1} parent=1 // pred_check
      _
    $region19: #{rpn_forward.1} parent=1 // pred_check_branch
      %85 = sbr.rel (0) target = $region21
    $region20: #{rpn_forward.1} parent=1 // pred_region
      _
    $region21: #{rpn_forward.1} parent=1 // pred_fallthru
      _
    // Predicated region
    $region22: #{rpn_forward.1} parent=1 // pred_check
      _
    $region23: #{rpn_forward.1} parent=1 // pred_check_branch
      %87 = sbr.rel (0) target = $region25
    $region24: #{rpn_forward.1} parent=1 // pred_region
      _
    $region25: #{rpn_forward.1} parent=1 // pred_fallthru
      _
    // Predicated region
    $region26: #{rpn_forward.1} parent=1 // pred_check
      _
    $region27: #{rpn_forward.1} parent=1 // pred_check_branch
      %89 = sbr.rel (0) target = $region29
    $region28: #{rpn_forward.1} parent=1 // pred_region
      _
    $region29: #{rpn_forward.1} parent=1 // pred_fallthru
      _
    // Predicated region
    $region30: #{rpn_forward.1} parent=1 // pred_check
      _
    $region31: #{rpn_forward.1} parent=1 // pred_check_branch
      %91 = sbr.rel (0) target = $region33
    $region32: #{rpn_forward.1} parent=1 // pred_region
      _
    $region33: #{rpn_forward.1} parent=1 // pred_fallthru
      _
    // Predicated region
    $region34: #{rpn_forward.1} parent=1 // pred_check
      _
    $region35: #{rpn_forward.1} parent=1 // pred_check_branch
      %93 = sbr.rel (0) target = $region37
    $region36: #{rpn_forward.1} parent=1 // pred_region
      _
    $region37: #{rpn_forward.1} parent=1 // pred_fallthru
      _
    // Predicated region
    $region38: #{rpn_forward.1} parent=1 // pred_check
      _
    $region39: #{rpn_forward.1} parent=1 // pred_check_branch
      %95 = sbr.rel (0) target = $region41
    $region40: #{rpn_forward.1} parent=1 // pred_region
      _
    $region41: #{rpn_forward.1} parent=1 // pred_fallthru
      _
    // Predicated region
    $region42: #{rpn_forward.1} parent=1 // pred_check
      _
    $region43: #{rpn_forward.1} parent=1 // pred_check_branch
      %97 = sbr.rel (0) target = $region45
    $region44: #{rpn_forward.1} parent=1 // pred_region
      _
    $region45: #{rpn_forward.1} parent=1 // pred_fallthru
      _
    // Predicated region
    $region46: #{rpn_forward.1} parent=1 // pred_check
      _
    $region47: #{rpn_forward.1} parent=1 // pred_check_branch
      %99 = sbr.rel (0) target = $region49
    $region48: #{rpn_forward.1} parent=1 // pred_region
      _
    $region49: #{rpn_forward.1} parent=1 // pred_fallthru
      _
    // Predicated region
    $region50: #{rpn_forward.1} parent=1 // pred_check
      _
    $region51: #{rpn_forward.1} parent=1 // pred_check_branch
      %101 = sbr.rel (0) target = $region53
    $region52: #{rpn_forward.1} parent=1 // pred_region
      _
    $region53: #{rpn_forward.1} parent=1 // pred_fallthru
      _
    // Predicated region
    $region54: #{rpn_forward.1} parent=1 // pred_check
      _
    $region55: #{rpn_forward.1} parent=1 // pred_check_branch
      %103 = sbr.rel (0) target = $region57
    $region56: #{rpn_forward.1} parent=1 // pred_region
      _
    $region57: #{rpn_forward.1} parent=1 // pred_fallthru
      _
    // Predicated region
    $region58: #{rpn_forward.1} parent=1 // pred_check
      _
    $region59: #{rpn_forward.1} parent=1 // pred_check_branch
      %105 = sbr.rel (0) target = $region61
    $region60: #{rpn_forward.1} parent=1 // pred_region
      _
    $region61: #{rpn_forward.1} parent=1 // pred_fallthru
      _
    // Predicated region
    $region62: #{rpn_forward.1} parent=1 // pred_check
      _
    $region63: #{rpn_forward.1} parent=1 // pred_check_branch
      %107 = sbr.rel (0) target = $region65
    $region64: #{rpn_forward.1} parent=1 // pred_region
      _
    $region65: #{rpn_forward.1} parent=1 // pred_fallthru
      _
    // Predicated region
    $region66: #{rpn_forward.1} parent=1 // pred_check
      _
    $region67: #{rpn_forward.1} parent=1 // pred_check_branch
      %109 = sbr.rel (0) target = $region69
    $region68: #{rpn_forward.1} parent=1 // pred_region
      _
    $region69: #{rpn_forward.1} parent=1 // pred_fallthru
      _
    // Predicated region
    $region70: #{rpn_forward.1} parent=1 // pred_check
      _
    $region71: #{rpn_forward.1} parent=1 // pred_check_branch
      %111 = sbr.rel (0) target = $region73
    $region72: #{rpn_forward.1} parent=1 // pred_region
      _
    $region73: #{rpn_forward.1} parent=1 // pred_fallthru
      _
    // Predicated region
    $region74: #{rpn_forward.1} parent=1 // pred_check
      _
    $region75: #{rpn_forward.1} parent=1 // pred_check_branch
      %113 = sbr.rel (0) target = $region77
    $region76: #{rpn_forward.1} parent=1 // pred_region
      _
    $region77: #{rpn_forward.1} parent=1 // pred_fallthru
      _
    // Predicated region
    $region78: #{rpn_forward.1} parent=1 // pred_check
      _
    $region79: #{rpn_forward.1} parent=1 // pred_check_branch
      %115 = sbr.rel (0) target = $region81
    $region80: #{rpn_forward.1} parent=1 // pred_region
      _
    $region81: #{rpn_forward.1} parent=1 // pred_fallthru
      _
    // Predicated region
    $region82: #{rpn_forward.1} parent=1 // pred_check
      _
    $region83: #{rpn_forward.1} parent=1 // pred_check_branch
      %117 = sbr.rel (0) target = $region85
    $region84: #{rpn_forward.1} parent=1 // pred_region
      _
    $region85: #{rpn_forward.1} parent=1 // pred_fallthru
      _
    // Predicated region
    $region86: #{rpn_forward.1} parent=1 // pred_check
      _
    $region87: #{rpn_forward.1} parent=1 // pred_check_branch
      %119 = sbr.rel (0) target = $region89
    $region88: #{rpn_forward.1} parent=1 // pred_region
      _
    $region89: #{rpn_forward.1} parent=1 // pred_fallthru
      _
    // Predicated region
    $region90: #{rpn_forward.1} parent=1 // pred_check
      _
    $region91: #{rpn_forward.1} parent=1 // pred_check_branch
      %121 = sbr.rel (0) target = $region93
    $region92: #{rpn_forward.1} parent=1 // pred_region
      _
    $region93: #{rpn_forward.1} parent=1 // pred_fallthru
      _
    // Predicated region
    $region94: #{rpn_forward.1} parent=1 // pred_check
      _
    $region95: #{rpn_forward.1} parent=1 // pred_check_branch
      %123 = sbr.rel (0) target = $region97
    $region96: #{rpn_forward.1} parent=1 // pred_region
      _
    $region97: #{rpn_forward.1} parent=1 // pred_fallthru
      _
    // Predicated region
    $region98: #{rpn_forward.1} parent=1 // pred_check
      _
    $region99: #{rpn_forward.1} parent=1 // pred_check_branch
      %125 = sbr.rel (0) target = $region101
    $region100: #{rpn_forward.1} parent=1 // pred_region
      _
    $region101: #{rpn_forward.1} parent=1 // pred_fallthru
      _
    // Predicated region
    $region102: #{rpn_forward.1} parent=1 // pred_check
      _
    $region103: #{rpn_forward.1} parent=1 // pred_check_branch
      %127 = sbr.rel (0) target = $region105
    $region104: #{rpn_forward.1} parent=1 // pred_region
      _
    $region105: #{rpn_forward.1} parent=1 // pred_fallthru
      _
    // Predicated region
    $region106: #{rpn_forward.1} parent=1 // pred_check
      _
    $region107: #{rpn_forward.1} parent=1 // pred_check_branch
      %129 = sbr.rel (0) target = $region109
    $region108: #{rpn_forward.1} parent=1 // pred_region
      _
    $region109: #{rpn_forward.1} parent=1 // pred_fallthru
      _
    // Predicated region
    $region110: #{rpn_forward.1} parent=1 // pred_check
      _
    $region111: #{rpn_forward.1} parent=1 // pred_check_branch
      %131 = sbr.rel (0) target = $region113
    $region112: #{rpn_forward.1} parent=1 // pred_region
      _
    $region113: #{rpn_forward.1} parent=1 // pred_fallthru
      _
    // Predicated region
    $region114: #{rpn_forward.1} parent=1 // pred_check
      _
    $region115: #{rpn_forward.1} parent=1 // pred_check_branch
      %133 = sbr.rel (0) target = $region117
    $region116: #{rpn_forward.1} parent=1 // pred_region
      _
    $region117: #{rpn_forward.1} parent=1 // pred_fallthru
      _
    // Predicated region
    $region118: #{rpn_forward.1} parent=1 // pred_check
      _
    $region119: #{rpn_forward.1} parent=1 // pred_check_branch
      %135 = sbr.rel (0) target = $region121
    $region120: #{rpn_forward.1} parent=1 // pred_region
      _
    $region121: #{rpn_forward.1} parent=1 // pred_fallthru
      _
    // Predicated region
    $region122: #{rpn_forward.1} parent=1 // pred_check
      _
    $region123: #{rpn_forward.1} parent=1 // pred_check_branch
      %137 = sbr.rel (0) target = $region125
    $region124: #{rpn_forward.1} parent=1 // pred_region
      _
    $region125: #{rpn_forward.1} parent=1 // pred_fallthru
      _
    // Predicated region
    $region126: #{rpn_forward.1} parent=1 // pred_check
      _
    $region127: #{rpn_forward.1} parent=1 // pred_check_branch
      %139 = sbr.rel (0) target = $region129
    $region128: #{rpn_forward.1} parent=1 // pred_region
      _
    $region129: #{rpn_forward.1} parent=1 // pred_fallthru
      _
    // Predicated region
    $region130: #{rpn_forward.1} parent=1 // pred_check
      _
    $region131: #{rpn_forward.1} parent=1 // pred_check_branch
      %141 = sbr.rel (0) target = $region133
    $region132: #{rpn_forward.1} parent=1 // pred_region
      _
    $region133: #{rpn_forward.1} parent=1 // pred_fallthru
      _
    %v142 = vld [vmem:[%s5] sm:$0xf]
    %v143 = vld [vmem:[%s7] sm:$0x1]
    %v144 = vld [vmem:[%s3] sm:$0xff]
    %v145 = vld [vmem:[%s3 + $0x8] sm:$0xff]
    %v146 = vld [vmem:[%s3 + $0x10] sm:$0xff]
    %v147 = vld [vmem:[%s3 + $0x18] sm:$0xff]
    %v148 = vld [vmem:[%s3 + $0x20] sm:$0xff]
    %v149 = vld [vmem:[%s3 + $0x28] sm:$0xff]
    %v150 = vld [vmem:[%s3 + $0x30] sm:$0xff]
    %v151 = vld [vmem:[%s3 + $0x38] sm:$0xff]
    %v152 = vld [vmem:[%s3 + $0x40] sm:$0xff]
    %v153 = vld [vmem:[%s3 + $0x48] sm:$0xff]
    %v154 = vld [vmem:[%s3 + $0x50] sm:$0xff]
    %v155 = vld [vmem:[%s3 + $0x58] sm:$0xff]
    %v156 = vld [vmem:[%s3 + $0x60] sm:$0xff]
    %v157 = vld [vmem:[%s3 + $0x68] sm:$0xff]
    %v158 = vld [vmem:[%s3 + $0x70] sm:$0xff]
    %v159 = vld [vmem:[%s3 + $0x78] sm:$0xff]
    %v160 = vld [vmem:[%s3 + $0x80] sm:$0xff]
    %v161 = vld [vmem:[%s3 + $0x88] sm:$0xff]
    %v162 = vld [vmem:[%s3 + $0x90] sm:$0xff]
    %v163 = vld [vmem:[%s3 + $0x98] sm:$0xff]
    %v164 = vld [vmem:[%s3 + $0xa0] sm:$0xff]
    %v165 = vld [vmem:[%s3 + $0xa8] sm:$0xff]
    %v166 = vld [vmem:[%s3 + $0xb0] sm:$0xff]
    %v167 = vld [vmem:[%s3 + $0xb8] sm:$0xff]
    %v168 = vld [vmem:[%s3 + $0xc0] sm:$0xff]
    %v169 = vld [vmem:[%s3 + $0xc8] sm:$0xff]
    %v170 = vld [vmem:[%s3 + $0xd0] sm:$0xff]
    %v171 = vld [vmem:[%s3 + $0xd8] sm:$0xff]
    %v172 = vld [vmem:[%s3 + $0xe0] sm:$0xff]
    %v173 = vld [vmem:[%s3 + $0xe8] sm:$0xff]
    %v174 = vld [vmem:[%s3 + $0xf0] sm:$0xff]
    %v175 = vld [vmem:[%s3 + $0xf8] sm:$0xff]
    %177 = vset.pattern.permute.xlu0 0
    %178 = vperm.xlu0 %177, %v144
    %v179 = vpop.permute.xlu0 %178
    %182 = vset.pattern.permute.xlu0 0
    %183 = vperm.xlu0 %182, %v145
    %v184 = vpop.permute.xlu0 %183
    %187 = vset.pattern.permute.xlu0 0
    %188 = vperm.xlu0 %187, %v146
    %v189 = vpop.permute.xlu0 %188
    %192 = vset.pattern.permute.xlu0 0
    %193 = vperm.xlu0 %192, %v147
    %v194 = vpop.permute.xlu0 %193
    %197 = vset.pattern.permute.xlu0 0
    %198 = vperm.xlu0 %197, %v148
    %v199 = vpop.permute.xlu0 %198
    %202 = vset.pattern.permute.xlu0 0
    %203 = vperm.xlu0 %202, %v149
    %v204 = vpop.permute.xlu0 %203
    %207 = vset.pattern.permute.xlu0 0
    %208 = vperm.xlu0 %207, %v150
    %v209 = vpop.permute.xlu0 %208
    %212 = vset.pattern.permute.xlu0 0
    %213 = vperm.xlu0 %212, %v151
    %v214 = vpop.permute.xlu0 %213
    %217 = vset.pattern.permute.xlu0 0
    %218 = vperm.xlu0 %217, %v152
    %v219 = vpop.permute.xlu0 %218
    %222 = vset.pattern.permute.xlu0 0
    %223 = vperm.xlu0 %222, %v153
    %v224 = vpop.permute.xlu0 %223
    %227 = vset.pattern.permute.xlu0 0
    %228 = vperm.xlu0 %227, %v154
    %v229 = vpop.permute.xlu0 %228
    %232 = vset.pattern.permute.xlu0 0
    %233 = vperm.xlu0 %232, %v155
    %v234 = vpop.permute.xlu0 %233
    %237 = vset.pattern.permute.xlu0 0
    %238 = vperm.xlu0 %237, %v156
    %v239 = vpop.permute.xlu0 %238
    %242 = vset.pattern.permute.xlu0 0
    %243 = vperm.xlu0 %242, %v157
    %v244 = vpop.permute.xlu0 %243
    %247 = vset.pattern.permute.xlu0 0
    %248 = vperm.xlu0 %247, %v158
    %v249 = vpop.permute.xlu0 %248
    %252 = vset.pattern.permute.xlu0 0
    %253 = vperm.xlu0 %252, %v159
    %v254 = vpop.permute.xlu0 %253
    %257 = vset.pattern.permute.xlu0 0
    %258 = vperm.xlu0 %257, %v160
    %v259 = vpop.permute.xlu0 %258
    %262 = vset.pattern.permute.xlu0 0
    %263 = vperm.xlu0 %262, %v161
    %v264 = vpop.permute.xlu0 %263
    %267 = vset.pattern.permute.xlu0 0
    %268 = vperm.xlu0 %267, %v162
    %v269 = vpop.permute.xlu0 %268
    %272 = vset.pattern.permute.xlu0 0
    %273 = vperm.xlu0 %272, %v163
    %v274 = vpop.permute.xlu0 %273
    %277 = vset.pattern.permute.xlu0 0
    %278 = vperm.xlu0 %277, %v164
    %v279 = vpop.permute.xlu0 %278
    %282 = vset.pattern.permute.xlu0 0
    %283 = vperm.xlu0 %282, %v165
    %v284 = vpop.permute.xlu0 %283
    %287 = vset.pattern.permute.xlu0 0
    %288 = vperm.xlu0 %287, %v166
    %v289 = vpop.permute.xlu0 %288
    %292 = vset.pattern.permute.xlu0 0
    %293 = vperm.xlu0 %292, %v167
    %v294 = vpop.permute.xlu0 %293
    %297 = vset.pattern.permute.xlu0 0
    %298 = vperm.xlu0 %297, %v168
    %v299 = vpop.permute.xlu0 %298
    %302 = vset.pattern.permute.xlu0 0
    %303 = vperm.xlu0 %302, %v169
    %v304 = vpop.permute.xlu0 %303
    %307 = vset.pattern.permute.xlu0 0
    %308 = vperm.xlu0 %307, %v170
    %v309 = vpop.permute.xlu0 %308
    %312 = vset.pattern.permute.xlu0 0
    %313 = vperm.xlu0 %312, %v171
    %v314 = vpop.permute.xlu0 %313
    %317 = vset.pattern.permute.xlu0 0
    %318 = vperm.xlu0 %317, %v172
    %v319 = vpop.permute.xlu0 %318
    %322 = vset.pattern.permute.xlu0 0
    %323 = vperm.xlu0 %322, %v173
    %v324 = vpop.permute.xlu0 %323
    %327 = vset.pattern.permute.xlu0 0
    %328 = vperm.xlu0 %327, %v174
    %v329 = vpop.permute.xlu0 %328
    %332 = vset.pattern.permute.xlu0 0
    %333 = vperm.xlu0 %332, %v175
    %v334 = vpop.permute.xlu0 %333
    %v336 = vperm.slane %v142, 0
    %v337 = vmul.f32 %v179, %v336
    %v338 = vmul.f32 %v184, %v336
    %v339 = vmul.f32 %v189, %v336
    %v340 = vmul.f32 %v194, %v336
    %v341 = vmul.f32 %v199, %v336
    %v342 = vmul.f32 %v204, %v336
    %v343 = vmul.f32 %v209, %v336
    %v344 = vmul.f32 %v214, %v336
    %v345 = vmul.f32 %v219, %v336
    %v346 = vmul.f32 %v224, %v336
    %v347 = vmul.f32 %v229, %v336
    %v348 = vmul.f32 %v234, %v336
    %v349 = vmul.f32 %v239, %v336
    %v350 = vmul.f32 %v244, %v336
    %v351 = vmul.f32 %v249, %v336
    %v352 = vmul.f32 %v254, %v336
    %v353 = vmul.f32 %v259, %v336
    %v354 = vmul.f32 %v264, %v336
    %v355 = vmul.f32 %v269, %v336
    %v356 = vmul.f32 %v274, %v336
    %v357 = vmul.f32 %v279, %v336
    %v358 = vmul.f32 %v284, %v336
    %v359 = vmul.f32 %v289, %v336
    %v360 = vmul.f32 %v294, %v336
    %v361 = vmul.f32 %v299, %v336
    %v362 = vmul.f32 %v304, %v336
    %v363 = vmul.f32 %v309, %v336
    %v364 = vmul.f32 %v314, %v336
    %v365 = vmul.f32 %v319, %v336
    %v366 = vmul.f32 %v324, %v336
    %v367 = vmul.f32 %v329, %v336
    %v368 = vmul.f32 %v334, %v336
    %369 = vset.pattern.permute.xlu0 1
    %370 = vperm.xlu0 %369, %v144
    %v371 = vpop.permute.xlu0 %370
    %373 = vset.pattern.permute.xlu0 1
    %374 = vperm.xlu0 %373, %v145
    %v375 = vpop.permute.xlu0 %374
    %377 = vset.pattern.permute.xlu0 1
    %378 = vperm.xlu0 %377, %v146
    %v379 = vpop.permute.xlu0 %378
    %381 = vset.pattern.permute.xlu0 1
    %382 = vperm.xlu0 %381, %v147
    %v383 = vpop.permute.xlu0 %382
    %385 = vset.pattern.permute.xlu0 1
    %386 = vperm.xlu0 %385, %v148
    %v387 = vpop.permute.xlu0 %386
    %389 = vset.pattern.permute.xlu0 1
    %390 = vperm.xlu0 %389, %v149
    %v391 = vpop.permute.xlu0 %390
    %393 = vset.pattern.permute.xlu0 1
    %394 = vperm.xlu0 %393, %v150
    %v395 = vpop.permute.xlu0 %394
    %397 = vset.pattern.permute.xlu0 1
    %398 = vperm.xlu0 %397, %v151
    %v399 = vpop.permute.xlu0 %398
    %401 = vset.pattern.permute.xlu0 1
    %402 = vperm.xlu0 %401, %v152
    %v403 = vpop.permute.xlu0 %402
    %405 = vset.pattern.permute.xlu0 1
    %406 = vperm.xlu0 %405, %v153
    %v407 = vpop.permute.xlu0 %406
    %409 = vset.pattern.permute.xlu0 1
    %410 = vperm.xlu0 %409, %v154
    %v411 = vpop.permute.xlu0 %410
    %413 = vset.pattern.permute.xlu0 1
    %414 = vperm.xlu0 %413, %v155
    %v415 = vpop.permute.xlu0 %414
    %417 = vset.pattern.permute.xlu0 1
    %418 = vperm.xlu0 %417, %v156
    %v419 = vpop.permute.xlu0 %418
    %421 = vset.pattern.permute.xlu0 1
    %422 = vperm.xlu0 %421, %v157
    %v423 = vpop.permute.xlu0 %422
    %425 = vset.pattern.permute.xlu0 1
    %426 = vperm.xlu0 %425, %v158
    %v427 = vpop.permute.xlu0 %426
    %429 = vset.pattern.permute.xlu0 1
    %430 = vperm.xlu0 %429, %v159
    %v431 = vpop.permute.xlu0 %430
    %433 = vset.pattern.permute.xlu0 1
    %434 = vperm.xlu0 %433, %v160
    %v435 = vpop.permute.xlu0 %434
    %437 = vset.pattern.permute.xlu0 1
    %438 = vperm.xlu0 %437, %v161
    %v439 = vpop.permute.xlu0 %438
    %441 = vset.pattern.permute.xlu0 1
    %442 = vperm.xlu0 %441, %v162
    %v443 = vpop.permute.xlu0 %442
    %445 = vset.pattern.permute.xlu0 1
    %446 = vperm.xlu0 %445, %v163
    %v447 = vpop.permute.xlu0 %446
    %449 = vset.pattern.permute.xlu0 1
    %450 = vperm.xlu0 %449, %v164
    %v451 = vpop.permute.xlu0 %450
    %453 = vset.pattern.permute.xlu0 1
    %454 = vperm.xlu0 %453, %v165
    %v455 = vpop.permute.xlu0 %454
    %457 = vset.pattern.permute.xlu0 1
    %458 = vperm.xlu0 %457, %v166
    %v459 = vpop.permute.xlu0 %458
    %461 = vset.pattern.permute.xlu0 1
    %462 = vperm.xlu0 %461, %v167
    %v463 = vpop.permute.xlu0 %462
    %465 = vset.pattern.permute.xlu0 1
    %466 = vperm.xlu0 %465, %v168
    %v467 = vpop.permute.xlu0 %466
    %469 = vset.pattern.permute.xlu0 1
    %470 = vperm.xlu0 %469, %v169
    %v471 = vpop.permute.xlu0 %470
    %473 = vset.pattern.permute.xlu0 1
    %474 = vperm.xlu0 %473, %v170
    %v475 = vpop.permute.xlu0 %474
    %477 = vset.pattern.permute.xlu0 1
    %478 = vperm.xlu0 %477, %v171
    %v479 = vpop.permute.xlu0 %478
    %481 = vset.pattern.permute.xlu0 1
    %482 = vperm.xlu0 %481, %v172
    %v483 = vpop.permute.xlu0 %482
    %485 = vset.pattern.permute.xlu0 1
    %486 = vperm.xlu0 %485, %v173
    %v487 = vpop.permute.xlu0 %486
    %489 = vset.pattern.permute.xlu0 1
    %490 = vperm.xlu0 %489, %v174
    %v491 = vpop.permute.xlu0 %490
    %493 = vset.pattern.permute.xlu0 1
    %494 = vperm.xlu0 %493, %v175
    %v495 = vpop.permute.xlu0 %494
    %v497 = vperm.slane %v142, 1
    %v498 = vmul.f32 %v371, %v497
    %v499 = vmul.f32 %v375, %v497
    %v500 = vmul.f32 %v379, %v497
    %v501 = vmul.f32 %v383, %v497
    %v502 = vmul.f32 %v387, %v497
    %v503 = vmul.f32 %v391, %v497
    %v504 = vmul.f32 %v395, %v497
    %v505 = vmul.f32 %v399, %v497
    %v506 = vmul.f32 %v403, %v497
    %v507 = vmul.f32 %v407, %v497
    %v508 = vmul.f32 %v411, %v497
    %v509 = vmul.f32 %v415, %v497
    %v510 = vmul.f32 %v419, %v497
    %v511 = vmul.f32 %v423, %v497
    %v512 = vmul.f32 %v427, %v497
    %v513 = vmul.f32 %v431, %v497
    %v514 = vmul.f32 %v435, %v497
    %v515 = vmul.f32 %v439, %v497
    %v516 = vmul.f32 %v443, %v497
    %v517 = vmul.f32 %v447, %v497
    %v518 = vmul.f32 %v451, %v497
    %v519 = vmul.f32 %v455, %v497
    %v520 = vmul.f32 %v459, %v497
    %v521 = vmul.f32 %v463, %v497
    %v522 = vmul.f32 %v467, %v497
    %v523 = vmul.f32 %v471, %v497
    %v524 = vmul.f32 %v475, %v497
    %v525 = vmul.f32 %v479, %v497
    %v526 = vmul.f32 %v483, %v497
    %v527 = vmul.f32 %v487, %v497
    %v528 = vmul.f32 %v491, %v497
    %v529 = vmul.f32 %v495, %v497
    %v530 = vadd.f32 %v337, %v498
    %v531 = vadd.f32 %v338, %v499
    %v532 = vadd.f32 %v339, %v500
    %v533 = vadd.f32 %v340, %v501
    %v534 = vadd.f32 %v341, %v502
    %v535 = vadd.f32 %v342, %v503
    %v536 = vadd.f32 %v343, %v504
    %v537 = vadd.f32 %v344, %v505
    %v538 = vadd.f32 %v345, %v506
    %v539 = vadd.f32 %v346, %v507
    %v540 = vadd.f32 %v347, %v508
    %v541 = vadd.f32 %v348, %v509
    %v542 = vadd.f32 %v349, %v510
    %v543 = vadd.f32 %v350, %v511
    %v544 = vadd.f32 %v351, %v512
    %v545 = vadd.f32 %v352, %v513
    %v546 = vadd.f32 %v353, %v514
    %v547 = vadd.f32 %v354, %v515
    %v548 = vadd.f32 %v355, %v516
    %v549 = vadd.f32 %v356, %v517
    %v550 = vadd.f32 %v357, %v518
    %v551 = vadd.f32 %v358, %v519
    %v552 = vadd.f32 %v359, %v520
    %v553 = vadd.f32 %v360, %v521
    %v554 = vadd.f32 %v361, %v522
    %v555 = vadd.f32 %v362, %v523
    %v556 = vadd.f32 %v363, %v524
    %v557 = vadd.f32 %v364, %v525
    %v558 = vadd.f32 %v365, %v526
    %v559 = vadd.f32 %v366, %v527
    %v560 = vadd.f32 %v367, %v528
    %v561 = vadd.f32 %v368, %v529
    %562 = vset.pattern.permute.xlu0 2
    %563 = vperm.xlu0 %562, %v144
    %v564 = vpop.permute.xlu0 %563
    %566 = vset.pattern.permute.xlu0 2
    %567 = vperm.xlu0 %566, %v145
    %v568 = vpop.permute.xlu0 %567
    %570 = vset.pattern.permute.xlu0 2
    %571 = vperm.xlu0 %570, %v146
    %v572 = vpop.permute.xlu0 %571
    %574 = vset.pattern.permute.xlu0 2
    %575 = vperm.xlu0 %574, %v147
    %v576 = vpop.permute.xlu0 %575
    %578 = vset.pattern.permute.xlu0 2
    %579 = vperm.xlu0 %578, %v148
    %v580 = vpop.permute.xlu0 %579
    %582 = vset.pattern.permute.xlu0 2
    %583 = vperm.xlu0 %582, %v149
    %v584 = vpop.permute.xlu0 %583
    %586 = vset.pattern.permute.xlu0 2
    %587 = vperm.xlu0 %586, %v150
    %v588 = vpop.permute.xlu0 %587
    %590 = vset.pattern.permute.xlu0 2
    %591 = vperm.xlu0 %590, %v151
    %v592 = vpop.permute.xlu0 %591
    %594 = vset.pattern.permute.xlu0 2
    %595 = vperm.xlu0 %594, %v152
    %v596 = vpop.permute.xlu0 %595
    %598 = vset.pattern.permute.xlu0 2
    %599 = vperm.xlu0 %598, %v153
    %v600 = vpop.permute.xlu0 %599
    %602 = vset.pattern.permute.xlu0 2
    %603 = vperm.xlu0 %602, %v154
    %v604 = vpop.permute.xlu0 %603
    %606 = vset.pattern.permute.xlu0 2
    %607 = vperm.xlu0 %606, %v155
    %v608 = vpop.permute.xlu0 %607
    %610 = vset.pattern.permute.xlu0 2
    %611 = vperm.xlu0 %610, %v156
    %v612 = vpop.permute.xlu0 %611
    %614 = vset.pattern.permute.xlu0 2
    %615 = vperm.xlu0 %614, %v157
    %v616 = vpop.permute.xlu0 %615
    %618 = vset.pattern.permute.xlu0 2
    %619 = vperm.xlu0 %618, %v158
    %v620 = vpop.permute.xlu0 %619
    %622 = vset.pattern.permute.xlu0 2
    %623 = vperm.xlu0 %622, %v159
    %v624 = vpop.permute.xlu0 %623
    %626 = vset.pattern.permute.xlu0 2
    %627 = vperm.xlu0 %626, %v160
    %v628 = vpop.permute.xlu0 %627
    %630 = vset.pattern.permute.xlu0 2
    %631 = vperm.xlu0 %630, %v161
    %v632 = vpop.permute.xlu0 %631
    %634 = vset.pattern.permute.xlu0 2
    %635 = vperm.xlu0 %634, %v162
    %v636 = vpop.permute.xlu0 %635
    %638 = vset.pattern.permute.xlu0 2
    %639 = vperm.xlu0 %638, %v163
    %v640 = vpop.permute.xlu0 %639
    %642 = vset.pattern.permute.xlu0 2
    %643 = vperm.xlu0 %642, %v164
    %v644 = vpop.permute.xlu0 %643
    %646 = vset.pattern.permute.xlu0 2
    %647 = vperm.xlu0 %646, %v165
    %v648 = vpop.permute.xlu0 %647
    %650 = vset.pattern.permute.xlu0 2
    %651 = vperm.xlu0 %650, %v166
    %v652 = vpop.permute.xlu0 %651
    %654 = vset.pattern.permute.xlu0 2
    %655 = vperm.xlu0 %654, %v167
    %v656 = vpop.permute.xlu0 %655
    %658 = vset.pattern.permute.xlu0 2
    %659 = vperm.xlu0 %658, %v168
    %v660 = vpop.permute.xlu0 %659
    %662 = vset.pattern.permute.xlu0 2
    %663 = vperm.xlu0 %662, %v169
    %v664 = vpop.permute.xlu0 %663
    %666 = vset.pattern.permute.xlu0 2
    %667 = vperm.xlu0 %666, %v170
    %v668 = vpop.permute.xlu0 %667
    %670 = vset.pattern.permute.xlu0 2
    %671 = vperm.xlu0 %670, %v171
    %v672 = vpop.permute.xlu0 %671
    %674 = vset.pattern.permute.xlu0 2
    %675 = vperm.xlu0 %674, %v172
    %v676 = vpop.permute.xlu0 %675
    %678 = vset.pattern.permute.xlu0 2
    %679 = vperm.xlu0 %678, %v173
    %v680 = vpop.permute.xlu0 %679
    %682 = vset.pattern.permute.xlu0 2
    %683 = vperm.xlu0 %682, %v174
    %v684 = vpop.permute.xlu0 %683
    %686 = vset.pattern.permute.xlu0 2
    %687 = vperm.xlu0 %686, %v175
    %v688 = vpop.permute.xlu0 %687
    %v690 = vperm.slane %v142, 2
    %v691 = vmul.f32 %v564, %v690
    %v692 = vmul.f32 %v568, %v690
    %v693 = vmul.f32 %v572, %v690
    %v694 = vmul.f32 %v576, %v690
    %v695 = vmul.f32 %v580, %v690
    %v696 = vmul.f32 %v584, %v690
    %v697 = vmul.f32 %v588, %v690
    %v698 = vmul.f32 %v592, %v690
    %v699 = vmul.f32 %v596, %v690
    %v700 = vmul.f32 %v600, %v690
    %v701 = vmul.f32 %v604, %v690
    %v702 = vmul.f32 %v608, %v690
    %v703 = vmul.f32 %v612, %v690
    %v704 = vmul.f32 %v616, %v690
    %v705 = vmul.f32 %v620, %v690
    %v706 = vmul.f32 %v624, %v690
    %v707 = vmul.f32 %v628, %v690
    %v708 = vmul.f32 %v632, %v690
    %v709 = vmul.f32 %v636, %v690
    %v710 = vmul.f32 %v640, %v690
    %v711 = vmul.f32 %v644, %v690
    %v712 = vmul.f32 %v648, %v690
    %v713 = vmul.f32 %v652, %v690
    %v714 = vmul.f32 %v656, %v690
    %v715 = vmul.f32 %v660, %v690
    %v716 = vmul.f32 %v664, %v690
    %v717 = vmul.f32 %v668, %v690
    %v718 = vmul.f32 %v672, %v690
    %v719 = vmul.f32 %v676, %v690
    %v720 = vmul.f32 %v680, %v690
    %v721 = vmul.f32 %v684, %v690
    %v722 = vmul.f32 %v688, %v690
    %v723 = vadd.f32 %v530, %v691
    %v724 = vadd.f32 %v531, %v692
    %v725 = vadd.f32 %v532, %v693
    %v726 = vadd.f32 %v533, %v694
    %v727 = vadd.f32 %v534, %v695
    %v728 = vadd.f32 %v535, %v696
    %v729 = vadd.f32 %v536, %v697
    %v730 = vadd.f32 %v537, %v698
    %v731 = vadd.f32 %v538, %v699
    %v732 = vadd.f32 %v539, %v700
    %v733 = vadd.f32 %v540, %v701
    %v734 = vadd.f32 %v541, %v702
    %v735 = vadd.f32 %v542, %v703
    %v736 = vadd.f32 %v543, %v704
    %v737 = vadd.f32 %v544, %v705
    %v738 = vadd.f32 %v545, %v706
    %v739 = vadd.f32 %v546, %v707
    %v740 = vadd.f32 %v547, %v708
    %v741 = vadd.f32 %v548, %v709
    %v742 = vadd.f32 %v549, %v710
    %v743 = vadd.f32 %v550, %v711
    %v744 = vadd.f32 %v551, %v712
    %v745 = vadd.f32 %v552, %v713
    %v746 = vadd.f32 %v553, %v714
    %v747 = vadd.f32 %v554, %v715
    %v748 = vadd.f32 %v555, %v716
    %v749 = vadd.f32 %v556, %v717
    %v750 = vadd.f32 %v557, %v718
    %v751 = vadd.f32 %v558, %v719
    %v752 = vadd.f32 %v559, %v720
    %v753 = vadd.f32 %v560, %v721
    %v754 = vadd.f32 %v561, %v722
    %755 = vset.pattern.permute.xlu0 3
    %756 = vperm.xlu0 %755, %v144
    %v757 = vpop.permute.xlu0 %756
    %759 = vset.pattern.permute.xlu0 3
    %760 = vperm.xlu0 %759, %v145
    %v761 = vpop.permute.xlu0 %760
    %763 = vset.pattern.permute.xlu0 3
    %764 = vperm.xlu0 %763, %v146
    %v765 = vpop.permute.xlu0 %764
    %767 = vset.pattern.permute.xlu0 3
    %768 = vperm.xlu0 %767, %v147
    %v769 = vpop.permute.xlu0 %768
    %771 = vset.pattern.permute.xlu0 3
    %772 = vperm.xlu0 %771, %v148
    %v773 = vpop.permute.xlu0 %772
    %775 = vset.pattern.permute.xlu0 3
    %776 = vperm.xlu0 %775, %v149
    %v777 = vpop.permute.xlu0 %776
    %779 = vset.pattern.permute.xlu0 3
    %780 = vperm.xlu0 %779, %v150
    %v781 = vpop.permute.xlu0 %780
    %783 = vset.pattern.permute.xlu0 3
    %784 = vperm.xlu0 %783, %v151
    %v785 = vpop.permute.xlu0 %784
    %787 = vset.pattern.permute.xlu0 3
    %788 = vperm.xlu0 %787, %v152
    %v789 = vpop.permute.xlu0 %788
    %791 = vset.pattern.permute.xlu0 3
    %792 = vperm.xlu0 %791, %v153
    %v793 = vpop.permute.xlu0 %792
    %795 = vset.pattern.permute.xlu0 3
    %796 = vperm.xlu0 %795, %v154
    %v797 = vpop.permute.xlu0 %796
    %799 = vset.pattern.permute.xlu0 3
    %800 = vperm.xlu0 %799, %v155
    %v801 = vpop.permute.xlu0 %800
    %803 = vset.pattern.permute.xlu0 3
    %804 = vperm.xlu0 %803, %v156
    %v805 = vpop.permute.xlu0 %804
    %807 = vset.pattern.permute.xlu0 3
    %808 = vperm.xlu0 %807, %v157
    %v809 = vpop.permute.xlu0 %808
    %811 = vset.pattern.permute.xlu0 3
    %812 = vperm.xlu0 %811, %v158
    %v813 = vpop.permute.xlu0 %812
    %815 = vset.pattern.permute.xlu0 3
    %816 = vperm.xlu0 %815, %v159
    %v817 = vpop.permute.xlu0 %816
    %819 = vset.pattern.permute.xlu0 3
    %820 = vperm.xlu0 %819, %v160
    %v821 = vpop.permute.xlu0 %820
    %823 = vset.pattern.permute.xlu0 3
    %824 = vperm.xlu0 %823, %v161
    %v825 = vpop.permute.xlu0 %824
    %827 = vset.pattern.permute.xlu0 3
    %828 = vperm.xlu0 %827, %v162
    %v829 = vpop.permute.xlu0 %828
    %831 = vset.pattern.permute.xlu0 3
    %832 = vperm.xlu0 %831, %v163
    %v833 = vpop.permute.xlu0 %832
    %835 = vset.pattern.permute.xlu0 3
    %836 = vperm.xlu0 %835, %v164
    %v837 = vpop.permute.xlu0 %836
    %839 = vset.pattern.permute.xlu0 3
    %840 = vperm.xlu0 %839, %v165
    %v841 = vpop.permute.xlu0 %840
    %843 = vset.pattern.permute.xlu0 3
    %844 = vperm.xlu0 %843, %v166
    %v845 = vpop.permute.xlu0 %844
    %847 = vset.pattern.permute.xlu0 3
    %848 = vperm.xlu0 %847, %v167
    %v849 = vpop.permute.xlu0 %848
    %851 = vset.pattern.permute.xlu0 3
    %852 = vperm.xlu0 %851, %v168
    %v853 = vpop.permute.xlu0 %852
    %855 = vset.pattern.permute.xlu0 3
    %856 = vperm.xlu0 %855, %v169
    %v857 = vpop.permute.xlu0 %856
    %859 = vset.pattern.permute.xlu0 3
    %860 = vperm.xlu0 %859, %v170
    %v861 = vpop.permute.xlu0 %860
    %863 = vset.pattern.permute.xlu0 3
    %864 = vperm.xlu0 %863, %v171
    %v865 = vpop.permute.xlu0 %864
    %867 = vset.pattern.permute.xlu0 3
    %868 = vperm.xlu0 %867, %v172
    %v869 = vpop.permute.xlu0 %868
    %871 = vset.pattern.permute.xlu0 3
    %872 = vperm.xlu0 %871, %v173
    %v873 = vpop.permute.xlu0 %872
    %875 = vset.pattern.permute.xlu0 3
    %876 = vperm.xlu0 %875, %v174
    %v877 = vpop.permute.xlu0 %876
    %879 = vset.pattern.permute.xlu0 3
    %880 = vperm.xlu0 %879, %v175
    %v881 = vpop.permute.xlu0 %880
    %v883 = vperm.slane %v142, 3
    %v884 = vmul.f32 %v757, %v883
    %v885 = vmul.f32 %v761, %v883
    %v886 = vmul.f32 %v765, %v883
    %v887 = vmul.f32 %v769, %v883
    %v888 = vmul.f32 %v773, %v883
    %v889 = vmul.f32 %v777, %v883
    %v890 = vmul.f32 %v781, %v883
    %v891 = vmul.f32 %v785, %v883
    %v892 = vmul.f32 %v789, %v883
    %v893 = vmul.f32 %v793, %v883
    %v894 = vmul.f32 %v797, %v883
    %v895 = vmul.f32 %v801, %v883
    %v896 = vmul.f32 %v805, %v883
    %v897 = vmul.f32 %v809, %v883
    %v898 = vmul.f32 %v813, %v883
    %v899 = vmul.f32 %v817, %v883
    %v900 = vmul.f32 %v821, %v883
    %v901 = vmul.f32 %v825, %v883
    %v902 = vmul.f32 %v829, %v883
    %v903 = vmul.f32 %v833, %v883
    %v904 = vmul.f32 %v837, %v883
    %v905 = vmul.f32 %v841, %v883
    %v906 = vmul.f32 %v845, %v883
    %v907 = vmul.f32 %v849, %v883
    %v908 = vmul.f32 %v853, %v883
    %v909 = vmul.f32 %v857, %v883
    %v910 = vmul.f32 %v861, %v883
    %v911 = vmul.f32 %v865, %v883
    %v912 = vmul.f32 %v869, %v883
    %v913 = vmul.f32 %v873, %v883
    %v914 = vmul.f32 %v877, %v883
    %v915 = vmul.f32 %v881, %v883
    %v916 = vadd.f32 %v723, %v884
    %v917 = vadd.f32 %v724, %v885
    %v918 = vadd.f32 %v725, %v886
    %v919 = vadd.f32 %v726, %v887
    %v920 = vadd.f32 %v727, %v888
    %v921 = vadd.f32 %v728, %v889
    %v922 = vadd.f32 %v729, %v890
    %v923 = vadd.f32 %v730, %v891
    %v924 = vadd.f32 %v731, %v892
    %v925 = vadd.f32 %v732, %v893
    %v926 = vadd.f32 %v733, %v894
    %v927 = vadd.f32 %v734, %v895
    %v928 = vadd.f32 %v735, %v896
    %v929 = vadd.f32 %v736, %v897
    %v930 = vadd.f32 %v737, %v898
    %v931 = vadd.f32 %v738, %v899
    %v932 = vadd.f32 %v739, %v900
    %v933 = vadd.f32 %v740, %v901
    %v934 = vadd.f32 %v741, %v902
    %v935 = vadd.f32 %v742, %v903
    %v936 = vadd.f32 %v743, %v904
    %v937 = vadd.f32 %v744, %v905
    %v938 = vadd.f32 %v745, %v906
    %v939 = vadd.f32 %v746, %v907
    %v940 = vadd.f32 %v747, %v908
    %v941 = vadd.f32 %v748, %v909
    %v942 = vadd.f32 %v749, %v910
    %v943 = vadd.f32 %v750, %v911
    %v944 = vadd.f32 %v751, %v912
    %v945 = vadd.f32 %v752, %v913
    %v946 = vadd.f32 %v753, %v914
    %v947 = vadd.f32 %v754, %v915
    %v949 = vperm.slane %v143, 0
    %v951 = vadd.f32 %v916, %v949
    %v952 = vadd.f32 %v917, %v949
    %v953 = vadd.f32 %v918, %v949
    %v954 = vadd.f32 %v919, %v949
    %v955 = vadd.f32 %v920, %v949
    %v956 = vadd.f32 %v921, %v949
    %v957 = vadd.f32 %v922, %v949
    %v958 = vadd.f32 %v923, %v949
    %v959 = vadd.f32 %v924, %v949
    %v960 = vadd.f32 %v925, %v949
    %v961 = vadd.f32 %v926, %v949
    %v962 = vadd.f32 %v927, %v949
    %v963 = vadd.f32 %v928, %v949
    %v964 = vadd.f32 %v929, %v949
    %v965 = vadd.f32 %v930, %v949
    %v966 = vadd.f32 %v931, %v949
    %v967 = vadd.f32 %v932, %v949
    %v968 = vadd.f32 %v933, %v949
    %v969 = vadd.f32 %v934, %v949
    %v970 = vadd.f32 %v935, %v949
    %v971 = vadd.f32 %v936, %v949
    %v972 = vadd.f32 %v937, %v949
    %v973 = vadd.f32 %v938, %v949
    %v974 = vadd.f32 %v939, %v949
    %v975 = vadd.f32 %v940, %v949
    %v976 = vadd.f32 %v941, %v949
    %v977 = vadd.f32 %v942, %v949
    %v978 = vadd.f32 %v943, %v949
    %v979 = vadd.f32 %v944, %v949
    %v980 = vadd.f32 %v945, %v949
    %v981 = vadd.f32 %v946, %v949
    %v982 = vadd.f32 %v947, %v949
    %v983 = vmax.f32 %v951, 0.0
    %v984 = vmax.f32 %v952, 0.0
    %v985 = vmax.f32 %v953, 0.0
    %v986 = vmax.f32 %v954, 0.0
    %v987 = vmax.f32 %v955, 0.0
    %v988 = vmax.f32 %v956, 0.0
    %v989 = vmax.f32 %v957, 0.0
    %v990 = vmax.f32 %v958, 0.0
    %v991 = vmax.f32 %v959, 0.0
    %v992 = vmax.f32 %v960, 0.0
    %v993 = vmax.f32 %v961, 0.0
    %v994 = vmax.f32 %v962, 0.0
    %v995 = vmax.f32 %v963, 0.0
    %v996 = vmax.f32 %v964, 0.0
    %v997 = vmax.f32 %v965, 0.0
    %v998 = vmax.f32 %v966, 0.0
    %v999 = vmax.f32 %v967, 0.0
    %v1000 = vmax.f32 %v968, 0.0
    %v1001 = vmax.f32 %v969, 0.0
    %v1002 = vmax.f32 %v970, 0.0
    %v1003 = vmax.f32 %v971, 0.0
    %v1004 = vmax.f32 %v972, 0.0
    %v1005 = vmax.f32 %v973, 0.0
    %v1006 = vmax.f32 %v974, 0.0
    %v1007 = vmax.f32 %v975, 0.0
    %v1008 = vmax.f32 %v976, 0.0
    %v1009 = vmax.f32 %v977, 0.0
    %v1010 = vmax.f32 %v978, 0.0
    %v1011 = vmax.f32 %v979, 0.0
    %v1012 = vmax.f32 %v980, 0.0
    %v1013 = vmax.f32 %v981, 0.0
    %v1014 = vmax.f32 %v982, 0.0
    %v1015 = vld [vmem:[%s9] sm:$0xff]
    %v1016 = vld [vmem:[%s9 + $0x8] sm:$0xff]
    %v1017 = vld [vmem:[%s9 + $0x10] sm:$0xff]
    %v1018 = vld [vmem:[%s9 + $0x18] sm:$0xff]
    %v1019 = vld [vmem:[%s9 + $0x20] sm:$0xff]
    %v1020 = vld [vmem:[%s9 + $0x28] sm:$0xff]
    %v1021 = vld [vmem:[%s9 + $0x30] sm:$0xff]
    %v1022 = vld [vmem:[%s9 + $0x38] sm:$0xff]
    %v1023 = vld [vmem:[%s3 + $0x100] sm:$0xff]
    %v1024 = vld [vmem:[%s3 + $0x108] sm:$0xff]
    %v1025 = vld [vmem:[%s3 + $0x110] sm:$0xff]
    %v1026 = vld [vmem:[%s3 + $0x118] sm:$0xff]
    %v1027 = vld [vmem:[%s3 + $0x120] sm:$0xff]
    %v1028 = vld [vmem:[%s3 + $0x128] sm:$0xff]
    %v1029 = vld [vmem:[%s3 + $0x130] sm:$0xff]
    %v1030 = vld [vmem:[%s3 + $0x138] sm:$0xff]
    %v1031 = vld [vmem:[%s3 + $0x140] sm:$0xff]
    %v1032 = vld [vmem:[%s3 + $0x148] sm:$0xff]
    %v1033 = vld [vmem:[%s3 + $0x150] sm:$0xff]
    %v1034 = vld [vmem:[%s3 + $0x158] sm:$0xff]
    %v1035 = vld [vmem:[%s3 + $0x160] sm:$0xff]
    %v1036 = vld [vmem:[%s3 + $0x168] sm:$0xff]
    %v1037 = vld [vmem:[%s3 + $0x170] sm:$0xff]
    %v1038 = vld [vmem:[%s3 + $0x178] sm:$0xff]
    %v1039 = vld [vmem:[%s3 + $0x180] sm:$0xff]
    %v1040 = vld [vmem:[%s3 + $0x188] sm:$0xff]
    %v1041 = vld [vmem:[%s3 + $0x190] sm:$0xff]
    %v1042 = vld [vmem:[%s3 + $0x198] sm:$0xff]
    %v1043 = vld [vmem:[%s3 + $0x1a0] sm:$0xff]
    %v1044 = vld [vmem:[%s3 + $0x1a8] sm:$0xff]
    %v1045 = vld [vmem:[%s3 + $0x1b0] sm:$0xff]
    %v1046 = vld [vmem:[%s3 + $0x1b8] sm:$0xff]
    %v1047 = vld [vmem:[%s3 + $0x1c0] sm:$0xff]
    %v1048 = vld [vmem:[%s3 + $0x1c8] sm:$0xff]
    %v1049 = vld [vmem:[%s3 + $0x1d0] sm:$0xff]
    %v1050 = vld [vmem:[%s3 + $0x1d8] sm:$0xff]
    %v1051 = vld [vmem:[%s3 + $0x1e0] sm:$0xff]
    %v1052 = vld [vmem:[%s3 + $0x1e8] sm:$0xff]
    %v1053 = vld [vmem:[%s3 + $0x1f0] sm:$0xff]
    %v1054 = vld [vmem:[%s3 + $0x1f8] sm:$0xff]
    %1056 = vset.pattern.permute.xlu0 0
    %1057 = vperm.xlu0 %1056, %v1023
    %v1058 = vpop.permute.xlu0 %1057
    %1061 = vset.pattern.permute.xlu0 0
    %1062 = vperm.xlu0 %1061, %v1024
    %v1063 = vpop.permute.xlu0 %1062
    %1066 = vset.pattern.permute.xlu0 0
    %1067 = vperm.xlu0 %1066, %v1025
    %v1068 = vpop.permute.xlu0 %1067
    %1071 = vset.pattern.permute.xlu0 0
    %1072 = vperm.xlu0 %1071, %v1026
    %v1073 = vpop.permute.xlu0 %1072
    %1076 = vset.pattern.permute.xlu0 0
    %1077 = vperm.xlu0 %1076, %v1027
    %v1078 = vpop.permute.xlu0 %1077
    %1081 = vset.pattern.permute.xlu0 0
    %1082 = vperm.xlu0 %1081, %v1028
    %v1083 = vpop.permute.xlu0 %1082
    %1086 = vset.pattern.permute.xlu0 0
    %1087 = vperm.xlu0 %1086, %v1029
    %v1088 = vpop.permute.xlu0 %1087
    %1091 = vset.pattern.permute.xlu0 0
    %1092 = vperm.xlu0 %1091, %v1030
    %v1093 = vpop.permute.xlu0 %1092
    %1096 = vset.pattern.permute.xlu0 0
    %1097 = vperm.xlu0 %1096, %v1031
    %v1098 = vpop.permute.xlu0 %1097
    %1101 = vset.pattern.permute.xlu0 0
    %1102 = vperm.xlu0 %1101, %v1032
    %v1103 = vpop.permute.xlu0 %1102
    %1106 = vset.pattern.permute.xlu0 0
    %1107 = vperm.xlu0 %1106, %v1033
    %v1108 = vpop.permute.xlu0 %1107
    %1111 = vset.pattern.permute.xlu0 0
    %1112 = vperm.xlu0 %1111, %v1034
    %v1113 = vpop.permute.xlu0 %1112
    %1116 = vset.pattern.permute.xlu0 0
    %1117 = vperm.xlu0 %1116, %v1035
    %v1118 = vpop.permute.xlu0 %1117
    %1121 = vset.pattern.permute.xlu0 0
    %1122 = vperm.xlu0 %1121, %v1036
    %v1123 = vpop.permute.xlu0 %1122
    %1126 = vset.pattern.permute.xlu0 0
    %1127 = vperm.xlu0 %1126, %v1037
    %v1128 = vpop.permute.xlu0 %1127
    %1131 = vset.pattern.permute.xlu0 0
    %1132 = vperm.xlu0 %1131, %v1038
    %v1133 = vpop.permute.xlu0 %1132
    %1136 = vset.pattern.permute.xlu0 0
    %1137 = vperm.xlu0 %1136, %v1039
    %v1138 = vpop.permute.xlu0 %1137
    %1141 = vset.pattern.permute.xlu0 0
    %1142 = vperm.xlu0 %1141, %v1040
    %v1143 = vpop.permute.xlu0 %1142
    %1146 = vset.pattern.permute.xlu0 0
    %1147 = vperm.xlu0 %1146, %v1041
    %v1148 = vpop.permute.xlu0 %1147
    %1151 = vset.pattern.permute.xlu0 0
    %1152 = vperm.xlu0 %1151, %v1042
    %v1153 = vpop.permute.xlu0 %1152
    %1156 = vset.pattern.permute.xlu0 0
    %1157 = vperm.xlu0 %1156, %v1043
    %v1158 = vpop.permute.xlu0 %1157
    %1161 = vset.pattern.permute.xlu0 0
    %1162 = vperm.xlu0 %1161, %v1044
    %v1163 = vpop.permute.xlu0 %1162
    %1166 = vset.pattern.permute.xlu0 0
    %1167 = vperm.xlu0 %1166, %v1045
    %v1168 = vpop.permute.xlu0 %1167
    %1171 = vset.pattern.permute.xlu0 0
    %1172 = vperm.xlu0 %1171, %v1046
    %v1173 = vpop.permute.xlu0 %1172
    %1176 = vset.pattern.permute.xlu0 0
    %1177 = vperm.xlu0 %1176, %v1047
    %v1178 = vpop.permute.xlu0 %1177
    %1181 = vset.pattern.permute.xlu0 0
    %1182 = vperm.xlu0 %1181, %v1048
    %v1183 = vpop.permute.xlu0 %1182
    %1186 = vset.pattern.permute.xlu0 0
    %1187 = vperm.xlu0 %1186, %v1049
    %v1188 = vpop.permute.xlu0 %1187
    %1191 = vset.pattern.permute.xlu0 0
    %1192 = vperm.xlu0 %1191, %v1050
    %v1193 = vpop.permute.xlu0 %1192
    %1196 = vset.pattern.permute.xlu0 0
    %1197 = vperm.xlu0 %1196, %v1051
    %v1198 = vpop.permute.xlu0 %1197
    %1201 = vset.pattern.permute.xlu0 0
    %1202 = vperm.xlu0 %1201, %v1052
    %v1203 = vpop.permute.xlu0 %1202
    %1206 = vset.pattern.permute.xlu0 0
    %1207 = vperm.xlu0 %1206, %v1053
    %v1208 = vpop.permute.xlu0 %1207
    %1211 = vset.pattern.permute.xlu0 0
    %1212 = vperm.xlu0 %1211, %v1054
    %v1213 = vpop.permute.xlu0 %1212
    %v1215 = vmul.f32 %v1058, %v336
    %v1216 = vmul.f32 %v1063, %v336
    %v1217 = vmul.f32 %v1068, %v336
    %v1218 = vmul.f32 %v1073, %v336
    %v1219 = vmul.f32 %v1078, %v336
    %v1220 = vmul.f32 %v1083, %v336
    %v1221 = vmul.f32 %v1088, %v336
    %v1222 = vmul.f32 %v1093, %v336
    %v1223 = vmul.f32 %v1098, %v336
    %v1224 = vmul.f32 %v1103, %v336
    %v1225 = vmul.f32 %v1108, %v336
    %v1226 = vmul.f32 %v1113, %v336
    %v1227 = vmul.f32 %v1118, %v336
    %v1228 = vmul.f32 %v1123, %v336
    %v1229 = vmul.f32 %v1128, %v336
    %v1230 = vmul.f32 %v1133, %v336
    %v1231 = vmul.f32 %v1138, %v336
    %v1232 = vmul.f32 %v1143, %v336
    %v1233 = vmul.f32 %v1148, %v336
    %v1234 = vmul.f32 %v1153, %v336
    %v1235 = vmul.f32 %v1158, %v336
    %v1236 = vmul.f32 %v1163, %v336
    %v1237 = vmul.f32 %v1168, %v336
    %v1238 = vmul.f32 %v1173, %v336
    %v1239 = vmul.f32 %v1178, %v336
    %v1240 = vmul.f32 %v1183, %v336
    %v1241 = vmul.f32 %v1188, %v336
    %v1242 = vmul.f32 %v1193, %v336
    %v1243 = vmul.f32 %v1198, %v336
    %v1244 = vmul.f32 %v1203, %v336
    %v1245 = vmul.f32 %v1208, %v336
    %v1246 = vmul.f32 %v1213, %v336
    %1247 = vset.pattern.permute.xlu0 1
    %1248 = vperm.xlu0 %1247, %v1023
    %v1249 = vpop.permute.xlu0 %1248
    %1251 = vset.pattern.permute.xlu0 1
    %1252 = vperm.xlu0 %1251, %v1024
    %v1253 = vpop.permute.xlu0 %1252
    %1255 = vset.pattern.permute.xlu0 1
    %1256 = vperm.xlu0 %1255, %v1025
    %v1257 = vpop.permute.xlu0 %1256
    %1259 = vset.pattern.permute.xlu0 1
    %1260 = vperm.xlu0 %1259, %v1026
    %v1261 = vpop.permute.xlu0 %1260
    %1263 = vset.pattern.permute.xlu0 1
    %1264 = vperm.xlu0 %1263, %v1027
    %v1265 = vpop.permute.xlu0 %1264
    %1267 = vset.pattern.permute.xlu0 1
    %1268 = vperm.xlu0 %1267, %v1028
    %v1269 = vpop.permute.xlu0 %1268
    %1271 = vset.pattern.permute.xlu0 1
    %1272 = vperm.xlu0 %1271, %v1029
    %v1273 = vpop.permute.xlu0 %1272
    %1275 = vset.pattern.permute.xlu0 1
    %1276 = vperm.xlu0 %1275, %v1030
    %v1277 = vpop.permute.xlu0 %1276
    %1279 = vset.pattern.permute.xlu0 1
    %1280 = vperm.xlu0 %1279, %v1031
    %v1281 = vpop.permute.xlu0 %1280
    %1283 = vset.pattern.permute.xlu0 1
    %1284 = vperm.xlu0 %1283, %v1032
    %v1285 = vpop.permute.xlu0 %1284
    %1287 = vset.pattern.permute.xlu0 1
    %1288 = vperm.xlu0 %1287, %v1033
    %v1289 = vpop.permute.xlu0 %1288
    %1291 = vset.pattern.permute.xlu0 1
    %1292 = vperm.xlu0 %1291, %v1034
    %v1293 = vpop.permute.xlu0 %1292
    %1295 = vset.pattern.permute.xlu0 1
    %1296 = vperm.xlu0 %1295, %v1035
    %v1297 = vpop.permute.xlu0 %1296
    %1299 = vset.pattern.permute.xlu0 1
    %1300 = vperm.xlu0 %1299, %v1036
    %v1301 = vpop.permute.xlu0 %1300
    %1303 = vset.pattern.permute.xlu0 1
    %1304 = vperm.xlu0 %1303, %v1037
    %v1305 = vpop.permute.xlu0 %1304
    %1307 = vset.pattern.permute.xlu0 1
    %1308 = vperm.xlu0 %1307, %v1038
    %v1309 = vpop.permute.xlu0 %1308
    %1311 = vset.pattern.permute.xlu0 1
    %1312 = vperm.xlu0 %1311, %v1039
    %v1313 = vpop.permute.xlu0 %1312
    %1315 = vset.pattern.permute.xlu0 1
    %1316 = vperm.xlu0 %1315, %v1040
    %v1317 = vpop.permute.xlu0 %1316
    %1319 = vset.pattern.permute.xlu0 1
    %1320 = vperm.xlu0 %1319, %v1041
    %v1321 = vpop.permute.xlu0 %1320
    %1323 = vset.pattern.permute.xlu0 1
    %1324 = vperm.xlu0 %1323, %v1042
    %v1325 = vpop.permute.xlu0 %1324
    %1327 = vset.pattern.permute.xlu0 1
    %1328 = vperm.xlu0 %1327, %v1043
    %v1329 = vpop.permute.xlu0 %1328
    %1331 = vset.pattern.permute.xlu0 1
    %1332 = vperm.xlu0 %1331, %v1044
    %v1333 = vpop.permute.xlu0 %1332
    %1335 = vset.pattern.permute.xlu0 1
    %1336 = vperm.xlu0 %1335, %v1045
    %v1337 = vpop.permute.xlu0 %1336
    %1339 = vset.pattern.permute.xlu0 1
    %1340 = vperm.xlu0 %1339, %v1046
    %v1341 = vpop.permute.xlu0 %1340
    %1343 = vset.pattern.permute.xlu0 1
    %1344 = vperm.xlu0 %1343, %v1047
    %v1345 = vpop.permute.xlu0 %1344
    %1347 = vset.pattern.permute.xlu0 1
    %1348 = vperm.xlu0 %1347, %v1048
    %v1349 = vpop.permute.xlu0 %1348
    %1351 = vset.pattern.permute.xlu0 1
    %1352 = vperm.xlu0 %1351, %v1049
    %v1353 = vpop.permute.xlu0 %1352
    %1355 = vset.pattern.permute.xlu0 1
    %1356 = vperm.xlu0 %1355, %v1050
    %v1357 = vpop.permute.xlu0 %1356
    %1359 = vset.pattern.permute.xlu0 1
    %1360 = vperm.xlu0 %1359, %v1051
    %v1361 = vpop.permute.xlu0 %1360
    %1363 = vset.pattern.permute.xlu0 1
    %1364 = vperm.xlu0 %1363, %v1052
    %v1365 = vpop.permute.xlu0 %1364
    %1367 = vset.pattern.permute.xlu0 1
    %1368 = vperm.xlu0 %1367, %v1053
    %v1369 = vpop.permute.xlu0 %1368
    %1371 = vset.pattern.permute.xlu0 1
    %1372 = vperm.xlu0 %1371, %v1054
    %v1373 = vpop.permute.xlu0 %1372
    %v1375 = vmul.f32 %v1249, %v497
    %v1376 = vmul.f32 %v1253, %v497
    %v1377 = vmul.f32 %v1257, %v497
    %v1378 = vmul.f32 %v1261, %v497
    %v1379 = vmul.f32 %v1265, %v497
    %v1380 = vmul.f32 %v1269, %v497
    %v1381 = vmul.f32 %v1273, %v497
    %v1382 = vmul.f32 %v1277, %v497
    %v1383 = vmul.f32 %v1281, %v497
    %v1384 = vmul.f32 %v1285, %v497
    %v1385 = vmul.f32 %v1289, %v497
    %v1386 = vmul.f32 %v1293, %v497
    %v1387 = vmul.f32 %v1297, %v497
    %v1388 = vmul.f32 %v1301, %v497
    %v1389 = vmul.f32 %v1305, %v497
    %v1390 = vmul.f32 %v1309, %v497
    %v1391 = vmul.f32 %v1313, %v497
    %v1392 = vmul.f32 %v1317, %v497
    %v1393 = vmul.f32 %v1321, %v497
    %v1394 = vmul.f32 %v1325, %v497
    %v1395 = vmul.f32 %v1329, %v497
    %v1396 = vmul.f32 %v1333, %v497
    %v1397 = vmul.f32 %v1337, %v497
    %v1398 = vmul.f32 %v1341, %v497
    %v1399 = vmul.f32 %v1345, %v497
    %v1400 = vmul.f32 %v1349, %v497
    %v1401 = vmul.f32 %v1353, %v497
    %v1402 = vmul.f32 %v1357, %v497
    %v1403 = vmul.f32 %v1361, %v497
    %v1404 = vmul.f32 %v1365, %v497
    %v1405 = vmul.f32 %v1369, %v497
    %v1406 = vmul.f32 %v1373, %v497
    %v1407 = vadd.f32 %v1215, %v1375
    %v1408 = vadd.f32 %v1216, %v1376
    %v1409 = vadd.f32 %v1217, %v1377
    %v1410 = vadd.f32 %v1218, %v1378
    %v1411 = vadd.f32 %v1219, %v1379
    %v1412 = vadd.f32 %v1220, %v1380
    %v1413 = vadd.f32 %v1221, %v1381
    %v1414 = vadd.f32 %v1222, %v1382
    %v1415 = vadd.f32 %v1223, %v1383
    %v1416 = vadd.f32 %v1224, %v1384
    %v1417 = vadd.f32 %v1225, %v1385
    %v1418 = vadd.f32 %v1226, %v1386
    %v1419 = vadd.f32 %v1227, %v1387
    %v1420 = vadd.f32 %v1228, %v1388
    %v1421 = vadd.f32 %v1229, %v1389
    %v1422 = vadd.f32 %v1230, %v1390
    %v1423 = vadd.f32 %v1231, %v1391
    %v1424 = vadd.f32 %v1232, %v1392
    %v1425 = vadd.f32 %v1233, %v1393
    %v1426 = vadd.f32 %v1234, %v1394
    %v1427 = vadd.f32 %v1235, %v1395
    %v1428 = vadd.f32 %v1236, %v1396
    %v1429 = vadd.f32 %v1237, %v1397
    %v1430 = vadd.f32 %v1238, %v1398
    %v1431 = vadd.f32 %v1239, %v1399
    %v1432 = vadd.f32 %v1240, %v1400
    %v1433 = vadd.f32 %v1241, %v1401
    %v1434 = vadd.f32 %v1242, %v1402
    %v1435 = vadd.f32 %v1243, %v1403
    %v1436 = vadd.f32 %v1244, %v1404
    %v1437 = vadd.f32 %v1245, %v1405
    %v1438 = vadd.f32 %v1246, %v1406
    %1439 = vset.pattern.permute.xlu0 2
    %1440 = vperm.xlu0 %1439, %v1023
    %v1441 = vpop.permute.xlu0 %1440
    %1443 = vset.pattern.permute.xlu0 2
    %1444 = vperm.xlu0 %1443, %v1024
    %v1445 = vpop.permute.xlu0 %1444
    %1447 = vset.pattern.permute.xlu0 2
    %1448 = vperm.xlu0 %1447, %v1025
    %v1449 = vpop.permute.xlu0 %1448
    %1451 = vset.pattern.permute.xlu0 2
    %1452 = vperm.xlu0 %1451, %v1026
    %v1453 = vpop.permute.xlu0 %1452
    %1455 = vset.pattern.permute.xlu0 2
    %1456 = vperm.xlu0 %1455, %v1027
    %v1457 = vpop.permute.xlu0 %1456
    %1459 = vset.pattern.permute.xlu0 2
    %1460 = vperm.xlu0 %1459, %v1028
    %v1461 = vpop.permute.xlu0 %1460
    %1463 = vset.pattern.permute.xlu0 2
    %1464 = vperm.xlu0 %1463, %v1029
    %v1465 = vpop.permute.xlu0 %1464
    %1467 = vset.pattern.permute.xlu0 2
    %1468 = vperm.xlu0 %1467, %v1030
    %v1469 = vpop.permute.xlu0 %1468
    %1471 = vset.pattern.permute.xlu0 2
    %1472 = vperm.xlu0 %1471, %v1031
    %v1473 = vpop.permute.xlu0 %1472
    %1475 = vset.pattern.permute.xlu0 2
    %1476 = vperm.xlu0 %1475, %v1032
    %v1477 = vpop.permute.xlu0 %1476
    %1479 = vset.pattern.permute.xlu0 2
    %1480 = vperm.xlu0 %1479, %v1033
    %v1481 = vpop.permute.xlu0 %1480
    %1483 = vset.pattern.permute.xlu0 2
    %1484 = vperm.xlu0 %1483, %v1034
    %v1485 = vpop.permute.xlu0 %1484
    %1487 = vset.pattern.permute.xlu0 2
    %1488 = vperm.xlu0 %1487, %v1035
    %v1489 = vpop.permute.xlu0 %1488
    %1491 = vset.pattern.permute.xlu0 2
    %1492 = vperm.xlu0 %1491, %v1036
    %v1493 = vpop.permute.xlu0 %1492
    %1495 = vset.pattern.permute.xlu0 2
    %1496 = vperm.xlu0 %1495, %v1037
    %v1497 = vpop.permute.xlu0 %1496
    %1499 = vset.pattern.permute.xlu0 2
    %1500 = vperm.xlu0 %1499, %v1038
    %v1501 = vpop.permute.xlu0 %1500
    %1503 = vset.pattern.permute.xlu0 2
    %1504 = vperm.xlu0 %1503, %v1039
    %v1505 = vpop.permute.xlu0 %1504
    %1507 = vset.pattern.permute.xlu0 2
    %1508 = vperm.xlu0 %1507, %v1040
    %v1509 = vpop.permute.xlu0 %1508
    %1511 = vset.pattern.permute.xlu0 2
    %1512 = vperm.xlu0 %1511, %v1041
    %v1513 = vpop.permute.xlu0 %1512
    %1515 = vset.pattern.permute.xlu0 2
    %1516 = vperm.xlu0 %1515, %v1042
    %v1517 = vpop.permute.xlu0 %1516
    %1519 = vset.pattern.permute.xlu0 2
    %1520 = vperm.xlu0 %1519, %v1043
    %v1521 = vpop.permute.xlu0 %1520
    %1523 = vset.pattern.permute.xlu0 2
    %1524 = vperm.xlu0 %1523, %v1044
    %v1525 = vpop.permute.xlu0 %1524
    %1527 = vset.pattern.permute.xlu0 2
    %1528 = vperm.xlu0 %1527, %v1045
    %v1529 = vpop.permute.xlu0 %1528
    %1531 = vset.pattern.permute.xlu0 2
    %1532 = vperm.xlu0 %1531, %v1046
    %v1533 = vpop.permute.xlu0 %1532
    %1535 = vset.pattern.permute.xlu0 2
    %1536 = vperm.xlu0 %1535, %v1047
    %v1537 = vpop.permute.xlu0 %1536
    %1539 = vset.pattern.permute.xlu0 2
    %1540 = vperm.xlu0 %1539, %v1048
    %v1541 = vpop.permute.xlu0 %1540
    %1543 = vset.pattern.permute.xlu0 2
    %1544 = vperm.xlu0 %1543, %v1049
    %v1545 = vpop.permute.xlu0 %1544
    %1547 = vset.pattern.permute.xlu0 2
    %1548 = vperm.xlu0 %1547, %v1050
    %v1549 = vpop.permute.xlu0 %1548
    %1551 = vset.pattern.permute.xlu0 2
    %1552 = vperm.xlu0 %1551, %v1051
    %v1553 = vpop.permute.xlu0 %1552
    %1555 = vset.pattern.permute.xlu0 2
    %1556 = vperm.xlu0 %1555, %v1052
    %v1557 = vpop.permute.xlu0 %1556
    %1559 = vset.pattern.permute.xlu0 2
    %1560 = vperm.xlu0 %1559, %v1053
    %v1561 = vpop.permute.xlu0 %1560
    %1563 = vset.pattern.permute.xlu0 2
    %1564 = vperm.xlu0 %1563, %v1054
    %v1565 = vpop.permute.xlu0 %1564
    %v1567 = vmul.f32 %v1441, %v690
    %v1568 = vmul.f32 %v1445, %v690
    %v1569 = vmul.f32 %v1449, %v690
    %v1570 = vmul.f32 %v1453, %v690
    %v1571 = vmul.f32 %v1457, %v690
    %v1572 = vmul.f32 %v1461, %v690
    %v1573 = vmul.f32 %v1465, %v690
    %v1574 = vmul.f32 %v1469, %v690
    %v1575 = vmul.f32 %v1473, %v690
    %v1576 = vmul.f32 %v1477, %v690
    %v1577 = vmul.f32 %v1481, %v690
    %v1578 = vmul.f32 %v1485, %v690
    %v1579 = vmul.f32 %v1489, %v690
    %v1580 = vmul.f32 %v1493, %v690
    %v1581 = vmul.f32 %v1497, %v690
    %v1582 = vmul.f32 %v1501, %v690
    %v1583 = vmul.f32 %v1505, %v690
    %v1584 = vmul.f32 %v1509, %v690
    %v1585 = vmul.f32 %v1513, %v690
    %v1586 = vmul.f32 %v1517, %v690
    %v1587 = vmul.f32 %v1521, %v690
    %v1588 = vmul.f32 %v1525, %v690
    %v1589 = vmul.f32 %v1529, %v690
    %v1590 = vmul.f32 %v1533, %v690
    %v1591 = vmul.f32 %v1537, %v690
    %v1592 = vmul.f32 %v1541, %v690
    %v1593 = vmul.f32 %v1545, %v690
    %v1594 = vmul.f32 %v1549, %v690
    %v1595 = vmul.f32 %v1553, %v690
    %v1596 = vmul.f32 %v1557, %v690
    %v1597 = vmul.f32 %v1561, %v690
    %v1598 = vmul.f32 %v1565, %v690
    %v1599 = vadd.f32 %v1407, %v1567
    %v1600 = vadd.f32 %v1408, %v1568
    %v1601 = vadd.f32 %v1409, %v1569
    %v1602 = vadd.f32 %v1410, %v1570
    %v1603 = vadd.f32 %v1411, %v1571
    %v1604 = vadd.f32 %v1412, %v1572
    %v1605 = vadd.f32 %v1413, %v1573
    %v1606 = vadd.f32 %v1414, %v1574
    %v1607 = vadd.f32 %v1415, %v1575
    %v1608 = vadd.f32 %v1416, %v1576
    %v1609 = vadd.f32 %v1417, %v1577
    %v1610 = vadd.f32 %v1418, %v1578
    %v1611 = vadd.f32 %v1419, %v1579
    %v1612 = vadd.f32 %v1420, %v1580
    %v1613 = vadd.f32 %v1421, %v1581
    %v1614 = vadd.f32 %v1422, %v1582
    %v1615 = vadd.f32 %v1423, %v1583
    %v1616 = vadd.f32 %v1424, %v1584
    %v1617 = vadd.f32 %v1425, %v1585
    %v1618 = vadd.f32 %v1426, %v1586
    %v1619 = vadd.f32 %v1427, %v1587
    %v1620 = vadd.f32 %v1428, %v1588
    %v1621 = vadd.f32 %v1429, %v1589
    %v1622 = vadd.f32 %v1430, %v1590
    %v1623 = vadd.f32 %v1431, %v1591
    %v1624 = vadd.f32 %v1432, %v1592
    %v1625 = vadd.f32 %v1433, %v1593
    %v1626 = vadd.f32 %v1434, %v1594
    %v1627 = vadd.f32 %v1435, %v1595
    %v1628 = vadd.f32 %v1436, %v1596
    %v1629 = vadd.f32 %v1437, %v1597
    %v1630 = vadd.f32 %v1438, %v1598
    %1631 = vset.pattern.permute.xlu0 3
    %1632 = vperm.xlu0 %1631, %v1023
    %v1633 = vpop.permute.xlu0 %1632
    %1635 = vset.pattern.permute.xlu0 3
    %1636 = vperm.xlu0 %1635, %v1024
    %v1637 = vpop.permute.xlu0 %1636
    %1639 = vset.pattern.permute.xlu0 3
    %1640 = vperm.xlu0 %1639, %v1025
    %v1641 = vpop.permute.xlu0 %1640
    %1643 = vset.pattern.permute.xlu0 3
    %1644 = vperm.xlu0 %1643, %v1026
    %v1645 = vpop.permute.xlu0 %1644
    %1647 = vset.pattern.permute.xlu0 3
    %1648 = vperm.xlu0 %1647, %v1027
    %v1649 = vpop.permute.xlu0 %1648
    %1651 = vset.pattern.permute.xlu0 3
    %1652 = vperm.xlu0 %1651, %v1028
    %v1653 = vpop.permute.xlu0 %1652
    %1655 = vset.pattern.permute.xlu0 3
    %1656 = vperm.xlu0 %1655, %v1029
    %v1657 = vpop.permute.xlu0 %1656
    %1659 = vset.pattern.permute.xlu0 3
    %1660 = vperm.xlu0 %1659, %v1030
    %v1661 = vpop.permute.xlu0 %1660
    %1663 = vset.pattern.permute.xlu0 3
    %1664 = vperm.xlu0 %1663, %v1031
    %v1665 = vpop.permute.xlu0 %1664
    %1667 = vset.pattern.permute.xlu0 3
    %1668 = vperm.xlu0 %1667, %v1032
    %v1669 = vpop.permute.xlu0 %1668
    %1671 = vset.pattern.permute.xlu0 3
    %1672 = vperm.xlu0 %1671, %v1033
    %v1673 = vpop.permute.xlu0 %1672
    %1675 = vset.pattern.permute.xlu0 3
    %1676 = vperm.xlu0 %1675, %v1034
    %v1677 = vpop.permute.xlu0 %1676
    %1679 = vset.pattern.permute.xlu0 3
    %1680 = vperm.xlu0 %1679, %v1035
    %v1681 = vpop.permute.xlu0 %1680
    %1683 = vset.pattern.permute.xlu0 3
    %1684 = vperm.xlu0 %1683, %v1036
    %v1685 = vpop.permute.xlu0 %1684
    %1687 = vset.pattern.permute.xlu0 3
    %1688 = vperm.xlu0 %1687, %v1037
    %v1689 = vpop.permute.xlu0 %1688
    %1691 = vset.pattern.permute.xlu0 3
    %1692 = vperm.xlu0 %1691, %v1038
    %v1693 = vpop.permute.xlu0 %1692
    %1695 = vset.pattern.permute.xlu0 3
    %1696 = vperm.xlu0 %1695, %v1039
    %v1697 = vpop.permute.xlu0 %1696
    %1699 = vset.pattern.permute.xlu0 3
    %1700 = vperm.xlu0 %1699, %v1040
    %v1701 = vpop.permute.xlu0 %1700
    %1703 = vset.pattern.permute.xlu0 3
    %1704 = vperm.xlu0 %1703, %v1041
    %v1705 = vpop.permute.xlu0 %1704
    %1707 = vset.pattern.permute.xlu0 3
    %1708 = vperm.xlu0 %1707, %v1042
    %v1709 = vpop.permute.xlu0 %1708
    %1711 = vset.pattern.permute.xlu0 3
    %1712 = vperm.xlu0 %1711, %v1043
    %v1713 = vpop.permute.xlu0 %1712
    %1715 = vset.pattern.permute.xlu0 3
    %1716 = vperm.xlu0 %1715, %v1044
    %v1717 = vpop.permute.xlu0 %1716
    %1719 = vset.pattern.permute.xlu0 3
    %1720 = vperm.xlu0 %1719, %v1045
    %v1721 = vpop.permute.xlu0 %1720
    %1723 = vset.pattern.permute.xlu0 3
    %1724 = vperm.xlu0 %1723, %v1046
    %v1725 = vpop.permute.xlu0 %1724
    %1727 = vset.pattern.permute.xlu0 3
    %1728 = vperm.xlu0 %1727, %v1047
    %v1729 = vpop.permute.xlu0 %1728
    %1731 = vset.pattern.permute.xlu0 3
    %1732 = vperm.xlu0 %1731, %v1048
    %v1733 = vpop.permute.xlu0 %1732
    %1735 = vset.pattern.permute.xlu0 3
    %1736 = vperm.xlu0 %1735, %v1049
    %v1737 = vpop.permute.xlu0 %1736
    %1739 = vset.pattern.permute.xlu0 3
    %1740 = vperm.xlu0 %1739, %v1050
    %v1741 = vpop.permute.xlu0 %1740
    %1743 = vset.pattern.permute.xlu0 3
    %1744 = vperm.xlu0 %1743, %v1051
    %v1745 = vpop.permute.xlu0 %1744
    %1747 = vset.pattern.permute.xlu0 3
    %1748 = vperm.xlu0 %1747, %v1052
    %v1749 = vpop.permute.xlu0 %1748
    %1751 = vset.pattern.permute.xlu0 3
    %1752 = vperm.xlu0 %1751, %v1053
    %v1753 = vpop.permute.xlu0 %1752
    %1755 = vset.pattern.permute.xlu0 3
    %1756 = vperm.xlu0 %1755, %v1054
    %v1757 = vpop.permute.xlu0 %1756
    %v1759 = vmul.f32 %v1633, %v883
    %v1760 = vmul.f32 %v1637, %v883
    %v1761 = vmul.f32 %v1641, %v883
    %v1762 = vmul.f32 %v1645, %v883
    %v1763 = vmul.f32 %v1649, %v883
    %v1764 = vmul.f32 %v1653, %v883
    %v1765 = vmul.f32 %v1657, %v883
    %v1766 = vmul.f32 %v1661, %v883
    %v1767 = vmul.f32 %v1665, %v883
    %v1768 = vmul.f32 %v1669, %v883
    %v1769 = vmul.f32 %v1673, %v883
    %v1770 = vmul.f32 %v1677, %v883
    %v1771 = vmul.f32 %v1681, %v883
    %v1772 = vmul.f32 %v1685, %v883
    %v1773 = vmul.f32 %v1689, %v883
    %v1774 = vmul.f32 %v1693, %v883
    %v1775 = vmul.f32 %v1697, %v883
    %v1776 = vmul.f32 %v1701, %v883
    %v1777 = vmul.f32 %v1705, %v883
    %v1778 = vmul.f32 %v1709, %v883
    %v1779 = vmul.f32 %v1713, %v883
    %v1780 = vmul.f32 %v1717, %v883
    %v1781 = vmul.f32 %v1721, %v883
    %v1782 = vmul.f32 %v1725, %v883
    %v1783 = vmul.f32 %v1729, %v883
    %v1784 = vmul.f32 %v1733, %v883
    %v1785 = vmul.f32 %v1737, %v883
    %v1786 = vmul.f32 %v1741, %v883
    %v1787 = vmul.f32 %v1745, %v883
    %v1788 = vmul.f32 %v1749, %v883
    %v1789 = vmul.f32 %v1753, %v883
    %v1790 = vmul.f32 %v1757, %v883
    %v1791 = vadd.f32 %v1599, %v1759
    %v1792 = vadd.f32 %v1600, %v1760
    %v1793 = vadd.f32 %v1601, %v1761
    %v1794 = vadd.f32 %v1602, %v1762
    %v1795 = vadd.f32 %v1603, %v1763
    %v1796 = vadd.f32 %v1604, %v1764
    %v1797 = vadd.f32 %v1605, %v1765
    %v1798 = vadd.f32 %v1606, %v1766
    %v1799 = vadd.f32 %v1607, %v1767
    %v1800 = vadd.f32 %v1608, %v1768
    %v1801 = vadd.f32 %v1609, %v1769
    %v1802 = vadd.f32 %v1610, %v1770
    %v1803 = vadd.f32 %v1611, %v1771
    %v1804 = vadd.f32 %v1612, %v1772
    %v1805 = vadd.f32 %v1613, %v1773
    %v1806 = vadd.f32 %v1614, %v1774
    %v1807 = vadd.f32 %v1615, %v1775
    %v1808 = vadd.f32 %v1616, %v1776
    %v1809 = vadd.f32 %v1617, %v1777
    %v1810 = vadd.f32 %v1618, %v1778
    %v1811 = vadd.f32 %v1619, %v1779
    %v1812 = vadd.f32 %v1620, %v1780
    %v1813 = vadd.f32 %v1621, %v1781
    %v1814 = vadd.f32 %v1622, %v1782
    %v1815 = vadd.f32 %v1623, %v1783
    %v1816 = vadd.f32 %v1624, %v1784
    %v1817 = vadd.f32 %v1625, %v1785
    %v1818 = vadd.f32 %v1626, %v1786
    %v1819 = vadd.f32 %v1627, %v1787
    %v1820 = vadd.f32 %v1628, %v1788
    %v1821 = vadd.f32 %v1629, %v1789
    %v1822 = vadd.f32 %v1630, %v1790
    %v1823 = vadd.f32 %v1791, %v949
    %v1824 = vadd.f32 %v1792, %v949
    %v1825 = vadd.f32 %v1793, %v949
    %v1826 = vadd.f32 %v1794, %v949
    %v1827 = vadd.f32 %v1795, %v949
    %v1828 = vadd.f32 %v1796, %v949
    %v1829 = vadd.f32 %v1797, %v949
    %v1830 = vadd.f32 %v1798, %v949
    %v1831 = vadd.f32 %v1799, %v949
    %v1832 = vadd.f32 %v1800, %v949
    %v1833 = vadd.f32 %v1801, %v949
    %v1834 = vadd.f32 %v1802, %v949
    %v1835 = vadd.f32 %v1803, %v949
    %v1836 = vadd.f32 %v1804, %v949
    %v1837 = vadd.f32 %v1805, %v949
    %v1838 = vadd.f32 %v1806, %v949
    %v1839 = vadd.f32 %v1807, %v949
    %v1840 = vadd.f32 %v1808, %v949
    %v1841 = vadd.f32 %v1809, %v949
    %v1842 = vadd.f32 %v1810, %v949
    %v1843 = vadd.f32 %v1811, %v949
    %v1844 = vadd.f32 %v1812, %v949
    %v1845 = vadd.f32 %v1813, %v949
    %v1846 = vadd.f32 %v1814, %v949
    %v1847 = vadd.f32 %v1815, %v949
    %v1848 = vadd.f32 %v1816, %v949
    %v1849 = vadd.f32 %v1817, %v949
    %v1850 = vadd.f32 %v1818, %v949
    %v1851 = vadd.f32 %v1819, %v949
    %v1852 = vadd.f32 %v1820, %v949
    %v1853 = vadd.f32 %v1821, %v949
    %v1854 = vadd.f32 %v1822, %v949
    %v1855 = vmax.f32 %v1823, 0.0
    %v1856 = vmax.f32 %v1824, 0.0
    %v1857 = vmax.f32 %v1825, 0.0
    %v1858 = vmax.f32 %v1826, 0.0
    %v1859 = vmax.f32 %v1827, 0.0
    %v1860 = vmax.f32 %v1828, 0.0
    %v1861 = vmax.f32 %v1829, 0.0
    %v1862 = vmax.f32 %v1830, 0.0
    %v1863 = vmax.f32 %v1831, 0.0
    %v1864 = vmax.f32 %v1832, 0.0
    %v1865 = vmax.f32 %v1833, 0.0
    %v1866 = vmax.f32 %v1834, 0.0
    %v1867 = vmax.f32 %v1835, 0.0
    %v1868 = vmax.f32 %v1836, 0.0
    %v1869 = vmax.f32 %v1837, 0.0
    %v1870 = vmax.f32 %v1838, 0.0
    %v1871 = vmax.f32 %v1839, 0.0
    %v1872 = vmax.f32 %v1840, 0.0
    %v1873 = vmax.f32 %v1841, 0.0
    %v1874 = vmax.f32 %v1842, 0.0
    %v1875 = vmax.f32 %v1843, 0.0
    %v1876 = vmax.f32 %v1844, 0.0
    %v1877 = vmax.f32 %v1845, 0.0
    %v1878 = vmax.f32 %v1846, 0.0
    %v1879 = vmax.f32 %v1847, 0.0
    %v1880 = vmax.f32 %v1848, 0.0
    %v1881 = vmax.f32 %v1849, 0.0
    %v1882 = vmax.f32 %v1850, 0.0
    %v1883 = vmax.f32 %v1851, 0.0
    %v1884 = vmax.f32 %v1852, 0.0
    %v1885 = vmax.f32 %v1853, 0.0
    %v1886 = vmax.f32 %v1854, 0.0
    %v1887 = vld [vmem:[%s9 + $0x40] sm:$0xff]
    %v1888 = vld [vmem:[%s9 + $0x48] sm:$0xff]
    %v1889 = vld [vmem:[%s9 + $0x50] sm:$0xff]
    %v1890 = vld [vmem:[%s9 + $0x58] sm:$0xff]
    %v1891 = vld [vmem:[%s9 + $0x60] sm:$0xff]
    %v1892 = vld [vmem:[%s9 + $0x68] sm:$0xff]
    %v1893 = vld [vmem:[%s9 + $0x70] sm:$0xff]
    %v1894 = vld [vmem:[%s9 + $0x78] sm:$0xff]
    %vm1895 = vcmask 523264
    %v1897 = vsel %vm1895, %v1855, 0
    %v1900 = vsel %vm1895, %v1856, 0
    %v1903 = vsel %vm1895, %v1857, 0
    %v1906 = vsel %vm1895, %v1858, 0
    %v1909 = vsel %vm1895, %v1859, 0
    %v1912 = vsel %vm1895, %v1860, 0
    %v1915 = vsel %vm1895, %v1861, 0
    %v1918 = vsel %vm1895, %v1862, 0
    %v1921 = vsel %vm1895, %v1863, 0
    %v1924 = vsel %vm1895, %v1864, 0
    %v1927 = vsel %vm1895, %v1865, 0
    %v1930 = vsel %vm1895, %v1866, 0
    %v1933 = vsel %vm1895, %v1867, 0
    %v1936 = vsel %vm1895, %v1868, 0
    %v1939 = vsel %vm1895, %v1869, 0
    %v1942 = vsel %vm1895, %v1870, 0
    %v1945 = vsel %vm1895, %v1871, 0
    %v1948 = vsel %vm1895, %v1872, 0
    %v1951 = vsel %vm1895, %v1873, 0
    %v1954 = vsel %vm1895, %v1874, 0
    %v1957 = vsel %vm1895, %v1875, 0
    %v1960 = vsel %vm1895, %v1876, 0
    %v1963 = vsel %vm1895, %v1877, 0
    %v1966 = vsel %vm1895, %v1878, 0
    %v1969 = vsel %vm1895, %v1879, 0
    %v1972 = vsel %vm1895, %v1880, 0
    %v1975 = vsel %vm1895, %v1881, 0
    %v1978 = vsel %vm1895, %v1882, 0
    %v1981 = vsel %vm1895, %v1883, 0
    %v1984 = vsel %vm1895, %v1884, 0
    %v1987 = vsel %vm1895, %v1885, 0
    %v1990 = vsel %vm1895, %v1886, 0
    %1992 = vmatpush.msra.mxu0 0.0
    %1993 = vmatpush.msra.mxu0 0.0
    %1994 = vmatpush.msra.mxu0 0.0
    %1995 = vmatpush.msra.mxu0 0.0
    %1996 = vmatpush.msra.mxu0 0.0
    %1997 = vmatpush.msra.mxu0 0.0
    %1998 = vmatpush.msra.mxu0 0.0
    %1999 = vmatpush.msra.mxu0 0.0
    %2000 = vmatpush.msra.mxu0 %v1894
    %2001 = vmatpush.msra.mxu0 %v1893
    %2002 = vmatpush.msra.mxu0 %v1892
    %2003 = vmatpush.msra.mxu0 %v1891
    %2004 = vmatpush.msra.mxu0 %v1890
    %2005 = vmatpush.msra.mxu0 %v1889
    %2006 = vmatpush.msra.mxu0 %v1888
    %2007 = vmatpush.msra.mxu0 %v1887
    %2008 = vmatmul.f32.gmra.mxu0 %v1897
    %v2009 = vpop.f32.mrf.mxu0
    %v2010 = vadd.f32 0.0, %v2009
    %2011 = vmatmul.f32.gmra.mxu0 %v1900
    %v2012 = vpop.f32.mrf.mxu0
    %v2013 = vadd.f32 0.0, %v2012
    %2014 = vmatmul.f32.gmra.mxu0 %v1903
    %v2015 = vpop.f32.mrf.mxu0
    %v2016 = vadd.f32 0.0, %v2015
    %2017 = vmatmul.f32.gmra.mxu0 %v1906
    %v2018 = vpop.f32.mrf.mxu0
    %v2019 = vadd.f32 0.0, %v2018
    %2020 = vmatmul.f32.gmra.mxu0 %v1909
    %v2021 = vpop.f32.mrf.mxu0
    %v2022 = vadd.f32 0.0, %v2021
    %2023 = vmatmul.f32.gmra.mxu0 %v1912
    %v2024 = vpop.f32.mrf.mxu0
    %v2025 = vadd.f32 0.0, %v2024
    %2026 = vmatmul.f32.gmra.mxu0 %v1915
    %v2027 = vpop.f32.mrf.mxu0
    %v2028 = vadd.f32 0.0, %v2027
    %2029 = vmatmul.f32.gmra.mxu0 %v1918
    %v2030 = vpop.f32.mrf.mxu0
    %v2031 = vadd.f32 0.0, %v2030
    %2032 = vmatmul.f32.gmra.mxu0 %v1921
    %v2033 = vpop.f32.mrf.mxu0
    %v2034 = vadd.f32 0.0, %v2033
    %2035 = vmatmul.f32.gmra.mxu0 %v1924
    %v2036 = vpop.f32.mrf.mxu0
    %v2037 = vadd.f32 0.0, %v2036
    %2038 = vmatmul.f32.gmra.mxu0 %v1927
    %v2039 = vpop.f32.mrf.mxu0
    %v2040 = vadd.f32 0.0, %v2039
    %2041 = vmatmul.f32.gmra.mxu0 %v1930
    %v2042 = vpop.f32.mrf.mxu0
    %v2043 = vadd.f32 0.0, %v2042
    %2044 = vmatmul.f32.gmra.mxu0 %v1933
    %v2045 = vpop.f32.mrf.mxu0
    %v2046 = vadd.f32 0.0, %v2045
    %2047 = vmatmul.f32.gmra.mxu0 %v1936
    %v2048 = vpop.f32.mrf.mxu0
    %v2049 = vadd.f32 0.0, %v2048
    %2050 = vmatmul.f32.gmra.mxu0 %v1939
    %v2051 = vpop.f32.mrf.mxu0
    %v2052 = vadd.f32 0.0, %v2051
    %2053 = vmatmul.f32.gmra.mxu0 %v1942
    %v2054 = vpop.f32.mrf.mxu0
    %v2055 = vadd.f32 0.0, %v2054
    %2056 = vmatmul.f32.gmra.mxu0 %v1945
    %v2057 = vpop.f32.mrf.mxu0
    %v2058 = vadd.f32 0.0, %v2057
    %2059 = vmatmul.f32.gmra.mxu0 %v1948
    %v2060 = vpop.f32.mrf.mxu0
    %v2061 = vadd.f32 0.0, %v2060
    %2062 = vmatmul.f32.gmra.mxu0 %v1951
    %v2063 = vpop.f32.mrf.mxu0
    %v2064 = vadd.f32 0.0, %v2063
    %2065 = vmatmul.f32.gmra.mxu0 %v1954
    %v2066 = vpop.f32.mrf.mxu0
    %v2067 = vadd.f32 0.0, %v2066
    %2068 = vmatmul.f32.gmra.mxu0 %v1957
    %v2069 = vpop.f32.mrf.mxu0
    %v2070 = vadd.f32 0.0, %v2069
    %2071 = vmatmul.f32.gmra.mxu0 %v1960
    %v2072 = vpop.f32.mrf.mxu0
    %v2073 = vadd.f32 0.0, %v2072
    %2074 = vmatmul.f32.gmra.mxu0 %v1963
    %v2075 = vpop.f32.mrf.mxu0
    %v2076 = vadd.f32 0.0, %v2075
    %2077 = vmatmul.f32.gmra.mxu0 %v1966
    %v2078 = vpop.f32.mrf.mxu0
    %v2079 = vadd.f32 0.0, %v2078
    %2080 = vmatmul.f32.gmra.mxu0 %v1969
    %v2081 = vpop.f32.mrf.mxu0
    %v2082 = vadd.f32 0.0, %v2081
    %2083 = vmatmul.f32.gmra.mxu0 %v1972
    %v2084 = vpop.f32.mrf.mxu0
    %v2085 = vadd.f32 0.0, %v2084
    %2086 = vmatmul.f32.gmra.mxu0 %v1975
    %v2087 = vpop.f32.mrf.mxu0
    %v2088 = vadd.f32 0.0, %v2087
    %2089 = vmatmul.f32.gmra.mxu0 %v1978
    %v2090 = vpop.f32.mrf.mxu0
    %v2091 = vadd.f32 0.0, %v2090
    %2092 = vmatmul.f32.gmra.mxu0 %v1981
    %v2093 = vpop.f32.mrf.mxu0
    %v2094 = vadd.f32 0.0, %v2093
    %2095 = vmatmul.f32.gmra.mxu0 %v1984
    %v2096 = vpop.f32.mrf.mxu0
    %v2097 = vadd.f32 0.0, %v2096
    %2098 = vmatmul.f32.gmra.mxu0 %v1987
    %v2099 = vpop.f32.mrf.mxu0
    %v2100 = vadd.f32 0.0, %v2099
    %2101 = vmatmul.f32.gmra.mxu0 %v1990
    %v2102 = vpop.f32.mrf.mxu0
    %v2103 = vadd.f32 0.0, %v2102
    %2104 = vdwg.mxu0
    %v2106 = vsel %vm1895, %v983, 0
    %v2109 = vsel %vm1895, %v984, 0
    %v2112 = vsel %vm1895, %v985, 0
    %v2115 = vsel %vm1895, %v986, 0
    %v2118 = vsel %vm1895, %v987, 0
    %v2121 = vsel %vm1895, %v988, 0
    %v2124 = vsel %vm1895, %v989, 0
    %v2127 = vsel %vm1895, %v990, 0
    %v2130 = vsel %vm1895, %v991, 0
    %v2133 = vsel %vm1895, %v992, 0
    %v2136 = vsel %vm1895, %v993, 0
    %v2139 = vsel %vm1895, %v994, 0
    %v2142 = vsel %vm1895, %v995, 0
    %v2145 = vsel %vm1895, %v996, 0
    %v2148 = vsel %vm1895, %v997, 0
    %v2151 = vsel %vm1895, %v998, 0
    %v2154 = vsel %vm1895, %v999, 0
    %v2157 = vsel %vm1895, %v1000, 0
    %v2160 = vsel %vm1895, %v1001, 0
    %v2163 = vsel %vm1895, %v1002, 0
    %v2166 = vsel %vm1895, %v1003, 0
    %v2169 = vsel %vm1895, %v1004, 0
    %v2172 = vsel %vm1895, %v1005, 0
    %v2175 = vsel %vm1895, %v1006, 0
    %v2178 = vsel %vm1895, %v1007, 0
    %v2181 = vsel %vm1895, %v1008, 0
    %v2184 = vsel %vm1895, %v1009, 0
    %v2187 = vsel %vm1895, %v1010, 0
    %v2190 = vsel %vm1895, %v1011, 0
    %v2193 = vsel %vm1895, %v1012, 0
    %v2196 = vsel %vm1895, %v1013, 0
    %v2199 = vsel %vm1895, %v1014, 0
    %2201 = vmatpush.msra.mxu0 0.0
    %2202 = vmatpush.msra.mxu0 0.0
    %2203 = vmatpush.msra.mxu0 0.0
    %2204 = vmatpush.msra.mxu0 0.0
    %2205 = vmatpush.msra.mxu0 0.0
    %2206 = vmatpush.msra.mxu0 0.0
    %2207 = vmatpush.msra.mxu0 0.0
    %2208 = vmatpush.msra.mxu0 0.0
    %2209 = vmatpush.msra.mxu0 %v1022
    %2210 = vmatpush.msra.mxu0 %v1021
    %2211 = vmatpush.msra.mxu0 %v1020
    %2212 = vmatpush.msra.mxu0 %v1019
    %2213 = vmatpush.msra.mxu0 %v1018
    %2214 = vmatpush.msra.mxu0 %v1017
    %2215 = vmatpush.msra.mxu0 %v1016
    %2216 = vmatpush.msra.mxu0 %v1015
    %2217 = vmatmul.f32.gmra.mxu0 %v2106
    %v2218 = vpop.f32.mrf.mxu0
    %v2219 = vadd.f32 %v2010, %v2218
    %2220 = vmatmul.f32.gmra.mxu0 %v2109
    %v2221 = vpop.f32.mrf.mxu0
    %v2222 = vadd.f32 %v2013, %v2221
    %2223 = vmatmul.f32.gmra.mxu0 %v2112
    %v2224 = vpop.f32.mrf.mxu0
    %v2225 = vadd.f32 %v2016, %v2224
    %2226 = vmatmul.f32.gmra.mxu0 %v2115
    %v2227 = vpop.f32.mrf.mxu0
    %v2228 = vadd.f32 %v2019, %v2227
    %2229 = vmatmul.f32.gmra.mxu0 %v2118
    %v2230 = vpop.f32.mrf.mxu0
    %v2231 = vadd.f32 %v2022, %v2230
    %2232 = vmatmul.f32.gmra.mxu0 %v2121
    %v2233 = vpop.f32.mrf.mxu0
    %v2234 = vadd.f32 %v2025, %v2233
    %2235 = vmatmul.f32.gmra.mxu0 %v2124
    %v2236 = vpop.f32.mrf.mxu0
    %v2237 = vadd.f32 %v2028, %v2236
    %2238 = vmatmul.f32.gmra.mxu0 %v2127
    %v2239 = vpop.f32.mrf.mxu0
    %v2240 = vadd.f32 %v2031, %v2239
    %2241 = vmatmul.f32.gmra.mxu0 %v2130
    %v2242 = vpop.f32.mrf.mxu0
    %v2243 = vadd.f32 %v2034, %v2242
    %2244 = vmatmul.f32.gmra.mxu0 %v2133
    %v2245 = vpop.f32.mrf.mxu0
    %v2246 = vadd.f32 %v2037, %v2245
    %2247 = vmatmul.f32.gmra.mxu0 %v2136
    %v2248 = vpop.f32.mrf.mxu0
    %v2249 = vadd.f32 %v2040, %v2248
    %2250 = vmatmul.f32.gmra.mxu0 %v2139
    %v2251 = vpop.f32.mrf.mxu0
    %v2252 = vadd.f32 %v2043, %v2251
    %2253 = vmatmul.f32.gmra.mxu0 %v2142
    %v2254 = vpop.f32.mrf.mxu0
    %v2255 = vadd.f32 %v2046, %v2254
    %2256 = vmatmul.f32.gmra.mxu0 %v2145
    %v2257 = vpop.f32.mrf.mxu0
    %v2258 = vadd.f32 %v2049, %v2257
    %2259 = vmatmul.f32.gmra.mxu0 %v2148
    %v2260 = vpop.f32.mrf.mxu0
    %v2261 = vadd.f32 %v2052, %v2260
    %2262 = vmatmul.f32.gmra.mxu0 %v2151
    %v2263 = vpop.f32.mrf.mxu0
    %v2264 = vadd.f32 %v2055, %v2263
    %2265 = vmatmul.f32.gmra.mxu0 %v2154
    %v2266 = vpop.f32.mrf.mxu0
    %v2267 = vadd.f32 %v2058, %v2266
    %2268 = vmatmul.f32.gmra.mxu0 %v2157
    %v2269 = vpop.f32.mrf.mxu0
    %v2270 = vadd.f32 %v2061, %v2269
    %2271 = vmatmul.f32.gmra.mxu0 %v2160
    %v2272 = vpop.f32.mrf.mxu0
    %v2273 = vadd.f32 %v2064, %v2272
    %2274 = vmatmul.f32.gmra.mxu0 %v2163
    %v2275 = vpop.f32.mrf.mxu0
    %v2276 = vadd.f32 %v2067, %v2275
    %2277 = vmatmul.f32.gmra.mxu0 %v2166
    %v2278 = vpop.f32.mrf.mxu0
    %v2279 = vadd.f32 %v2070, %v2278
    %2280 = vmatmul.f32.gmra.mxu0 %v2169
    %v2281 = vpop.f32.mrf.mxu0
    %v2282 = vadd.f32 %v2073, %v2281
    %2283 = vmatmul.f32.gmra.mxu0 %v2172
    %v2284 = vpop.f32.mrf.mxu0
    %v2285 = vadd.f32 %v2076, %v2284
    %2286 = vmatmul.f32.gmra.mxu0 %v2175
    %v2287 = vpop.f32.mrf.mxu0
    %v2288 = vadd.f32 %v2079, %v2287
    %2289 = vmatmul.f32.gmra.mxu0 %v2178
    %v2290 = vpop.f32.mrf.mxu0
    %v2291 = vadd.f32 %v2082, %v2290
    %2292 = vmatmul.f32.gmra.mxu0 %v2181
    %v2293 = vpop.f32.mrf.mxu0
    %v2294 = vadd.f32 %v2085, %v2293
    %2295 = vmatmul.f32.gmra.mxu0 %v2184
    %v2296 = vpop.f32.mrf.mxu0
    %v2297 = vadd.f32 %v2088, %v2296
    %2298 = vmatmul.f32.gmra.mxu0 %v2187
    %v2299 = vpop.f32.mrf.mxu0
    %v2300 = vadd.f32 %v2091, %v2299
    %2301 = vmatmul.f32.gmra.mxu0 %v2190
    %v2302 = vpop.f32.mrf.mxu0
    %v2303 = vadd.f32 %v2094, %v2302
    %2304 = vmatmul.f32.gmra.mxu0 %v2193
    %v2305 = vpop.f32.mrf.mxu0
    %v2306 = vadd.f32 %v2097, %v2305
    %2307 = vmatmul.f32.gmra.mxu0 %v2196
    %v2308 = vpop.f32.mrf.mxu0
    %v2309 = vadd.f32 %v2100, %v2308
    %2310 = vmatmul.f32.gmra.mxu0 %v2199
    %v2311 = vpop.f32.mrf.mxu0
    %v2312 = vadd.f32 %v2103, %v2311
    %2313 = vdwg.mxu0
    %v2314 = vld [vmem:[%s3 + $0x200] sm:$0xff]
    %v2315 = vld [vmem:[%s3 + $0x208] sm:$0xff]
    %v2316 = vld [vmem:[%s3 + $0x210] sm:$0xff]
    %v2317 = vld [vmem:[%s3 + $0x218] sm:$0xff]
    %v2318 = vld [vmem:[%s3 + $0x220] sm:$0xff]
    %v2319 = vld [vmem:[%s3 + $0x228] sm:$0xff]
    %v2320 = vld [vmem:[%s3 + $0x230] sm:$0xff]
    %v2321 = vld [vmem:[%s3 + $0x238] sm:$0xff]
    %v2322 = vld [vmem:[%s3 + $0x240] sm:$0xff]
    %v2323 = vld [vmem:[%s3 + $0x248] sm:$0xff]
    %v2324 = vld [vmem:[%s3 + $0x250] sm:$0xff]
    %v2325 = vld [vmem:[%s3 + $0x258] sm:$0xff]
    %v2326 = vld [vmem:[%s3 + $0x260] sm:$0xff]
    %v2327 = vld [vmem:[%s3 + $0x268] sm:$0xff]
    %v2328 = vld [vmem:[%s3 + $0x270] sm:$0xff]
    %v2329 = vld [vmem:[%s3 + $0x278] sm:$0xff]
    %v2330 = vld [vmem:[%s3 + $0x280] sm:$0xff]
    %v2331 = vld [vmem:[%s3 + $0x288] sm:$0xff]
    %v2332 = vld [vmem:[%s3 + $0x290] sm:$0xff]
    %v2333 = vld [vmem:[%s3 + $0x298] sm:$0xff]
    %v2334 = vld [vmem:[%s3 + $0x2a0] sm:$0xff]
    %v2335 = vld [vmem:[%s3 + $0x2a8] sm:$0xff]
    %v2336 = vld [vmem:[%s3 + $0x2b0] sm:$0xff]
    %v2337 = vld [vmem:[%s3 + $0x2b8] sm:$0xff]
    %v2338 = vld [vmem:[%s3 + $0x2c0] sm:$0xff]
    %v2339 = vld [vmem:[%s3 + $0x2c8] sm:$0xff]
    %v2340 = vld [vmem:[%s3 + $0x2d0] sm:$0xff]
    %v2341 = vld [vmem:[%s3 + $0x2d8] sm:$0xff]
    %v2342 = vld [vmem:[%s3 + $0x2e0] sm:$0xff]
    %v2343 = vld [vmem:[%s3 + $0x2e8] sm:$0xff]
    %v2344 = vld [vmem:[%s3 + $0x2f0] sm:$0xff]
    %v2345 = vld [vmem:[%s3 + $0x2f8] sm:$0xff]
    %2347 = vset.pattern.permute.xlu0 0
    %2348 = vperm.xlu0 %2347, %v2314
    %v2349 = vpop.permute.xlu0 %2348
    %2352 = vset.pattern.permute.xlu0 0
    %2353 = vperm.xlu0 %2352, %v2315
    %v2354 = vpop.permute.xlu0 %2353
    %2357 = vset.pattern.permute.xlu0 0
    %2358 = vperm.xlu0 %2357, %v2316
    %v2359 = vpop.permute.xlu0 %2358
    %2362 = vset.pattern.permute.xlu0 0
    %2363 = vperm.xlu0 %2362, %v2317
    %v2364 = vpop.permute.xlu0 %2363
    %2367 = vset.pattern.permute.xlu0 0
    %2368 = vperm.xlu0 %2367, %v2318
    %v2369 = vpop.permute.xlu0 %2368
    %2372 = vset.pattern.permute.xlu0 0
    %2373 = vperm.xlu0 %2372, %v2319
    %v2374 = vpop.permute.xlu0 %2373
    %2377 = vset.pattern.permute.xlu0 0
    %2378 = vperm.xlu0 %2377, %v2320
    %v2379 = vpop.permute.xlu0 %2378
    %2382 = vset.pattern.permute.xlu0 0
    %2383 = vperm.xlu0 %2382, %v2321
    %v2384 = vpop.permute.xlu0 %2383
    %2387 = vset.pattern.permute.xlu0 0
    %2388 = vperm.xlu0 %2387, %v2322
    %v2389 = vpop.permute.xlu0 %2388
    %2392 = vset.pattern.permute.xlu0 0
    %2393 = vperm.xlu0 %2392, %v2323
    %v2394 = vpop.permute.xlu0 %2393
    %2397 = vset.pattern.permute.xlu0 0
    %2398 = vperm.xlu0 %2397, %v2324
    %v2399 = vpop.permute.xlu0 %2398
    %2402 = vset.pattern.permute.xlu0 0
    %2403 = vperm.xlu0 %2402, %v2325
    %v2404 = vpop.permute.xlu0 %2403
    %2407 = vset.pattern.permute.xlu0 0
    %2408 = vperm.xlu0 %2407, %v2326
    %v2409 = vpop.permute.xlu0 %2408
    %2412 = vset.pattern.permute.xlu0 0
    %2413 = vperm.xlu0 %2412, %v2327
    %v2414 = vpop.permute.xlu0 %2413
    %2417 = vset.pattern.permute.xlu0 0
    %2418 = vperm.xlu0 %2417, %v2328
    %v2419 = vpop.permute.xlu0 %2418
    %2422 = vset.pattern.permute.xlu0 0
    %2423 = vperm.xlu0 %2422, %v2329
    %v2424 = vpop.permute.xlu0 %2423
    %2427 = vset.pattern.permute.xlu0 0
    %2428 = vperm.xlu0 %2427, %v2330
    %v2429 = vpop.permute.xlu0 %2428
    %2432 = vset.pattern.permute.xlu0 0
    %2433 = vperm.xlu0 %2432, %v2331
    %v2434 = vpop.permute.xlu0 %2433
    %2437 = vset.pattern.permute.xlu0 0
    %2438 = vperm.xlu0 %2437, %v2332
    %v2439 = vpop.permute.xlu0 %2438
    %2442 = vset.pattern.permute.xlu0 0
    %2443 = vperm.xlu0 %2442, %v2333
    %v2444 = vpop.permute.xlu0 %2443
    %2447 = vset.pattern.permute.xlu0 0
    %2448 = vperm.xlu0 %2447, %v2334
    %v2449 = vpop.permute.xlu0 %2448
    %2452 = vset.pattern.permute.xlu0 0
    %2453 = vperm.xlu0 %2452, %v2335
    %v2454 = vpop.permute.xlu0 %2453
    %2457 = vset.pattern.permute.xlu0 0
    %2458 = vperm.xlu0 %2457, %v2336
    %v2459 = vpop.permute.xlu0 %2458
    %2462 = vset.pattern.permute.xlu0 0
    %2463 = vperm.xlu0 %2462, %v2337
    %v2464 = vpop.permute.xlu0 %2463
    %2467 = vset.pattern.permute.xlu0 0
    %2468 = vperm.xlu0 %2467, %v2338
    %v2469 = vpop.permute.xlu0 %2468
    %2472 = vset.pattern.permute.xlu0 0
    %2473 = vperm.xlu0 %2472, %v2339
    %v2474 = vpop.permute.xlu0 %2473
    %2477 = vset.pattern.permute.xlu0 0
    %2478 = vperm.xlu0 %2477, %v2340
    %v2479 = vpop.permute.xlu0 %2478
    %2482 = vset.pattern.permute.xlu0 0
    %2483 = vperm.xlu0 %2482, %v2341
    %v2484 = vpop.permute.xlu0 %2483
    %2487 = vset.pattern.permute.xlu0 0
    %2488 = vperm.xlu0 %2487, %v2342
    %v2489 = vpop.permute.xlu0 %2488
    %2492 = vset.pattern.permute.xlu0 0
    %2493 = vperm.xlu0 %2492, %v2343
    %v2494 = vpop.permute.xlu0 %2493
    %2497 = vset.pattern.permute.xlu0 0
    %2498 = vperm.xlu0 %2497, %v2344
    %v2499 = vpop.permute.xlu0 %2498
    %2502 = vset.pattern.permute.xlu0 0
    %2503 = vperm.xlu0 %2502, %v2345
    %v2504 = vpop.permute.xlu0 %2503
    %v2506 = vmul.f32 %v2349, %v336
    %v2507 = vmul.f32 %v2354, %v336
    %v2508 = vmul.f32 %v2359, %v336
    %v2509 = vmul.f32 %v2364, %v336
    %v2510 = vmul.f32 %v2369, %v336
    %v2511 = vmul.f32 %v2374, %v336
    %v2512 = vmul.f32 %v2379, %v336
    %v2513 = vmul.f32 %v2384, %v336
    %v2514 = vmul.f32 %v2389, %v336
    %v2515 = vmul.f32 %v2394, %v336
    %v2516 = vmul.f32 %v2399, %v336
    %v2517 = vmul.f32 %v2404, %v336
    %v2518 = vmul.f32 %v2409, %v336
    %v2519 = vmul.f32 %v2414, %v336
    %v2520 = vmul.f32 %v2419, %v336
    %v2521 = vmul.f32 %v2424, %v336
    %v2522 = vmul.f32 %v2429, %v336
    %v2523 = vmul.f32 %v2434, %v336
    %v2524 = vmul.f32 %v2439, %v336
    %v2525 = vmul.f32 %v2444, %v336
    %v2526 = vmul.f32 %v2449, %v336
    %v2527 = vmul.f32 %v2454, %v336
    %v2528 = vmul.f32 %v2459, %v336
    %v2529 = vmul.f32 %v2464, %v336
    %v2530 = vmul.f32 %v2469, %v336
    %v2531 = vmul.f32 %v2474, %v336
    %v2532 = vmul.f32 %v2479, %v336
    %v2533 = vmul.f32 %v2484, %v336
    %v2534 = vmul.f32 %v2489, %v336
    %v2535 = vmul.f32 %v2494, %v336
    %v2536 = vmul.f32 %v2499, %v336
    %v2537 = vmul.f32 %v2504, %v336
    %2538 = vset.pattern.permute.xlu0 1
    %2539 = vperm.xlu0 %2538, %v2314
    %v2540 = vpop.permute.xlu0 %2539
    %2542 = vset.pattern.permute.xlu0 1
    %2543 = vperm.xlu0 %2542, %v2315
    %v2544 = vpop.permute.xlu0 %2543
    %2546 = vset.pattern.permute.xlu0 1
    %2547 = vperm.xlu0 %2546, %v2316
    %v2548 = vpop.permute.xlu0 %2547
    %2550 = vset.pattern.permute.xlu0 1
    %2551 = vperm.xlu0 %2550, %v2317
    %v2552 = vpop.permute.xlu0 %2551
    %2554 = vset.pattern.permute.xlu0 1
    %2555 = vperm.xlu0 %2554, %v2318
    %v2556 = vpop.permute.xlu0 %2555
    %2558 = vset.pattern.permute.xlu0 1
    %2559 = vperm.xlu0 %2558, %v2319
    %v2560 = vpop.permute.xlu0 %2559
    %2562 = vset.pattern.permute.xlu0 1
    %2563 = vperm.xlu0 %2562, %v2320
    %v2564 = vpop.permute.xlu0 %2563
    %2566 = vset.pattern.permute.xlu0 1
    %2567 = vperm.xlu0 %2566, %v2321
    %v2568 = vpop.permute.xlu0 %2567
    %2570 = vset.pattern.permute.xlu0 1
    %2571 = vperm.xlu0 %2570, %v2322
    %v2572 = vpop.permute.xlu0 %2571
    %2574 = vset.pattern.permute.xlu0 1
    %2575 = vperm.xlu0 %2574, %v2323
    %v2576 = vpop.permute.xlu0 %2575
    %2578 = vset.pattern.permute.xlu0 1
    %2579 = vperm.xlu0 %2578, %v2324
    %v2580 = vpop.permute.xlu0 %2579
    %2582 = vset.pattern.permute.xlu0 1
    %2583 = vperm.xlu0 %2582, %v2325
    %v2584 = vpop.permute.xlu0 %2583
    %2586 = vset.pattern.permute.xlu0 1
    %2587 = vperm.xlu0 %2586, %v2326
    %v2588 = vpop.permute.xlu0 %2587
    %2590 = vset.pattern.permute.xlu0 1
    %2591 = vperm.xlu0 %2590, %v2327
    %v2592 = vpop.permute.xlu0 %2591
    %2594 = vset.pattern.permute.xlu0 1
    %2595 = vperm.xlu0 %2594, %v2328
    %v2596 = vpop.permute.xlu0 %2595
    %2598 = vset.pattern.permute.xlu0 1
    %2599 = vperm.xlu0 %2598, %v2329
    %v2600 = vpop.permute.xlu0 %2599
    %2602 = vset.pattern.permute.xlu0 1
    %2603 = vperm.xlu0 %2602, %v2330
    %v2604 = vpop.permute.xlu0 %2603
    %2606 = vset.pattern.permute.xlu0 1
    %2607 = vperm.xlu0 %2606, %v2331
    %v2608 = vpop.permute.xlu0 %2607
    %2610 = vset.pattern.permute.xlu0 1
    %2611 = vperm.xlu0 %2610, %v2332
    %v2612 = vpop.permute.xlu0 %2611
    %2614 = vset.pattern.permute.xlu0 1
    %2615 = vperm.xlu0 %2614, %v2333
    %v2616 = vpop.permute.xlu0 %2615
    %2618 = vset.pattern.permute.xlu0 1
    %2619 = vperm.xlu0 %2618, %v2334
    %v2620 = vpop.permute.xlu0 %2619
    %2622 = vset.pattern.permute.xlu0 1
    %2623 = vperm.xlu0 %2622, %v2335
    %v2624 = vpop.permute.xlu0 %2623
    %2626 = vset.pattern.permute.xlu0 1
    %2627 = vperm.xlu0 %2626, %v2336
    %v2628 = vpop.permute.xlu0 %2627
    %2630 = vset.pattern.permute.xlu0 1
    %2631 = vperm.xlu0 %2630, %v2337
    %v2632 = vpop.permute.xlu0 %2631
    %2634 = vset.pattern.permute.xlu0 1
    %2635 = vperm.xlu0 %2634, %v2338
    %v2636 = vpop.permute.xlu0 %2635
    %2638 = vset.pattern.permute.xlu0 1
    %2639 = vperm.xlu0 %2638, %v2339
    %v2640 = vpop.permute.xlu0 %2639
    %2642 = vset.pattern.permute.xlu0 1
    %2643 = vperm.xlu0 %2642, %v2340
    %v2644 = vpop.permute.xlu0 %2643
    %2646 = vset.pattern.permute.xlu0 1
    %2647 = vperm.xlu0 %2646, %v2341
    %v2648 = vpop.permute.xlu0 %2647
    %2650 = vset.pattern.permute.xlu0 1
    %2651 = vperm.xlu0 %2650, %v2342
    %v2652 = vpop.permute.xlu0 %2651
    %2654 = vset.pattern.permute.xlu0 1
    %2655 = vperm.xlu0 %2654, %v2343
    %v2656 = vpop.permute.xlu0 %2655
    %2658 = vset.pattern.permute.xlu0 1
    %2659 = vperm.xlu0 %2658, %v2344
    %v2660 = vpop.permute.xlu0 %2659
    %2662 = vset.pattern.permute.xlu0 1
    %2663 = vperm.xlu0 %2662, %v2345
    %v2664 = vpop.permute.xlu0 %2663
    %v2666 = vmul.f32 %v2540, %v497
    %v2667 = vmul.f32 %v2544, %v497
    %v2668 = vmul.f32 %v2548, %v497
    %v2669 = vmul.f32 %v2552, %v497
    %v2670 = vmul.f32 %v2556, %v497
    %v2671 = vmul.f32 %v2560, %v497
    %v2672 = vmul.f32 %v2564, %v497
    %v2673 = vmul.f32 %v2568, %v497
    %v2674 = vmul.f32 %v2572, %v497
    %v2675 = vmul.f32 %v2576, %v497
    %v2676 = vmul.f32 %v2580, %v497
    %v2677 = vmul.f32 %v2584, %v497
    %v2678 = vmul.f32 %v2588, %v497
    %v2679 = vmul.f32 %v2592, %v497
    %v2680 = vmul.f32 %v2596, %v497
    %v2681 = vmul.f32 %v2600, %v497
    %v2682 = vmul.f32 %v2604, %v497
    %v2683 = vmul.f32 %v2608, %v497
    %v2684 = vmul.f32 %v2612, %v497
    %v2685 = vmul.f32 %v2616, %v497
    %v2686 = vmul.f32 %v2620, %v497
    %v2687 = vmul.f32 %v2624, %v497
    %v2688 = vmul.f32 %v2628, %v497
    %v2689 = vmul.f32 %v2632, %v497
    %v2690 = vmul.f32 %v2636, %v497
    %v2691 = vmul.f32 %v2640, %v497
    %v2692 = vmul.f32 %v2644, %v497
    %v2693 = vmul.f32 %v2648, %v497
    %v2694 = vmul.f32 %v2652, %v497
    %v2695 = vmul.f32 %v2656, %v497
    %v2696 = vmul.f32 %v2660, %v497
    %v2697 = vmul.f32 %v2664, %v497
    %v2698 = vadd.f32 %v2506, %v2666
    %v2699 = vadd.f32 %v2507, %v2667
    %v2700 = vadd.f32 %v2508, %v2668
    %v2701 = vadd.f32 %v2509, %v2669
    %v2702 = vadd.f32 %v2510, %v2670
    %v2703 = vadd.f32 %v2511, %v2671
    %v2704 = vadd.f32 %v2512, %v2672
    %v2705 = vadd.f32 %v2513, %v2673
    %v2706 = vadd.f32 %v2514, %v2674
    %v2707 = vadd.f32 %v2515, %v2675
    %v2708 = vadd.f32 %v2516, %v2676
    %v2709 = vadd.f32 %v2517, %v2677
    %v2710 = vadd.f32 %v2518, %v2678
    %v2711 = vadd.f32 %v2519, %v2679
    %v2712 = vadd.f32 %v2520, %v2680
    %v2713 = vadd.f32 %v2521, %v2681
    %v2714 = vadd.f32 %v2522, %v2682
    %v2715 = vadd.f32 %v2523, %v2683
    %v2716 = vadd.f32 %v2524, %v2684
    %v2717 = vadd.f32 %v2525, %v2685
    %v2718 = vadd.f32 %v2526, %v2686
    %v2719 = vadd.f32 %v2527, %v2687
    %v2720 = vadd.f32 %v2528, %v2688
    %v2721 = vadd.f32 %v2529, %v2689
    %v2722 = vadd.f32 %v2530, %v2690
    %v2723 = vadd.f32 %v2531, %v2691
    %v2724 = vadd.f32 %v2532, %v2692
    %v2725 = vadd.f32 %v2533, %v2693
    %v2726 = vadd.f32 %v2534, %v2694
    %v2727 = vadd.f32 %v2535, %v2695
    %v2728 = vadd.f32 %v2536, %v2696
    %v2729 = vadd.f32 %v2537, %v2697
    %2730 = vset.pattern.permute.xlu0 2
    %2731 = vperm.xlu0 %2730, %v2314
    %v2732 = vpop.permute.xlu0 %2731
    %2734 = vset.pattern.permute.xlu0 2
    %2735 = vperm.xlu0 %2734, %v2315
    %v2736 = vpop.permute.xlu0 %2735
    %2738 = vset.pattern.permute.xlu0 2
    %2739 = vperm.xlu0 %2738, %v2316
    %v2740 = vpop.permute.xlu0 %2739
    %2742 = vset.pattern.permute.xlu0 2
    %2743 = vperm.xlu0 %2742, %v2317
    %v2744 = vpop.permute.xlu0 %2743
    %2746 = vset.pattern.permute.xlu0 2
    %2747 = vperm.xlu0 %2746, %v2318
    %v2748 = vpop.permute.xlu0 %2747
    %2750 = vset.pattern.permute.xlu0 2
    %2751 = vperm.xlu0 %2750, %v2319
    %v2752 = vpop.permute.xlu0 %2751
    %2754 = vset.pattern.permute.xlu0 2
    %2755 = vperm.xlu0 %2754, %v2320
    %v2756 = vpop.permute.xlu0 %2755
    %2758 = vset.pattern.permute.xlu0 2
    %2759 = vperm.xlu0 %2758, %v2321
    %v2760 = vpop.permute.xlu0 %2759
    %2762 = vset.pattern.permute.xlu0 2
    %2763 = vperm.xlu0 %2762, %v2322
    %v2764 = vpop.permute.xlu0 %2763
    %2766 = vset.pattern.permute.xlu0 2
    %2767 = vperm.xlu0 %2766, %v2323
    %v2768 = vpop.permute.xlu0 %2767
    %2770 = vset.pattern.permute.xlu0 2
    %2771 = vperm.xlu0 %2770, %v2324
    %v2772 = vpop.permute.xlu0 %2771
    %2774 = vset.pattern.permute.xlu0 2
    %2775 = vperm.xlu0 %2774, %v2325
    %v2776 = vpop.permute.xlu0 %2775
    %2778 = vset.pattern.permute.xlu0 2
    %2779 = vperm.xlu0 %2778, %v2326
    %v2780 = vpop.permute.xlu0 %2779
    %2782 = vset.pattern.permute.xlu0 2
    %2783 = vperm.xlu0 %2782, %v2327
    %v2784 = vpop.permute.xlu0 %2783
    %2786 = vset.pattern.permute.xlu0 2
    %2787 = vperm.xlu0 %2786, %v2328
    %v2788 = vpop.permute.xlu0 %2787
    %2790 = vset.pattern.permute.xlu0 2
    %2791 = vperm.xlu0 %2790, %v2329
    %v2792 = vpop.permute.xlu0 %2791
    %2794 = vset.pattern.permute.xlu0 2
    %2795 = vperm.xlu0 %2794, %v2330
    %v2796 = vpop.permute.xlu0 %2795
    %2798 = vset.pattern.permute.xlu0 2
    %2799 = vperm.xlu0 %2798, %v2331
    %v2800 = vpop.permute.xlu0 %2799
    %2802 = vset.pattern.permute.xlu0 2
    %2803 = vperm.xlu0 %2802, %v2332
    %v2804 = vpop.permute.xlu0 %2803
    %2806 = vset.pattern.permute.xlu0 2
    %2807 = vperm.xlu0 %2806, %v2333
    %v2808 = vpop.permute.xlu0 %2807
    %2810 = vset.pattern.permute.xlu0 2
    %2811 = vperm.xlu0 %2810, %v2334
    %v2812 = vpop.permute.xlu0 %2811
    %2814 = vset.pattern.permute.xlu0 2
    %2815 = vperm.xlu0 %2814, %v2335
    %v2816 = vpop.permute.xlu0 %2815
    %2818 = vset.pattern.permute.xlu0 2
    %2819 = vperm.xlu0 %2818, %v2336
    %v2820 = vpop.permute.xlu0 %2819
    %2822 = vset.pattern.permute.xlu0 2
    %2823 = vperm.xlu0 %2822, %v2337
    %v2824 = vpop.permute.xlu0 %2823
    %2826 = vset.pattern.permute.xlu0 2
    %2827 = vperm.xlu0 %2826, %v2338
    %v2828 = vpop.permute.xlu0 %2827
    %2830 = vset.pattern.permute.xlu0 2
    %2831 = vperm.xlu0 %2830, %v2339
    %v2832 = vpop.permute.xlu0 %2831
    %2834 = vset.pattern.permute.xlu0 2
    %2835 = vperm.xlu0 %2834, %v2340
    %v2836 = vpop.permute.xlu0 %2835
    %2838 = vset.pattern.permute.xlu0 2
    %2839 = vperm.xlu0 %2838, %v2341
    %v2840 = vpop.permute.xlu0 %2839
    %2842 = vset.pattern.permute.xlu0 2
    %2843 = vperm.xlu0 %2842, %v2342
    %v2844 = vpop.permute.xlu0 %2843
    %2846 = vset.pattern.permute.xlu0 2
    %2847 = vperm.xlu0 %2846, %v2343
    %v2848 = vpop.permute.xlu0 %2847
    %2850 = vset.pattern.permute.xlu0 2
    %2851 = vperm.xlu0 %2850, %v2344
    %v2852 = vpop.permute.xlu0 %2851
    %2854 = vset.pattern.permute.xlu0 2
    %2855 = vperm.xlu0 %2854, %v2345
    %v2856 = vpop.permute.xlu0 %2855
    %v2858 = vmul.f32 %v2732, %v690
    %v2859 = vmul.f32 %v2736, %v690
    %v2860 = vmul.f32 %v2740, %v690
    %v2861 = vmul.f32 %v2744, %v690
    %v2862 = vmul.f32 %v2748, %v690
    %v2863 = vmul.f32 %v2752, %v690
    %v2864 = vmul.f32 %v2756, %v690
    %v2865 = vmul.f32 %v2760, %v690
    %v2866 = vmul.f32 %v2764, %v690
    %v2867 = vmul.f32 %v2768, %v690
    %v2868 = vmul.f32 %v2772, %v690
    %v2869 = vmul.f32 %v2776, %v690
    %v2870 = vmul.f32 %v2780, %v690
    %v2871 = vmul.f32 %v2784, %v690
    %v2872 = vmul.f32 %v2788, %v690
    %v2873 = vmul.f32 %v2792, %v690
    %v2874 = vmul.f32 %v2796, %v690
    %v2875 = vmul.f32 %v2800, %v690
    %v2876 = vmul.f32 %v2804, %v690
    %v2877 = vmul.f32 %v2808, %v690
    %v2878 = vmul.f32 %v2812, %v690
    %v2879 = vmul.f32 %v2816, %v690
    %v2880 = vmul.f32 %v2820, %v690
    %v2881 = vmul.f32 %v2824, %v690
    %v2882 = vmul.f32 %v2828, %v690
    %v2883 = vmul.f32 %v2832, %v690
    %v2884 = vmul.f32 %v2836, %v690
    %v2885 = vmul.f32 %v2840, %v690
    %v2886 = vmul.f32 %v2844, %v690
    %v2887 = vmul.f32 %v2848, %v690
    %v2888 = vmul.f32 %v2852, %v690
    %v2889 = vmul.f32 %v2856, %v690
    %v2890 = vadd.f32 %v2698, %v2858
    %v2891 = vadd.f32 %v2699, %v2859
    %v2892 = vadd.f32 %v2700, %v2860
    %v2893 = vadd.f32 %v2701, %v2861
    %v2894 = vadd.f32 %v2702, %v2862
    %v2895 = vadd.f32 %v2703, %v2863
    %v2896 = vadd.f32 %v2704, %v2864
    %v2897 = vadd.f32 %v2705, %v2865
    %v2898 = vadd.f32 %v2706, %v2866
    %v2899 = vadd.f32 %v2707, %v2867
    %v2900 = vadd.f32 %v2708, %v2868
    %v2901 = vadd.f32 %v2709, %v2869
    %v2902 = vadd.f32 %v2710, %v2870
    %v2903 = vadd.f32 %v2711, %v2871
    %v2904 = vadd.f32 %v2712, %v2872
    %v2905 = vadd.f32 %v2713, %v2873
    %v2906 = vadd.f32 %v2714, %v2874
    %v2907 = vadd.f32 %v2715, %v2875
    %v2908 = vadd.f32 %v2716, %v2876
    %v2909 = vadd.f32 %v2717, %v2877
    %v2910 = vadd.f32 %v2718, %v2878
    %v2911 = vadd.f32 %v2719, %v2879
    %v2912 = vadd.f32 %v2720, %v2880
    %v2913 = vadd.f32 %v2721, %v2881
    %v2914 = vadd.f32 %v2722, %v2882
    %v2915 = vadd.f32 %v2723, %v2883
    %v2916 = vadd.f32 %v2724, %v2884
    %v2917 = vadd.f32 %v2725, %v2885
    %v2918 = vadd.f32 %v2726, %v2886
    %v2919 = vadd.f32 %v2727, %v2887
    %v2920 = vadd.f32 %v2728, %v2888
    %v2921 = vadd.f32 %v2729, %v2889
    %2922 = vset.pattern.permute.xlu0 3
    %2923 = vperm.xlu0 %2922, %v2314
    %v2924 = vpop.permute.xlu0 %2923
    %2926 = vset.pattern.permute.xlu0 3
    %2927 = vperm.xlu0 %2926, %v2315
    %v2928 = vpop.permute.xlu0 %2927
    %2930 = vset.pattern.permute.xlu0 3
    %2931 = vperm.xlu0 %2930, %v2316
    %v2932 = vpop.permute.xlu0 %2931
    %2934 = vset.pattern.permute.xlu0 3
    %2935 = vperm.xlu0 %2934, %v2317
    %v2936 = vpop.permute.xlu0 %2935
    %2938 = vset.pattern.permute.xlu0 3
    %2939 = vperm.xlu0 %2938, %v2318
    %v2940 = vpop.permute.xlu0 %2939
    %2942 = vset.pattern.permute.xlu0 3
    %2943 = vperm.xlu0 %2942, %v2319
    %v2944 = vpop.permute.xlu0 %2943
    %2946 = vset.pattern.permute.xlu0 3
    %2947 = vperm.xlu0 %2946, %v2320
    %v2948 = vpop.permute.xlu0 %2947
    %2950 = vset.pattern.permute.xlu0 3
    %2951 = vperm.xlu0 %2950, %v2321
    %v2952 = vpop.permute.xlu0 %2951
    %2954 = vset.pattern.permute.xlu0 3
    %2955 = vperm.xlu0 %2954, %v2322
    %v2956 = vpop.permute.xlu0 %2955
    %2958 = vset.pattern.permute.xlu0 3
    %2959 = vperm.xlu0 %2958, %v2323
    %v2960 = vpop.permute.xlu0 %2959
    %2962 = vset.pattern.permute.xlu0 3
    %2963 = vperm.xlu0 %2962, %v2324
    %v2964 = vpop.permute.xlu0 %2963
    %2966 = vset.pattern.permute.xlu0 3
    %2967 = vperm.xlu0 %2966, %v2325
    %v2968 = vpop.permute.xlu0 %2967
    %2970 = vset.pattern.permute.xlu0 3
    %2971 = vperm.xlu0 %2970, %v2326
    %v2972 = vpop.permute.xlu0 %2971
    %2974 = vset.pattern.permute.xlu0 3
    %2975 = vperm.xlu0 %2974, %v2327
    %v2976 = vpop.permute.xlu0 %2975
    %2978 = vset.pattern.permute.xlu0 3
    %2979 = vperm.xlu0 %2978, %v2328
    %v2980 = vpop.permute.xlu0 %2979
    %2982 = vset.pattern.permute.xlu0 3
    %2983 = vperm.xlu0 %2982, %v2329
    %v2984 = vpop.permute.xlu0 %2983
    %2986 = vset.pattern.permute.xlu0 3
    %2987 = vperm.xlu0 %2986, %v2330
    %v2988 = vpop.permute.xlu0 %2987
    %2990 = vset.pattern.permute.xlu0 3
    %2991 = vperm.xlu0 %2990, %v2331
    %v2992 = vpop.permute.xlu0 %2991
    %2994 = vset.pattern.permute.xlu0 3
    %2995 = vperm.xlu0 %2994, %v2332
    %v2996 = vpop.permute.xlu0 %2995
    %2998 = vset.pattern.permute.xlu0 3
    %2999 = vperm.xlu0 %2998, %v2333
    %v3000 = vpop.permute.xlu0 %2999
    %3002 = vset.pattern.permute.xlu0 3
    %3003 = vperm.xlu0 %3002, %v2334
    %v3004 = vpop.permute.xlu0 %3003
    %3006 = vset.pattern.permute.xlu0 3
    %3007 = vperm.xlu0 %3006, %v2335
    %v3008 = vpop.permute.xlu0 %3007
    %3010 = vset.pattern.permute.xlu0 3
    %3011 = vperm.xlu0 %3010, %v2336
    %v3012 = vpop.permute.xlu0 %3011
    %3014 = vset.pattern.permute.xlu0 3
    %3015 = vperm.xlu0 %3014, %v2337
    %v3016 = vpop.permute.xlu0 %3015
    %3018 = vset.pattern.permute.xlu0 3
    %3019 = vperm.xlu0 %3018, %v2338
    %v3020 = vpop.permute.xlu0 %3019
    %3022 = vset.pattern.permute.xlu0 3
    %3023 = vperm.xlu0 %3022, %v2339
    %v3024 = vpop.permute.xlu0 %3023
    %3026 = vset.pattern.permute.xlu0 3
    %3027 = vperm.xlu0 %3026, %v2340
    %v3028 = vpop.permute.xlu0 %3027
    %3030 = vset.pattern.permute.xlu0 3
    %3031 = vperm.xlu0 %3030, %v2341
    %v3032 = vpop.permute.xlu0 %3031
    %3034 = vset.pattern.permute.xlu0 3
    %3035 = vperm.xlu0 %3034, %v2342
    %v3036 = vpop.permute.xlu0 %3035
    %3038 = vset.pattern.permute.xlu0 3
    %3039 = vperm.xlu0 %3038, %v2343
    %v3040 = vpop.permute.xlu0 %3039
    %3042 = vset.pattern.permute.xlu0 3
    %3043 = vperm.xlu0 %3042, %v2344
    %v3044 = vpop.permute.xlu0 %3043
    %3046 = vset.pattern.permute.xlu0 3
    %3047 = vperm.xlu0 %3046, %v2345
    %v3048 = vpop.permute.xlu0 %3047
    %v3050 = vmul.f32 %v2924, %v883
    %v3051 = vmul.f32 %v2928, %v883
    %v3052 = vmul.f32 %v2932, %v883
    %v3053 = vmul.f32 %v2936, %v883
    %v3054 = vmul.f32 %v2940, %v883
    %v3055 = vmul.f32 %v2944, %v883
    %v3056 = vmul.f32 %v2948, %v883
    %v3057 = vmul.f32 %v2952, %v883
    %v3058 = vmul.f32 %v2956, %v883
    %v3059 = vmul.f32 %v2960, %v883
    %v3060 = vmul.f32 %v2964, %v883
    %v3061 = vmul.f32 %v2968, %v883
    %v3062 = vmul.f32 %v2972, %v883
    %v3063 = vmul.f32 %v2976, %v883
    %v3064 = vmul.f32 %v2980, %v883
    %v3065 = vmul.f32 %v2984, %v883
    %v3066 = vmul.f32 %v2988, %v883
    %v3067 = vmul.f32 %v2992, %v883
    %v3068 = vmul.f32 %v2996, %v883
    %v3069 = vmul.f32 %v3000, %v883
    %v3070 = vmul.f32 %v3004, %v883
    %v3071 = vmul.f32 %v3008, %v883
    %v3072 = vmul.f32 %v3012, %v883
    %v3073 = vmul.f32 %v3016, %v883
    %v3074 = vmul.f32 %v3020, %v883
    %v3075 = vmul.f32 %v3024, %v883
    %v3076 = vmul.f32 %v3028, %v883
    %v3077 = vmul.f32 %v3032, %v883
    %v3078 = vmul.f32 %v3036, %v883
    %v3079 = vmul.f32 %v3040, %v883
    %v3080 = vmul.f32 %v3044, %v883
    %v3081 = vmul.f32 %v3048, %v883
    %v3082 = vadd.f32 %v2890, %v3050
    %v3083 = vadd.f32 %v2891, %v3051
    %v3084 = vadd.f32 %v2892, %v3052
    %v3085 = vadd.f32 %v2893, %v3053
    %v3086 = vadd.f32 %v2894, %v3054
    %v3087 = vadd.f32 %v2895, %v3055
    %v3088 = vadd.f32 %v2896, %v3056
    %v3089 = vadd.f32 %v2897, %v3057
    %v3090 = vadd.f32 %v2898, %v3058
    %v3091 = vadd.f32 %v2899, %v3059
    %v3092 = vadd.f32 %v2900, %v3060
    %v3093 = vadd.f32 %v2901, %v3061
    %v3094 = vadd.f32 %v2902, %v3062
    %v3095 = vadd.f32 %v2903, %v3063
    %v3096 = vadd.f32 %v2904, %v3064
    %v3097 = vadd.f32 %v2905, %v3065
    %v3098 = vadd.f32 %v2906, %v3066
    %v3099 = vadd.f32 %v2907, %v3067
    %v3100 = vadd.f32 %v2908, %v3068
    %v3101 = vadd.f32 %v2909, %v3069
    %v3102 = vadd.f32 %v2910, %v3070
    %v3103 = vadd.f32 %v2911, %v3071
    %v3104 = vadd.f32 %v2912, %v3072
    %v3105 = vadd.f32 %v2913, %v3073
    %v3106 = vadd.f32 %v2914, %v3074
    %v3107 = vadd.f32 %v2915, %v3075
    %v3108 = vadd.f32 %v2916, %v3076
    %v3109 = vadd.f32 %v2917, %v3077
    %v3110 = vadd.f32 %v2918, %v3078
    %v3111 = vadd.f32 %v2919, %v3079
    %v3112 = vadd.f32 %v2920, %v3080
    %v3113 = vadd.f32 %v2921, %v3081
    %v3114 = vadd.f32 %v3082, %v949
    %v3115 = vadd.f32 %v3083, %v949
    %v3116 = vadd.f32 %v3084, %v949
    %v3117 = vadd.f32 %v3085, %v949
    %v3118 = vadd.f32 %v3086, %v949
    %v3119 = vadd.f32 %v3087, %v949
    %v3120 = vadd.f32 %v3088, %v949
    %v3121 = vadd.f32 %v3089, %v949
    %v3122 = vadd.f32 %v3090, %v949
    %v3123 = vadd.f32 %v3091, %v949
    %v3124 = vadd.f32 %v3092, %v949
    %v3125 = vadd.f32 %v3093, %v949
    %v3126 = vadd.f32 %v3094, %v949
    %v3127 = vadd.f32 %v3095, %v949
    %v3128 = vadd.f32 %v3096, %v949
    %v3129 = vadd.f32 %v3097, %v949
    %v3130 = vadd.f32 %v3098, %v949
    %v3131 = vadd.f32 %v3099, %v949
    %v3132 = vadd.f32 %v3100, %v949
    %v3133 = vadd.f32 %v3101, %v949
    %v3134 = vadd.f32 %v3102, %v949
    %v3135 = vadd.f32 %v3103, %v949
    %v3136 = vadd.f32 %v3104, %v949
    %v3137 = vadd.f32 %v3105, %v949
    %v3138 = vadd.f32 %v3106, %v949
    %v3139 = vadd.f32 %v3107, %v949
    %v3140 = vadd.f32 %v3108, %v949
    %v3141 = vadd.f32 %v3109, %v949
    %v3142 = vadd.f32 %v3110, %v949
    %v3143 = vadd.f32 %v3111, %v949
    %v3144 = vadd.f32 %v3112, %v949
    %v3145 = vadd.f32 %v3113, %v949
    %v3146 = vmax.f32 %v3114, 0.0
    %v3147 = vmax.f32 %v3115, 0.0
    %v3148 = vmax.f32 %v3116, 0.0
    %v3149 = vmax.f32 %v3117, 0.0
    %v3150 = vmax.f32 %v3118, 0.0
    %v3151 = vmax.f32 %v3119, 0.0
    %v3152 = vmax.f32 %v3120, 0.0
    %v3153 = vmax.f32 %v3121, 0.0
    %v3154 = vmax.f32 %v3122, 0.0
    %v3155 = vmax.f32 %v3123, 0.0
    %v3156 = vmax.f32 %v3124, 0.0
    %v3157 = vmax.f32 %v3125, 0.0
    %v3158 = vmax.f32 %v3126, 0.0
    %v3159 = vmax.f32 %v3127, 0.0
    %v3160 = vmax.f32 %v3128, 0.0
    %v3161 = vmax.f32 %v3129, 0.0
    %v3162 = vmax.f32 %v3130, 0.0
    %v3163 = vmax.f32 %v3131, 0.0
    %v3164 = vmax.f32 %v3132, 0.0
    %v3165 = vmax.f32 %v3133, 0.0
    %v3166 = vmax.f32 %v3134, 0.0
    %v3167 = vmax.f32 %v3135, 0.0
    %v3168 = vmax.f32 %v3136, 0.0
    %v3169 = vmax.f32 %v3137, 0.0
    %v3170 = vmax.f32 %v3138, 0.0
    %v3171 = vmax.f32 %v3139, 0.0
    %v3172 = vmax.f32 %v3140, 0.0
    %v3173 = vmax.f32 %v3141, 0.0
    %v3174 = vmax.f32 %v3142, 0.0
    %v3175 = vmax.f32 %v3143, 0.0
    %v3176 = vmax.f32 %v3144, 0.0
    %v3177 = vmax.f32 %v3145, 0.0
    %v3178 = vld [vmem:[%s9 + $0x80] sm:$0xff]
    %v3179 = vld [vmem:[%s9 + $0x88] sm:$0xff]
    %v3180 = vld [vmem:[%s9 + $0x90] sm:$0xff]
    %v3181 = vld [vmem:[%s9 + $0x98] sm:$0xff]
    %v3182 = vld [vmem:[%s9 + $0xa0] sm:$0xff]
    %v3183 = vld [vmem:[%s9 + $0xa8] sm:$0xff]
    %v3184 = vld [vmem:[%s9 + $0xb0] sm:$0xff]
    %v3185 = vld [vmem:[%s9 + $0xb8] sm:$0xff]
    %v3187 = vsel %vm1895, %v3146, 0
    %v3190 = vsel %vm1895, %v3147, 0
    %v3193 = vsel %vm1895, %v3148, 0
    %v3196 = vsel %vm1895, %v3149, 0
    %v3199 = vsel %vm1895, %v3150, 0
    %v3202 = vsel %vm1895, %v3151, 0
    %v3205 = vsel %vm1895, %v3152, 0
    %v3208 = vsel %vm1895, %v3153, 0
    %v3211 = vsel %vm1895, %v3154, 0
    %v3214 = vsel %vm1895, %v3155, 0
    %v3217 = vsel %vm1895, %v3156, 0
    %v3220 = vsel %vm1895, %v3157, 0
    %v3223 = vsel %vm1895, %v3158, 0
    %v3226 = vsel %vm1895, %v3159, 0
    %v3229 = vsel %vm1895, %v3160, 0
    %v3232 = vsel %vm1895, %v3161, 0
    %v3235 = vsel %vm1895, %v3162, 0
    %v3238 = vsel %vm1895, %v3163, 0
    %v3241 = vsel %vm1895, %v3164, 0
    %v3244 = vsel %vm1895, %v3165, 0
    %v3247 = vsel %vm1895, %v3166, 0
    %v3250 = vsel %vm1895, %v3167, 0
    %v3253 = vsel %vm1895, %v3168, 0
    %v3256 = vsel %vm1895, %v3169, 0
    %v3259 = vsel %vm1895, %v3170, 0
    %v3262 = vsel %vm1895, %v3171, 0
    %v3265 = vsel %vm1895, %v3172, 0
    %v3268 = vsel %vm1895, %v3173, 0
    %v3271 = vsel %vm1895, %v3174, 0
    %v3274 = vsel %vm1895, %v3175, 0
    %v3277 = vsel %vm1895, %v3176, 0
    %v3280 = vsel %vm1895, %v3177, 0
    %3282 = vmatpush.msra.mxu0 0.0
    %3283 = vmatpush.msra.mxu0 0.0
    %3284 = vmatpush.msra.mxu0 0.0
    %3285 = vmatpush.msra.mxu0 0.0
    %3286 = vmatpush.msra.mxu0 0.0
    %3287 = vmatpush.msra.mxu0 0.0
    %3288 = vmatpush.msra.mxu0 0.0
    %3289 = vmatpush.msra.mxu0 0.0
    %3290 = vmatpush.msra.mxu0 %v3185
    %3291 = vmatpush.msra.mxu0 %v3184
    %3292 = vmatpush.msra.mxu0 %v3183
    %3293 = vmatpush.msra.mxu0 %v3182
    %3294 = vmatpush.msra.mxu0 %v3181
    %3295 = vmatpush.msra.mxu0 %v3180
    %3296 = vmatpush.msra.mxu0 %v3179
    %3297 = vmatpush.msra.mxu0 %v3178
    %3298 = vmatmul.f32.gmra.mxu0 %v3187
    %v3299 = vpop.f32.mrf.mxu0
    %v3300 = vadd.f32 0.0, %v3299
    %3301 = vmatmul.f32.gmra.mxu0 %v3190
    %v3302 = vpop.f32.mrf.mxu0
    %v3303 = vadd.f32 0.0, %v3302
    %3304 = vmatmul.f32.gmra.mxu0 %v3193
    %v3305 = vpop.f32.mrf.mxu0
    %v3306 = vadd.f32 0.0, %v3305
    %3307 = vmatmul.f32.gmra.mxu0 %v3196
    %v3308 = vpop.f32.mrf.mxu0
    %v3309 = vadd.f32 0.0, %v3308
    %3310 = vmatmul.f32.gmra.mxu0 %v3199
    %v3311 = vpop.f32.mrf.mxu0
    %v3312 = vadd.f32 0.0, %v3311
    %3313 = vmatmul.f32.gmra.mxu0 %v3202
    %v3314 = vpop.f32.mrf.mxu0
    %v3315 = vadd.f32 0.0, %v3314
    %3316 = vmatmul.f32.gmra.mxu0 %v3205
    %v3317 = vpop.f32.mrf.mxu0
    %v3318 = vadd.f32 0.0, %v3317
    %3319 = vmatmul.f32.gmra.mxu0 %v3208
    %v3320 = vpop.f32.mrf.mxu0
    %v3321 = vadd.f32 0.0, %v3320
    %3322 = vmatmul.f32.gmra.mxu0 %v3211
    %v3323 = vpop.f32.mrf.mxu0
    %v3324 = vadd.f32 0.0, %v3323
    %3325 = vmatmul.f32.gmra.mxu0 %v3214
    %v3326 = vpop.f32.mrf.mxu0
    %v3327 = vadd.f32 0.0, %v3326
    %3328 = vmatmul.f32.gmra.mxu0 %v3217
    %v3329 = vpop.f32.mrf.mxu0
    %v3330 = vadd.f32 0.0, %v3329
    %3331 = vmatmul.f32.gmra.mxu0 %v3220
    %v3332 = vpop.f32.mrf.mxu0
    %v3333 = vadd.f32 0.0, %v3332
    %3334 = vmatmul.f32.gmra.mxu0 %v3223
    %v3335 = vpop.f32.mrf.mxu0
    %v3336 = vadd.f32 0.0, %v3335
    %3337 = vmatmul.f32.gmra.mxu0 %v3226
    %v3338 = vpop.f32.mrf.mxu0
    %v3339 = vadd.f32 0.0, %v3338
    %3340 = vmatmul.f32.gmra.mxu0 %v3229
    %v3341 = vpop.f32.mrf.mxu0
    %v3342 = vadd.f32 0.0, %v3341
    %3343 = vmatmul.f32.gmra.mxu0 %v3232
    %v3344 = vpop.f32.mrf.mxu0
    %v3345 = vadd.f32 0.0, %v3344
    %3346 = vmatmul.f32.gmra.mxu0 %v3235
    %v3347 = vpop.f32.mrf.mxu0
    %v3348 = vadd.f32 0.0, %v3347
    %3349 = vmatmul.f32.gmra.mxu0 %v3238
    %v3350 = vpop.f32.mrf.mxu0
    %v3351 = vadd.f32 0.0, %v3350
    %3352 = vmatmul.f32.gmra.mxu0 %v3241
    %v3353 = vpop.f32.mrf.mxu0
    %v3354 = vadd.f32 0.0, %v3353
    %3355 = vmatmul.f32.gmra.mxu0 %v3244
    %v3356 = vpop.f32.mrf.mxu0
    %v3357 = vadd.f32 0.0, %v3356
    %3358 = vmatmul.f32.gmra.mxu0 %v3247
    %v3359 = vpop.f32.mrf.mxu0
    %v3360 = vadd.f32 0.0, %v3359
    %3361 = vmatmul.f32.gmra.mxu0 %v3250
    %v3362 = vpop.f32.mrf.mxu0
    %v3363 = vadd.f32 0.0, %v3362
    %3364 = vmatmul.f32.gmra.mxu0 %v3253
    %v3365 = vpop.f32.mrf.mxu0
    %v3366 = vadd.f32 0.0, %v3365
    %3367 = vmatmul.f32.gmra.mxu0 %v3256
    %v3368 = vpop.f32.mrf.mxu0
    %v3369 = vadd.f32 0.0, %v3368
    %3370 = vmatmul.f32.gmra.mxu0 %v3259
    %v3371 = vpop.f32.mrf.mxu0
    %v3372 = vadd.f32 0.0, %v3371
    %3373 = vmatmul.f32.gmra.mxu0 %v3262
    %v3374 = vpop.f32.mrf.mxu0
    %v3375 = vadd.f32 0.0, %v3374
    %3376 = vmatmul.f32.gmra.mxu0 %v3265
    %v3377 = vpop.f32.mrf.mxu0
    %v3378 = vadd.f32 0.0, %v3377
    %3379 = vmatmul.f32.gmra.mxu0 %v3268
    %v3380 = vpop.f32.mrf.mxu0
    %v3381 = vadd.f32 0.0, %v3380
    %3382 = vmatmul.f32.gmra.mxu0 %v3271
    %v3383 = vpop.f32.mrf.mxu0
    %v3384 = vadd.f32 0.0, %v3383
    %3385 = vmatmul.f32.gmra.mxu0 %v3274
    %v3386 = vpop.f32.mrf.mxu0
    %v3387 = vadd.f32 0.0, %v3386
    %3388 = vmatmul.f32.gmra.mxu0 %v3277
    %v3389 = vpop.f32.mrf.mxu0
    %v3390 = vadd.f32 0.0, %v3389
    %3391 = vmatmul.f32.gmra.mxu0 %v3280
    %v3392 = vpop.f32.mrf.mxu0
    %v3393 = vadd.f32 0.0, %v3392
    %3394 = vdwg.mxu0
    %v3395 = vadd.f32 %v2219, %v3300
    %v3396 = vadd.f32 %v2222, %v3303
    %v3397 = vadd.f32 %v2225, %v3306
    %v3398 = vadd.f32 %v2228, %v3309
    %v3399 = vadd.f32 %v2231, %v3312
    %v3400 = vadd.f32 %v2234, %v3315
    %v3401 = vadd.f32 %v2237, %v3318
    %v3402 = vadd.f32 %v2240, %v3321
    %v3403 = vadd.f32 %v2243, %v3324
    %v3404 = vadd.f32 %v2246, %v3327
    %v3405 = vadd.f32 %v2249, %v3330
    %v3406 = vadd.f32 %v2252, %v3333
    %v3407 = vadd.f32 %v2255, %v3336
    %v3408 = vadd.f32 %v2258, %v3339
    %v3409 = vadd.f32 %v2261, %v3342
    %v3410 = vadd.f32 %v2264, %v3345
    %v3411 = vadd.f32 %v2267, %v3348
    %v3412 = vadd.f32 %v2270, %v3351
    %v3413 = vadd.f32 %v2273, %v3354
    %v3414 = vadd.f32 %v2276, %v3357
    %v3415 = vadd.f32 %v2279, %v3360
    %v3416 = vadd.f32 %v2282, %v3363
    %v3417 = vadd.f32 %v2285, %v3366
    %v3418 = vadd.f32 %v2288, %v3369
    %v3419 = vadd.f32 %v2291, %v3372
    %v3420 = vadd.f32 %v2294, %v3375
    %v3421 = vadd.f32 %v2297, %v3378
    %v3422 = vadd.f32 %v2300, %v3381
    %v3423 = vadd.f32 %v2303, %v3384
    %v3424 = vadd.f32 %v2306, %v3387
    %v3425 = vadd.f32 %v2309, %v3390
    %v3426 = vadd.f32 %v2312, %v3393
    %v3427 = vld [vmem:[%s3 + $0x300] sm:$0xff]
    %v3428 = vld [vmem:[%s3 + $0x308] sm:$0xff]
    %v3429 = vld [vmem:[%s3 + $0x310] sm:$0xff]
    %v3430 = vld [vmem:[%s3 + $0x318] sm:$0xff]
    %v3431 = vld [vmem:[%s3 + $0x320] sm:$0xff]
    %v3432 = vld [vmem:[%s3 + $0x328] sm:$0xff]
    %v3433 = vld [vmem:[%s3 + $0x330] sm:$0xff]
    %v3434 = vld [vmem:[%s3 + $0x338] sm:$0xff]
    %v3435 = vld [vmem:[%s3 + $0x340] sm:$0xff]
    %v3436 = vld [vmem:[%s3 + $0x348] sm:$0xff]
    %v3437 = vld [vmem:[%s3 + $0x350] sm:$0xff]
    %v3438 = vld [vmem:[%s3 + $0x358] sm:$0xff]
    %v3439 = vld [vmem:[%s3 + $0x360] sm:$0xff]
    %v3440 = vld [vmem:[%s3 + $0x368] sm:$0xff]
    %v3441 = vld [vmem:[%s3 + $0x370] sm:$0xff]
    %v3442 = vld [vmem:[%s3 + $0x378] sm:$0xff]
    %v3443 = vld [vmem:[%s3 + $0x380] sm:$0xff]
    %v3444 = vld [vmem:[%s3 + $0x388] sm:$0xff]
    %v3445 = vld [vmem:[%s3 + $0x390] sm:$0xff]
    %v3446 = vld [vmem:[%s3 + $0x398] sm:$0xff]
    %v3447 = vld [vmem:[%s3 + $0x3a0] sm:$0xff]
    %v3448 = vld [vmem:[%s3 + $0x3a8] sm:$0xff]
    %v3449 = vld [vmem:[%s3 + $0x3b0] sm:$0xff]
    %v3450 = vld [vmem:[%s3 + $0x3b8] sm:$0xff]
    %v3451 = vld [vmem:[%s3 + $0x3c0] sm:$0xff]
    %v3452 = vld [vmem:[%s3 + $0x3c8] sm:$0xff]
    %v3453 = vld [vmem:[%s3 + $0x3d0] sm:$0xff]
    %v3454 = vld [vmem:[%s3 + $0x3d8] sm:$0xff]
    %v3455 = vld [vmem:[%s3 + $0x3e0] sm:$0xff]
    %v3456 = vld [vmem:[%s3 + $0x3e8] sm:$0xff]
    %v3457 = vld [vmem:[%s3 + $0x3f0] sm:$0xff]
    %v3458 = vld [vmem:[%s3 + $0x3f8] sm:$0xff]
    %3460 = vset.pattern.permute.xlu0 0
    %3461 = vperm.xlu0 %3460, %v3427
    %v3462 = vpop.permute.xlu0 %3461
    %3465 = vset.pattern.permute.xlu0 0
    %3466 = vperm.xlu0 %3465, %v3428
    %v3467 = vpop.permute.xlu0 %3466
    %3470 = vset.pattern.permute.xlu0 0
    %3471 = vperm.xlu0 %3470, %v3429
    %v3472 = vpop.permute.xlu0 %3471
    %3475 = vset.pattern.permute.xlu0 0
    %3476 = vperm.xlu0 %3475, %v3430
    %v3477 = vpop.permute.xlu0 %3476
    %3480 = vset.pattern.permute.xlu0 0
    %3481 = vperm.xlu0 %3480, %v3431
    %v3482 = vpop.permute.xlu0 %3481
    %3485 = vset.pattern.permute.xlu0 0
    %3486 = vperm.xlu0 %3485, %v3432
    %v3487 = vpop.permute.xlu0 %3486
    %3490 = vset.pattern.permute.xlu0 0
    %3491 = vperm.xlu0 %3490, %v3433
    %v3492 = vpop.permute.xlu0 %3491
    %3495 = vset.pattern.permute.xlu0 0
    %3496 = vperm.xlu0 %3495, %v3434
    %v3497 = vpop.permute.xlu0 %3496
    %3500 = vset.pattern.permute.xlu0 0
    %3501 = vperm.xlu0 %3500, %v3435
    %v3502 = vpop.permute.xlu0 %3501
    %3505 = vset.pattern.permute.xlu0 0
    %3506 = vperm.xlu0 %3505, %v3436
    %v3507 = vpop.permute.xlu0 %3506
    %3510 = vset.pattern.permute.xlu0 0
    %3511 = vperm.xlu0 %3510, %v3437
    %v3512 = vpop.permute.xlu0 %3511
    %3515 = vset.pattern.permute.xlu0 0
    %3516 = vperm.xlu0 %3515, %v3438
    %v3517 = vpop.permute.xlu0 %3516
    %3520 = vset.pattern.permute.xlu0 0
    %3521 = vperm.xlu0 %3520, %v3439
    %v3522 = vpop.permute.xlu0 %3521
    %3525 = vset.pattern.permute.xlu0 0
    %3526 = vperm.xlu0 %3525, %v3440
    %v3527 = vpop.permute.xlu0 %3526
    %3530 = vset.pattern.permute.xlu0 0
    %3531 = vperm.xlu0 %3530, %v3441
    %v3532 = vpop.permute.xlu0 %3531
    %3535 = vset.pattern.permute.xlu0 0
    %3536 = vperm.xlu0 %3535, %v3442
    %v3537 = vpop.permute.xlu0 %3536
    %3540 = vset.pattern.permute.xlu0 0
    %3541 = vperm.xlu0 %3540, %v3443
    %v3542 = vpop.permute.xlu0 %3541
    %3545 = vset.pattern.permute.xlu0 0
    %3546 = vperm.xlu0 %3545, %v3444
    %v3547 = vpop.permute.xlu0 %3546
    %3550 = vset.pattern.permute.xlu0 0
    %3551 = vperm.xlu0 %3550, %v3445
    %v3552 = vpop.permute.xlu0 %3551
    %3555 = vset.pattern.permute.xlu0 0
    %3556 = vperm.xlu0 %3555, %v3446
    %v3557 = vpop.permute.xlu0 %3556
    %3560 = vset.pattern.permute.xlu0 0
    %3561 = vperm.xlu0 %3560, %v3447
    %v3562 = vpop.permute.xlu0 %3561
    %3565 = vset.pattern.permute.xlu0 0
    %3566 = vperm.xlu0 %3565, %v3448
    %v3567 = vpop.permute.xlu0 %3566
    %3570 = vset.pattern.permute.xlu0 0
    %3571 = vperm.xlu0 %3570, %v3449
    %v3572 = vpop.permute.xlu0 %3571
    %3575 = vset.pattern.permute.xlu0 0
    %3576 = vperm.xlu0 %3575, %v3450
    %v3577 = vpop.permute.xlu0 %3576
    %3580 = vset.pattern.permute.xlu0 0
    %3581 = vperm.xlu0 %3580, %v3451
    %v3582 = vpop.permute.xlu0 %3581
    %3585 = vset.pattern.permute.xlu0 0
    %3586 = vperm.xlu0 %3585, %v3452
    %v3587 = vpop.permute.xlu0 %3586
    %3590 = vset.pattern.permute.xlu0 0
    %3591 = vperm.xlu0 %3590, %v3453
    %v3592 = vpop.permute.xlu0 %3591
    %3595 = vset.pattern.permute.xlu0 0
    %3596 = vperm.xlu0 %3595, %v3454
    %v3597 = vpop.permute.xlu0 %3596
    %3600 = vset.pattern.permute.xlu0 0
    %3601 = vperm.xlu0 %3600, %v3455
    %v3602 = vpop.permute.xlu0 %3601
    %3605 = vset.pattern.permute.xlu0 0
    %3606 = vperm.xlu0 %3605, %v3456
    %v3607 = vpop.permute.xlu0 %3606
    %3610 = vset.pattern.permute.xlu0 0
    %3611 = vperm.xlu0 %3610, %v3457
    %v3612 = vpop.permute.xlu0 %3611
    %3615 = vset.pattern.permute.xlu0 0
    %3616 = vperm.xlu0 %3615, %v3458
    %v3617 = vpop.permute.xlu0 %3616
    %v3619 = vmul.f32 %v3462, %v336
    %v3620 = vmul.f32 %v3467, %v336
    %v3621 = vmul.f32 %v3472, %v336
    %v3622 = vmul.f32 %v3477, %v336
    %v3623 = vmul.f32 %v3482, %v336
    %v3624 = vmul.f32 %v3487, %v336
    %v3625 = vmul.f32 %v3492, %v336
    %v3626 = vmul.f32 %v3497, %v336
    %v3627 = vmul.f32 %v3502, %v336
    %v3628 = vmul.f32 %v3507, %v336
    %v3629 = vmul.f32 %v3512, %v336
    %v3630 = vmul.f32 %v3517, %v336
    %v3631 = vmul.f32 %v3522, %v336
    %v3632 = vmul.f32 %v3527, %v336
    %v3633 = vmul.f32 %v3532, %v336
    %v3634 = vmul.f32 %v3537, %v336
    %v3635 = vmul.f32 %v3542, %v336
    %v3636 = vmul.f32 %v3547, %v336
    %v3637 = vmul.f32 %v3552, %v336
    %v3638 = vmul.f32 %v3557, %v336
    %v3639 = vmul.f32 %v3562, %v336
    %v3640 = vmul.f32 %v3567, %v336
    %v3641 = vmul.f32 %v3572, %v336
    %v3642 = vmul.f32 %v3577, %v336
    %v3643 = vmul.f32 %v3582, %v336
    %v3644 = vmul.f32 %v3587, %v336
    %v3645 = vmul.f32 %v3592, %v336
    %v3646 = vmul.f32 %v3597, %v336
    %v3647 = vmul.f32 %v3602, %v336
    %v3648 = vmul.f32 %v3607, %v336
    %v3649 = vmul.f32 %v3612, %v336
    %v3650 = vmul.f32 %v3617, %v336
    %3651 = vset.pattern.permute.xlu0 1
    %3652 = vperm.xlu0 %3651, %v3427
    %v3653 = vpop.permute.xlu0 %3652
    %3655 = vset.pattern.permute.xlu0 1
    %3656 = vperm.xlu0 %3655, %v3428
    %v3657 = vpop.permute.xlu0 %3656
    %3659 = vset.pattern.permute.xlu0 1
    %3660 = vperm.xlu0 %3659, %v3429
    %v3661 = vpop.permute.xlu0 %3660
    %3663 = vset.pattern.permute.xlu0 1
    %3664 = vperm.xlu0 %3663, %v3430
    %v3665 = vpop.permute.xlu0 %3664
    %3667 = vset.pattern.permute.xlu0 1
    %3668 = vperm.xlu0 %3667, %v3431
    %v3669 = vpop.permute.xlu0 %3668
    %3671 = vset.pattern.permute.xlu0 1
    %3672 = vperm.xlu0 %3671, %v3432
    %v3673 = vpop.permute.xlu0 %3672
    %3675 = vset.pattern.permute.xlu0 1
    %3676 = vperm.xlu0 %3675, %v3433
    %v3677 = vpop.permute.xlu0 %3676
    %3679 = vset.pattern.permute.xlu0 1
    %3680 = vperm.xlu0 %3679, %v3434
    %v3681 = vpop.permute.xlu0 %3680
    %3683 = vset.pattern.permute.xlu0 1
    %3684 = vperm.xlu0 %3683, %v3435
    %v3685 = vpop.permute.xlu0 %3684
    %3687 = vset.pattern.permute.xlu0 1
    %3688 = vperm.xlu0 %3687, %v3436
    %v3689 = vpop.permute.xlu0 %3688
    %3691 = vset.pattern.permute.xlu0 1
    %3692 = vperm.xlu0 %3691, %v3437
    %v3693 = vpop.permute.xlu0 %3692
    %3695 = vset.pattern.permute.xlu0 1
    %3696 = vperm.xlu0 %3695, %v3438
    %v3697 = vpop.permute.xlu0 %3696
    %3699 = vset.pattern.permute.xlu0 1
    %3700 = vperm.xlu0 %3699, %v3439
    %v3701 = vpop.permute.xlu0 %3700
    %3703 = vset.pattern.permute.xlu0 1
    %3704 = vperm.xlu0 %3703, %v3440
    %v3705 = vpop.permute.xlu0 %3704
    %3707 = vset.pattern.permute.xlu0 1
    %3708 = vperm.xlu0 %3707, %v3441
    %v3709 = vpop.permute.xlu0 %3708
    %3711 = vset.pattern.permute.xlu0 1
    %3712 = vperm.xlu0 %3711, %v3442
    %v3713 = vpop.permute.xlu0 %3712
    %3715 = vset.pattern.permute.xlu0 1
    %3716 = vperm.xlu0 %3715, %v3443
    %v3717 = vpop.permute.xlu0 %3716
    %3719 = vset.pattern.permute.xlu0 1
    %3720 = vperm.xlu0 %3719, %v3444
    %v3721 = vpop.permute.xlu0 %3720
    %3723 = vset.pattern.permute.xlu0 1
    %3724 = vperm.xlu0 %3723, %v3445
    %v3725 = vpop.permute.xlu0 %3724
    %3727 = vset.pattern.permute.xlu0 1
    %3728 = vperm.xlu0 %3727, %v3446
    %v3729 = vpop.permute.xlu0 %3728
    %3731 = vset.pattern.permute.xlu0 1
    %3732 = vperm.xlu0 %3731, %v3447
    %v3733 = vpop.permute.xlu0 %3732
    %3735 = vset.pattern.permute.xlu0 1
    %3736 = vperm.xlu0 %3735, %v3448
    %v3737 = vpop.permute.xlu0 %3736
    %3739 = vset.pattern.permute.xlu0 1
    %3740 = vperm.xlu0 %3739, %v3449
    %v3741 = vpop.permute.xlu0 %3740
    %3743 = vset.pattern.permute.xlu0 1
    %3744 = vperm.xlu0 %3743, %v3450
    %v3745 = vpop.permute.xlu0 %3744
    %3747 = vset.pattern.permute.xlu0 1
    %3748 = vperm.xlu0 %3747, %v3451
    %v3749 = vpop.permute.xlu0 %3748
    %3751 = vset.pattern.permute.xlu0 1
    %3752 = vperm.xlu0 %3751, %v3452
    %v3753 = vpop.permute.xlu0 %3752
    %3755 = vset.pattern.permute.xlu0 1
    %3756 = vperm.xlu0 %3755, %v3453
    %v3757 = vpop.permute.xlu0 %3756
    %3759 = vset.pattern.permute.xlu0 1
    %3760 = vperm.xlu0 %3759, %v3454
    %v3761 = vpop.permute.xlu0 %3760
    %3763 = vset.pattern.permute.xlu0 1
    %3764 = vperm.xlu0 %3763, %v3455
    %v3765 = vpop.permute.xlu0 %3764
    %3767 = vset.pattern.permute.xlu0 1
    %3768 = vperm.xlu0 %3767, %v3456
    %v3769 = vpop.permute.xlu0 %3768
    %3771 = vset.pattern.permute.xlu0 1
    %3772 = vperm.xlu0 %3771, %v3457
    %v3773 = vpop.permute.xlu0 %3772
    %3775 = vset.pattern.permute.xlu0 1
    %3776 = vperm.xlu0 %3775, %v3458
    %v3777 = vpop.permute.xlu0 %3776
    %v3779 = vmul.f32 %v3653, %v497
    %v3780 = vmul.f32 %v3657, %v497
    %v3781 = vmul.f32 %v3661, %v497
    %v3782 = vmul.f32 %v3665, %v497
    %v3783 = vmul.f32 %v3669, %v497
    %v3784 = vmul.f32 %v3673, %v497
    %v3785 = vmul.f32 %v3677, %v497
    %v3786 = vmul.f32 %v3681, %v497
    %v3787 = vmul.f32 %v3685, %v497
    %v3788 = vmul.f32 %v3689, %v497
    %v3789 = vmul.f32 %v3693, %v497
    %v3790 = vmul.f32 %v3697, %v497
    %v3791 = vmul.f32 %v3701, %v497
    %v3792 = vmul.f32 %v3705, %v497
    %v3793 = vmul.f32 %v3709, %v497
    %v3794 = vmul.f32 %v3713, %v497
    %v3795 = vmul.f32 %v3717, %v497
    %v3796 = vmul.f32 %v3721, %v497
    %v3797 = vmul.f32 %v3725, %v497
    %v3798 = vmul.f32 %v3729, %v497
    %v3799 = vmul.f32 %v3733, %v497
    %v3800 = vmul.f32 %v3737, %v497
    %v3801 = vmul.f32 %v3741, %v497
    %v3802 = vmul.f32 %v3745, %v497
    %v3803 = vmul.f32 %v3749, %v497
    %v3804 = vmul.f32 %v3753, %v497
    %v3805 = vmul.f32 %v3757, %v497
    %v3806 = vmul.f32 %v3761, %v497
    %v3807 = vmul.f32 %v3765, %v497
    %v3808 = vmul.f32 %v3769, %v497
    %v3809 = vmul.f32 %v3773, %v497
    %v3810 = vmul.f32 %v3777, %v497
    %v3811 = vadd.f32 %v3619, %v3779
    %v3812 = vadd.f32 %v3620, %v3780
    %v3813 = vadd.f32 %v3621, %v3781
    %v3814 = vadd.f32 %v3622, %v3782
    %v3815 = vadd.f32 %v3623, %v3783
    %v3816 = vadd.f32 %v3624, %v3784
    %v3817 = vadd.f32 %v3625, %v3785
    %v3818 = vadd.f32 %v3626, %v3786
    %v3819 = vadd.f32 %v3627, %v3787
    %v3820 = vadd.f32 %v3628, %v3788
    %v3821 = vadd.f32 %v3629, %v3789
    %v3822 = vadd.f32 %v3630, %v3790
    %v3823 = vadd.f32 %v3631, %v3791
    %v3824 = vadd.f32 %v3632, %v3792
    %v3825 = vadd.f32 %v3633, %v3793
    %v3826 = vadd.f32 %v3634, %v3794
    %v3827 = vadd.f32 %v3635, %v3795
    %v3828 = vadd.f32 %v3636, %v3796
    %v3829 = vadd.f32 %v3637, %v3797
    %v3830 = vadd.f32 %v3638, %v3798
    %v3831 = vadd.f32 %v3639, %v3799
    %v3832 = vadd.f32 %v3640, %v3800
    %v3833 = vadd.f32 %v3641, %v3801
    %v3834 = vadd.f32 %v3642, %v3802
    %v3835 = vadd.f32 %v3643, %v3803
    %v3836 = vadd.f32 %v3644, %v3804
    %v3837 = vadd.f32 %v3645, %v3805
    %v3838 = vadd.f32 %v3646, %v3806
    %v3839 = vadd.f32 %v3647, %v3807
    %v3840 = vadd.f32 %v3648, %v3808
    %v3841 = vadd.f32 %v3649, %v3809
    %v3842 = vadd.f32 %v3650, %v3810
    %3843 = vset.pattern.permute.xlu0 2
    %3844 = vperm.xlu0 %3843, %v3427
    %v3845 = vpop.permute.xlu0 %3844
    %3847 = vset.pattern.permute.xlu0 2
    %3848 = vperm.xlu0 %3847, %v3428
    %v3849 = vpop.permute.xlu0 %3848
    %3851 = vset.pattern.permute.xlu0 2
    %3852 = vperm.xlu0 %3851, %v3429
    %v3853 = vpop.permute.xlu0 %3852
    %3855 = vset.pattern.permute.xlu0 2
    %3856 = vperm.xlu0 %3855, %v3430
    %v3857 = vpop.permute.xlu0 %3856
    %3859 = vset.pattern.permute.xlu0 2
    %3860 = vperm.xlu0 %3859, %v3431
    %v3861 = vpop.permute.xlu0 %3860
    %3863 = vset.pattern.permute.xlu0 2
    %3864 = vperm.xlu0 %3863, %v3432
    %v3865 = vpop.permute.xlu0 %3864
    %3867 = vset.pattern.permute.xlu0 2
    %3868 = vperm.xlu0 %3867, %v3433
    %v3869 = vpop.permute.xlu0 %3868
    %3871 = vset.pattern.permute.xlu0 2
    %3872 = vperm.xlu0 %3871, %v3434
    %v3873 = vpop.permute.xlu0 %3872
    %3875 = vset.pattern.permute.xlu0 2
    %3876 = vperm.xlu0 %3875, %v3435
    %v3877 = vpop.permute.xlu0 %3876
    %3879 = vset.pattern.permute.xlu0 2
    %3880 = vperm.xlu0 %3879, %v3436
    %v3881 = vpop.permute.xlu0 %3880
    %3883 = vset.pattern.permute.xlu0 2
    %3884 = vperm.xlu0 %3883, %v3437
    %v3885 = vpop.permute.xlu0 %3884
    %3887 = vset.pattern.permute.xlu0 2
    %3888 = vperm.xlu0 %3887, %v3438
    %v3889 = vpop.permute.xlu0 %3888
    %3891 = vset.pattern.permute.xlu0 2
    %3892 = vperm.xlu0 %3891, %v3439
    %v3893 = vpop.permute.xlu0 %3892
    %3895 = vset.pattern.permute.xlu0 2
    %3896 = vperm.xlu0 %3895, %v3440
    %v3897 = vpop.permute.xlu0 %3896
    %3899 = vset.pattern.permute.xlu0 2
    %3900 = vperm.xlu0 %3899, %v3441
    %v3901 = vpop.permute.xlu0 %3900
    %3903 = vset.pattern.permute.xlu0 2
    %3904 = vperm.xlu0 %3903, %v3442
    %v3905 = vpop.permute.xlu0 %3904
    %3907 = vset.pattern.permute.xlu0 2
    %3908 = vperm.xlu0 %3907, %v3443
    %v3909 = vpop.permute.xlu0 %3908
    %3911 = vset.pattern.permute.xlu0 2
    %3912 = vperm.xlu0 %3911, %v3444
    %v3913 = vpop.permute.xlu0 %3912
    %3915 = vset.pattern.permute.xlu0 2
    %3916 = vperm.xlu0 %3915, %v3445
    %v3917 = vpop.permute.xlu0 %3916
    %3919 = vset.pattern.permute.xlu0 2
    %3920 = vperm.xlu0 %3919, %v3446
    %v3921 = vpop.permute.xlu0 %3920
    %3923 = vset.pattern.permute.xlu0 2
    %3924 = vperm.xlu0 %3923, %v3447
    %v3925 = vpop.permute.xlu0 %3924
    %3927 = vset.pattern.permute.xlu0 2
    %3928 = vperm.xlu0 %3927, %v3448
    %v3929 = vpop.permute.xlu0 %3928
    %3931 = vset.pattern.permute.xlu0 2
    %3932 = vperm.xlu0 %3931, %v3449
    %v3933 = vpop.permute.xlu0 %3932
    %3935 = vset.pattern.permute.xlu0 2
    %3936 = vperm.xlu0 %3935, %v3450
    %v3937 = vpop.permute.xlu0 %3936
    %3939 = vset.pattern.permute.xlu0 2
    %3940 = vperm.xlu0 %3939, %v3451
    %v3941 = vpop.permute.xlu0 %3940
    %3943 = vset.pattern.permute.xlu0 2
    %3944 = vperm.xlu0 %3943, %v3452
    %v3945 = vpop.permute.xlu0 %3944
    %3947 = vset.pattern.permute.xlu0 2
    %3948 = vperm.xlu0 %3947, %v3453
    %v3949 = vpop.permute.xlu0 %3948
    %3951 = vset.pattern.permute.xlu0 2
    %3952 = vperm.xlu0 %3951, %v3454
    %v3953 = vpop.permute.xlu0 %3952
    %3955 = vset.pattern.permute.xlu0 2
    %3956 = vperm.xlu0 %3955, %v3455
    %v3957 = vpop.permute.xlu0 %3956
    %3959 = vset.pattern.permute.xlu0 2
    %3960 = vperm.xlu0 %3959, %v3456
    %v3961 = vpop.permute.xlu0 %3960
    %3963 = vset.pattern.permute.xlu0 2
    %3964 = vperm.xlu0 %3963, %v3457
    %v3965 = vpop.permute.xlu0 %3964
    %3967 = vset.pattern.permute.xlu0 2
    %3968 = vperm.xlu0 %3967, %v3458
    %v3969 = vpop.permute.xlu0 %3968
    %v3971 = vmul.f32 %v3845, %v690
    %v3972 = vmul.f32 %v3849, %v690
    %v3973 = vmul.f32 %v3853, %v690
    %v3974 = vmul.f32 %v3857, %v690
    %v3975 = vmul.f32 %v3861, %v690
    %v3976 = vmul.f32 %v3865, %v690
    %v3977 = vmul.f32 %v3869, %v690
    %v3978 = vmul.f32 %v3873, %v690
    %v3979 = vmul.f32 %v3877, %v690
    %v3980 = vmul.f32 %v3881, %v690
    %v3981 = vmul.f32 %v3885, %v690
    %v3982 = vmul.f32 %v3889, %v690
    %v3983 = vmul.f32 %v3893, %v690
    %v3984 = vmul.f32 %v3897, %v690
    %v3985 = vmul.f32 %v3901, %v690
    %v3986 = vmul.f32 %v3905, %v690
    %v3987 = vmul.f32 %v3909, %v690
    %v3988 = vmul.f32 %v3913, %v690
    %v3989 = vmul.f32 %v3917, %v690
    %v3990 = vmul.f32 %v3921, %v690
    %v3991 = vmul.f32 %v3925, %v690
    %v3992 = vmul.f32 %v3929, %v690
    %v3993 = vmul.f32 %v3933, %v690
    %v3994 = vmul.f32 %v3937, %v690
    %v3995 = vmul.f32 %v3941, %v690
    %v3996 = vmul.f32 %v3945, %v690
    %v3997 = vmul.f32 %v3949, %v690
    %v3998 = vmul.f32 %v3953, %v690
    %v3999 = vmul.f32 %v3957, %v690
    %v4000 = vmul.f32 %v3961, %v690
    %v4001 = vmul.f32 %v3965, %v690
    %v4002 = vmul.f32 %v3969, %v690
    %v4003 = vadd.f32 %v3811, %v3971
    %v4004 = vadd.f32 %v3812, %v3972
    %v4005 = vadd.f32 %v3813, %v3973
    %v4006 = vadd.f32 %v3814, %v3974
    %v4007 = vadd.f32 %v3815, %v3975
    %v4008 = vadd.f32 %v3816, %v3976
    %v4009 = vadd.f32 %v3817, %v3977
    %v4010 = vadd.f32 %v3818, %v3978
    %v4011 = vadd.f32 %v3819, %v3979
    %v4012 = vadd.f32 %v3820, %v3980
    %v4013 = vadd.f32 %v3821, %v3981
    %v4014 = vadd.f32 %v3822, %v3982
    %v4015 = vadd.f32 %v3823, %v3983
    %v4016 = vadd.f32 %v3824, %v3984
    %v4017 = vadd.f32 %v3825, %v3985
    %v4018 = vadd.f32 %v3826, %v3986
    %v4019 = vadd.f32 %v3827, %v3987
    %v4020 = vadd.f32 %v3828, %v3988
    %v4021 = vadd.f32 %v3829, %v3989
    %v4022 = vadd.f32 %v3830, %v3990
    %v4023 = vadd.f32 %v3831, %v3991
    %v4024 = vadd.f32 %v3832, %v3992
    %v4025 = vadd.f32 %v3833, %v3993
    %v4026 = vadd.f32 %v3834, %v3994
    %v4027 = vadd.f32 %v3835, %v3995
    %v4028 = vadd.f32 %v3836, %v3996
    %v4029 = vadd.f32 %v3837, %v3997
    %v4030 = vadd.f32 %v3838, %v3998
    %v4031 = vadd.f32 %v3839, %v3999
    %v4032 = vadd.f32 %v3840, %v4000
    %v4033 = vadd.f32 %v3841, %v4001
    %v4034 = vadd.f32 %v3842, %v4002
    %4035 = vset.pattern.permute.xlu0 3
    %4036 = vperm.xlu0 %4035, %v3427
    %v4037 = vpop.permute.xlu0 %4036
    %4039 = vset.pattern.permute.xlu0 3
    %4040 = vperm.xlu0 %4039, %v3428
    %v4041 = vpop.permute.xlu0 %4040
    %4043 = vset.pattern.permute.xlu0 3
    %4044 = vperm.xlu0 %4043, %v3429
    %v4045 = vpop.permute.xlu0 %4044
    %4047 = vset.pattern.permute.xlu0 3
    %4048 = vperm.xlu0 %4047, %v3430
    %v4049 = vpop.permute.xlu0 %4048
    %4051 = vset.pattern.permute.xlu0 3
    %4052 = vperm.xlu0 %4051, %v3431
    %v4053 = vpop.permute.xlu0 %4052
    %4055 = vset.pattern.permute.xlu0 3
    %4056 = vperm.xlu0 %4055, %v3432
    %v4057 = vpop.permute.xlu0 %4056
    %4059 = vset.pattern.permute.xlu0 3
    %4060 = vperm.xlu0 %4059, %v3433
    %v4061 = vpop.permute.xlu0 %4060
    %4063 = vset.pattern.permute.xlu0 3
    %4064 = vperm.xlu0 %4063, %v3434
    %v4065 = vpop.permute.xlu0 %4064
    %4067 = vset.pattern.permute.xlu0 3
    %4068 = vperm.xlu0 %4067, %v3435
    %v4069 = vpop.permute.xlu0 %4068
    %4071 = vset.pattern.permute.xlu0 3
    %4072 = vperm.xlu0 %4071, %v3436
    %v4073 = vpop.permute.xlu0 %4072
    %4075 = vset.pattern.permute.xlu0 3
    %4076 = vperm.xlu0 %4075, %v3437
    %v4077 = vpop.permute.xlu0 %4076
    %4079 = vset.pattern.permute.xlu0 3
    %4080 = vperm.xlu0 %4079, %v3438
    %v4081 = vpop.permute.xlu0 %4080
    %4083 = vset.pattern.permute.xlu0 3
    %4084 = vperm.xlu0 %4083, %v3439
    %v4085 = vpop.permute.xlu0 %4084
    %4087 = vset.pattern.permute.xlu0 3
    %4088 = vperm.xlu0 %4087, %v3440
    %v4089 = vpop.permute.xlu0 %4088
    %4091 = vset.pattern.permute.xlu0 3
    %4092 = vperm.xlu0 %4091, %v3441
    %v4093 = vpop.permute.xlu0 %4092
    %4095 = vset.pattern.permute.xlu0 3
    %4096 = vperm.xlu0 %4095, %v3442
    %v4097 = vpop.permute.xlu0 %4096
    %4099 = vset.pattern.permute.xlu0 3
    %4100 = vperm.xlu0 %4099, %v3443
    %v4101 = vpop.permute.xlu0 %4100
    %4103 = vset.pattern.permute.xlu0 3
    %4104 = vperm.xlu0 %4103, %v3444
    %v4105 = vpop.permute.xlu0 %4104
    %4107 = vset.pattern.permute.xlu0 3
    %4108 = vperm.xlu0 %4107, %v3445
    %v4109 = vpop.permute.xlu0 %4108
    %4111 = vset.pattern.permute.xlu0 3
    %4112 = vperm.xlu0 %4111, %v3446
    %v4113 = vpop.permute.xlu0 %4112
    %4115 = vset.pattern.permute.xlu0 3
    %4116 = vperm.xlu0 %4115, %v3447
    %v4117 = vpop.permute.xlu0 %4116
    %4119 = vset.pattern.permute.xlu0 3
    %4120 = vperm.xlu0 %4119, %v3448
    %v4121 = vpop.permute.xlu0 %4120
    %4123 = vset.pattern.permute.xlu0 3
    %4124 = vperm.xlu0 %4123, %v3449
    %v4125 = vpop.permute.xlu0 %4124
    %4127 = vset.pattern.permute.xlu0 3
    %4128 = vperm.xlu0 %4127, %v3450
    %v4129 = vpop.permute.xlu0 %4128
    %4131 = vset.pattern.permute.xlu0 3
    %4132 = vperm.xlu0 %4131, %v3451
    %v4133 = vpop.permute.xlu0 %4132
    %4135 = vset.pattern.permute.xlu0 3
    %4136 = vperm.xlu0 %4135, %v3452
    %v4137 = vpop.permute.xlu0 %4136
    %4139 = vset.pattern.permute.xlu0 3
    %4140 = vperm.xlu0 %4139, %v3453
    %v4141 = vpop.permute.xlu0 %4140
    %4143 = vset.pattern.permute.xlu0 3
    %4144 = vperm.xlu0 %4143, %v3454
    %v4145 = vpop.permute.xlu0 %4144
    %4147 = vset.pattern.permute.xlu0 3
    %4148 = vperm.xlu0 %4147, %v3455
    %v4149 = vpop.permute.xlu0 %4148
    %4151 = vset.pattern.permute.xlu0 3
    %4152 = vperm.xlu0 %4151, %v3456
    %v4153 = vpop.permute.xlu0 %4152
    %4155 = vset.pattern.permute.xlu0 3
    %4156 = vperm.xlu0 %4155, %v3457
    %v4157 = vpop.permute.xlu0 %4156
    %4159 = vset.pattern.permute.xlu0 3
    %4160 = vperm.xlu0 %4159, %v3458
    %v4161 = vpop.permute.xlu0 %4160
    %v4163 = vmul.f32 %v4037, %v883
    %v4164 = vmul.f32 %v4041, %v883
    %v4165 = vmul.f32 %v4045, %v883
    %v4166 = vmul.f32 %v4049, %v883
    %v4167 = vmul.f32 %v4053, %v883
    %v4168 = vmul.f32 %v4057, %v883
    %v4169 = vmul.f32 %v4061, %v883
    %v4170 = vmul.f32 %v4065, %v883
    %v4171 = vmul.f32 %v4069, %v883
    %v4172 = vmul.f32 %v4073, %v883
    %v4173 = vmul.f32 %v4077, %v883
    %v4174 = vmul.f32 %v4081, %v883
    %v4175 = vmul.f32 %v4085, %v883
    %v4176 = vmul.f32 %v4089, %v883
    %v4177 = vmul.f32 %v4093, %v883
    %v4178 = vmul.f32 %v4097, %v883
    %v4179 = vmul.f32 %v4101, %v883
    %v4180 = vmul.f32 %v4105, %v883
    %v4181 = vmul.f32 %v4109, %v883
    %v4182 = vmul.f32 %v4113, %v883
    %v4183 = vmul.f32 %v4117, %v883
    %v4184 = vmul.f32 %v4121, %v883
    %v4185 = vmul.f32 %v4125, %v883
    %v4186 = vmul.f32 %v4129, %v883
    %v4187 = vmul.f32 %v4133, %v883
    %v4188 = vmul.f32 %v4137, %v883
    %v4189 = vmul.f32 %v4141, %v883
    %v4190 = vmul.f32 %v4145, %v883
    %v4191 = vmul.f32 %v4149, %v883
    %v4192 = vmul.f32 %v4153, %v883
    %v4193 = vmul.f32 %v4157, %v883
    %v4194 = vmul.f32 %v4161, %v883
    %v4195 = vadd.f32 %v4003, %v4163
    %v4196 = vadd.f32 %v4004, %v4164
    %v4197 = vadd.f32 %v4005, %v4165
    %v4198 = vadd.f32 %v4006, %v4166
    %v4199 = vadd.f32 %v4007, %v4167
    %v4200 = vadd.f32 %v4008, %v4168
    %v4201 = vadd.f32 %v4009, %v4169
    %v4202 = vadd.f32 %v4010, %v4170
    %v4203 = vadd.f32 %v4011, %v4171
    %v4204 = vadd.f32 %v4012, %v4172
    %v4205 = vadd.f32 %v4013, %v4173
    %v4206 = vadd.f32 %v4014, %v4174
    %v4207 = vadd.f32 %v4015, %v4175
    %v4208 = vadd.f32 %v4016, %v4176
    %v4209 = vadd.f32 %v4017, %v4177
    %v4210 = vadd.f32 %v4018, %v4178
    %v4211 = vadd.f32 %v4019, %v4179
    %v4212 = vadd.f32 %v4020, %v4180
    %v4213 = vadd.f32 %v4021, %v4181
    %v4214 = vadd.f32 %v4022, %v4182
    %v4215 = vadd.f32 %v4023, %v4183
    %v4216 = vadd.f32 %v4024, %v4184
    %v4217 = vadd.f32 %v4025, %v4185
    %v4218 = vadd.f32 %v4026, %v4186
    %v4219 = vadd.f32 %v4027, %v4187
    %v4220 = vadd.f32 %v4028, %v4188
    %v4221 = vadd.f32 %v4029, %v4189
    %v4222 = vadd.f32 %v4030, %v4190
    %v4223 = vadd.f32 %v4031, %v4191
    %v4224 = vadd.f32 %v4032, %v4192
    %v4225 = vadd.f32 %v4033, %v4193
    %v4226 = vadd.f32 %v4034, %v4194
    %v4227 = vadd.f32 %v4195, %v949
    %v4228 = vadd.f32 %v4196, %v949
    %v4229 = vadd.f32 %v4197, %v949
    %v4230 = vadd.f32 %v4198, %v949
    %v4231 = vadd.f32 %v4199, %v949
    %v4232 = vadd.f32 %v4200, %v949
    %v4233 = vadd.f32 %v4201, %v949
    %v4234 = vadd.f32 %v4202, %v949
    %v4235 = vadd.f32 %v4203, %v949
    %v4236 = vadd.f32 %v4204, %v949
    %v4237 = vadd.f32 %v4205, %v949
    %v4238 = vadd.f32 %v4206, %v949
    %v4239 = vadd.f32 %v4207, %v949
    %v4240 = vadd.f32 %v4208, %v949
    %v4241 = vadd.f32 %v4209, %v949
    %v4242 = vadd.f32 %v4210, %v949
    %v4243 = vadd.f32 %v4211, %v949
    %v4244 = vadd.f32 %v4212, %v949
    %v4245 = vadd.f32 %v4213, %v949
    %v4246 = vadd.f32 %v4214, %v949
    %v4247 = vadd.f32 %v4215, %v949
    %v4248 = vadd.f32 %v4216, %v949
    %v4249 = vadd.f32 %v4217, %v949
    %v4250 = vadd.f32 %v4218, %v949
    %v4251 = vadd.f32 %v4219, %v949
    %v4252 = vadd.f32 %v4220, %v949
    %v4253 = vadd.f32 %v4221, %v949
    %v4254 = vadd.f32 %v4222, %v949
    %v4255 = vadd.f32 %v4223, %v949
    %v4256 = vadd.f32 %v4224, %v949
    %v4257 = vadd.f32 %v4225, %v949
    %v4258 = vadd.f32 %v4226, %v949
    %v4259 = vmax.f32 %v4227, 0.0
    %v4260 = vmax.f32 %v4228, 0.0
    %v4261 = vmax.f32 %v4229, 0.0
    %v4262 = vmax.f32 %v4230, 0.0
    %v4263 = vmax.f32 %v4231, 0.0
    %v4264 = vmax.f32 %v4232, 0.0
    %v4265 = vmax.f32 %v4233, 0.0
    %v4266 = vmax.f32 %v4234, 0.0
    %v4267 = vmax.f32 %v4235, 0.0
    %v4268 = vmax.f32 %v4236, 0.0
    %v4269 = vmax.f32 %v4237, 0.0
    %v4270 = vmax.f32 %v4238, 0.0
    %v4271 = vmax.f32 %v4239, 0.0
    %v4272 = vmax.f32 %v4240, 0.0
    %v4273 = vmax.f32 %v4241, 0.0
    %v4274 = vmax.f32 %v4242, 0.0
    %v4275 = vmax.f32 %v4243, 0.0
    %v4276 = vmax.f32 %v4244, 0.0
    %v4277 = vmax.f32 %v4245, 0.0
    %v4278 = vmax.f32 %v4246, 0.0
    %v4279 = vmax.f32 %v4247, 0.0
    %v4280 = vmax.f32 %v4248, 0.0
    %v4281 = vmax.f32 %v4249, 0.0
    %v4282 = vmax.f32 %v4250, 0.0
    %v4283 = vmax.f32 %v4251, 0.0
    %v4284 = vmax.f32 %v4252, 0.0
    %v4285 = vmax.f32 %v4253, 0.0
    %v4286 = vmax.f32 %v4254, 0.0
    %v4287 = vmax.f32 %v4255, 0.0
    %v4288 = vmax.f32 %v4256, 0.0
    %v4289 = vmax.f32 %v4257, 0.0
    %v4290 = vmax.f32 %v4258, 0.0
    %v4291 = vld [vmem:[%s9 + $0xc0] sm:$0xff]
    %v4292 = vld [vmem:[%s9 + $0xc8] sm:$0xff]
    %v4293 = vld [vmem:[%s9 + $0xd0] sm:$0xff]
    %v4294 = vld [vmem:[%s9 + $0xd8] sm:$0xff]
    %v4295 = vld [vmem:[%s9 + $0xe0] sm:$0xff]
    %v4296 = vld [vmem:[%s9 + $0xe8] sm:$0xff]
    %v4297 = vld [vmem:[%s9 + $0xf0] sm:$0xff]
    %v4298 = vld [vmem:[%s9 + $0xf8] sm:$0xff]
    %v4300 = vsel %vm1895, %v4259, 0
    %v4303 = vsel %vm1895, %v4260, 0
    %v4306 = vsel %vm1895, %v4261, 0
    %v4309 = vsel %vm1895, %v4262, 0
    %v4312 = vsel %vm1895, %v4263, 0
    %v4315 = vsel %vm1895, %v4264, 0
    %v4318 = vsel %vm1895, %v4265, 0
    %v4321 = vsel %vm1895, %v4266, 0
    %v4324 = vsel %vm1895, %v4267, 0
    %v4327 = vsel %vm1895, %v4268, 0
    %v4330 = vsel %vm1895, %v4269, 0
    %v4333 = vsel %vm1895, %v4270, 0
    %v4336 = vsel %vm1895, %v4271, 0
    %v4339 = vsel %vm1895, %v4272, 0
    %v4342 = vsel %vm1895, %v4273, 0
    %v4345 = vsel %vm1895, %v4274, 0
    %v4348 = vsel %vm1895, %v4275, 0
    %v4351 = vsel %vm1895, %v4276, 0
    %v4354 = vsel %vm1895, %v4277, 0
    %v4357 = vsel %vm1895, %v4278, 0
    %v4360 = vsel %vm1895, %v4279, 0
    %v4363 = vsel %vm1895, %v4280, 0
    %v4366 = vsel %vm1895, %v4281, 0
    %v4369 = vsel %vm1895, %v4282, 0
    %v4372 = vsel %vm1895, %v4283, 0
    %v4375 = vsel %vm1895, %v4284, 0
    %v4378 = vsel %vm1895, %v4285, 0
    %v4381 = vsel %vm1895, %v4286, 0
    %v4384 = vsel %vm1895, %v4287, 0
    %v4387 = vsel %vm1895, %v4288, 0
    %v4390 = vsel %vm1895, %v4289, 0
    %v4393 = vsel %vm1895, %v4290, 0
    %4395 = vmatpush.msra.mxu0 0.0
    %4396 = vmatpush.msra.mxu0 0.0
    %4397 = vmatpush.msra.mxu0 0.0
    %4398 = vmatpush.msra.mxu0 0.0
    %4399 = vmatpush.msra.mxu0 0.0
    %4400 = vmatpush.msra.mxu0 0.0
    %4401 = vmatpush.msra.mxu0 0.0
    %4402 = vmatpush.msra.mxu0 0.0
    %4403 = vmatpush.msra.mxu0 %v4298
    %4404 = vmatpush.msra.mxu0 %v4297
    %4405 = vmatpush.msra.mxu0 %v4296
    %4406 = vmatpush.msra.mxu0 %v4295
    %4407 = vmatpush.msra.mxu0 %v4294
    %4408 = vmatpush.msra.mxu0 %v4293
    %4409 = vmatpush.msra.mxu0 %v4292
    %4410 = vmatpush.msra.mxu0 %v4291
    %4411 = vmatmul.f32.gmra.mxu0 %v4300
    %v4412 = vpop.f32.mrf.mxu0
    %v4413 = vadd.f32 0.0, %v4412
    %4414 = vmatmul.f32.gmra.mxu0 %v4303
    %v4415 = vpop.f32.mrf.mxu0
    %v4416 = vadd.f32 0.0, %v4415
    %4417 = vmatmul.f32.gmra.mxu0 %v4306
    %v4418 = vpop.f32.mrf.mxu0
    %v4419 = vadd.f32 0.0, %v4418
    %4420 = vmatmul.f32.gmra.mxu0 %v4309
    %v4421 = vpop.f32.mrf.mxu0
    %v4422 = vadd.f32 0.0, %v4421
    %4423 = vmatmul.f32.gmra.mxu0 %v4312
    %v4424 = vpop.f32.mrf.mxu0
    %v4425 = vadd.f32 0.0, %v4424
    %4426 = vmatmul.f32.gmra.mxu0 %v4315
    %v4427 = vpop.f32.mrf.mxu0
    %v4428 = vadd.f32 0.0, %v4427
    %4429 = vmatmul.f32.gmra.mxu0 %v4318
    %v4430 = vpop.f32.mrf.mxu0
    %v4431 = vadd.f32 0.0, %v4430
    %4432 = vmatmul.f32.gmra.mxu0 %v4321
    %v4433 = vpop.f32.mrf.mxu0
    %v4434 = vadd.f32 0.0, %v4433
    %4435 = vmatmul.f32.gmra.mxu0 %v4324
    %v4436 = vpop.f32.mrf.mxu0
    %v4437 = vadd.f32 0.0, %v4436
    %4438 = vmatmul.f32.gmra.mxu0 %v4327
    %v4439 = vpop.f32.mrf.mxu0
    %v4440 = vadd.f32 0.0, %v4439
    %4441 = vmatmul.f32.gmra.mxu0 %v4330
    %v4442 = vpop.f32.mrf.mxu0
    %v4443 = vadd.f32 0.0, %v4442
    %4444 = vmatmul.f32.gmra.mxu0 %v4333
    %v4445 = vpop.f32.mrf.mxu0
    %v4446 = vadd.f32 0.0, %v4445
    %4447 = vmatmul.f32.gmra.mxu0 %v4336
    %v4448 = vpop.f32.mrf.mxu0
    %v4449 = vadd.f32 0.0, %v4448
    %4450 = vmatmul.f32.gmra.mxu0 %v4339
    %v4451 = vpop.f32.mrf.mxu0
    %v4452 = vadd.f32 0.0, %v4451
    %4453 = vmatmul.f32.gmra.mxu0 %v4342
    %v4454 = vpop.f32.mrf.mxu0
    %v4455 = vadd.f32 0.0, %v4454
    %4456 = vmatmul.f32.gmra.mxu0 %v4345
    %v4457 = vpop.f32.mrf.mxu0
    %v4458 = vadd.f32 0.0, %v4457
    %4459 = vmatmul.f32.gmra.mxu0 %v4348
    %v4460 = vpop.f32.mrf.mxu0
    %v4461 = vadd.f32 0.0, %v4460
    %4462 = vmatmul.f32.gmra.mxu0 %v4351
    %v4463 = vpop.f32.mrf.mxu0
    %v4464 = vadd.f32 0.0, %v4463
    %4465 = vmatmul.f32.gmra.mxu0 %v4354
    %v4466 = vpop.f32.mrf.mxu0
    %v4467 = vadd.f32 0.0, %v4466
    %4468 = vmatmul.f32.gmra.mxu0 %v4357
    %v4469 = vpop.f32.mrf.mxu0
    %v4470 = vadd.f32 0.0, %v4469
    %4471 = vmatmul.f32.gmra.mxu0 %v4360
    %v4472 = vpop.f32.mrf.mxu0
    %v4473 = vadd.f32 0.0, %v4472
    %4474 = vmatmul.f32.gmra.mxu0 %v4363
    %v4475 = vpop.f32.mrf.mxu0
    %v4476 = vadd.f32 0.0, %v4475
    %4477 = vmatmul.f32.gmra.mxu0 %v4366
    %v4478 = vpop.f32.mrf.mxu0
    %v4479 = vadd.f32 0.0, %v4478
    %4480 = vmatmul.f32.gmra.mxu0 %v4369
    %v4481 = vpop.f32.mrf.mxu0
    %v4482 = vadd.f32 0.0, %v4481
    %4483 = vmatmul.f32.gmra.mxu0 %v4372
    %v4484 = vpop.f32.mrf.mxu0
    %v4485 = vadd.f32 0.0, %v4484
    %4486 = vmatmul.f32.gmra.mxu0 %v4375
    %v4487 = vpop.f32.mrf.mxu0
    %v4488 = vadd.f32 0.0, %v4487
    %4489 = vmatmul.f32.gmra.mxu0 %v4378
    %v4490 = vpop.f32.mrf.mxu0
    %v4491 = vadd.f32 0.0, %v4490
    %4492 = vmatmul.f32.gmra.mxu0 %v4381
    %v4493 = vpop.f32.mrf.mxu0
    %v4494 = vadd.f32 0.0, %v4493
    %4495 = vmatmul.f32.gmra.mxu0 %v4384
    %v4496 = vpop.f32.mrf.mxu0
    %v4497 = vadd.f32 0.0, %v4496
    %4498 = vmatmul.f32.gmra.mxu0 %v4387
    %v4499 = vpop.f32.mrf.mxu0
    %v4500 = vadd.f32 0.0, %v4499
    %4501 = vmatmul.f32.gmra.mxu0 %v4390
    %v4502 = vpop.f32.mrf.mxu0
    %v4503 = vadd.f32 0.0, %v4502
    %4504 = vmatmul.f32.gmra.mxu0 %v4393
    %v4505 = vpop.f32.mrf.mxu0
    %v4506 = vadd.f32 0.0, %v4505
    %4507 = vdwg.mxu0
    %v4508 = vadd.f32 %v3395, %v4413
    %v4509 = vadd.f32 %v3396, %v4416
    %v4510 = vadd.f32 %v3397, %v4419
    %v4511 = vadd.f32 %v3398, %v4422
    %v4512 = vadd.f32 %v3399, %v4425
    %v4513 = vadd.f32 %v3400, %v4428
    %v4514 = vadd.f32 %v3401, %v4431
    %v4515 = vadd.f32 %v3402, %v4434
    %v4516 = vadd.f32 %v3403, %v4437
    %v4517 = vadd.f32 %v3404, %v4440
    %v4518 = vadd.f32 %v3405, %v4443
    %v4519 = vadd.f32 %v3406, %v4446
    %v4520 = vadd.f32 %v3407, %v4449
    %v4521 = vadd.f32 %v3408, %v4452
    %v4522 = vadd.f32 %v3409, %v4455
    %v4523 = vadd.f32 %v3410, %v4458
    %v4524 = vadd.f32 %v3411, %v4461
    %v4525 = vadd.f32 %v3412, %v4464
    %v4526 = vadd.f32 %v3413, %v4467
    %v4527 = vadd.f32 %v3414, %v4470
    %v4528 = vadd.f32 %v3415, %v4473
    %v4529 = vadd.f32 %v3416, %v4476
    %v4530 = vadd.f32 %v3417, %v4479
    %v4531 = vadd.f32 %v3418, %v4482
    %v4532 = vadd.f32 %v3419, %v4485
    %v4533 = vadd.f32 %v3420, %v4488
    %v4534 = vadd.f32 %v3421, %v4491
    %v4535 = vadd.f32 %v3422, %v4494
    %v4536 = vadd.f32 %v3423, %v4497
    %v4537 = vadd.f32 %v3424, %v4500
    %v4538 = vadd.f32 %v3425, %v4503
    %v4539 = vadd.f32 %v3426, %v4506
    %v4540 = vld [vmem:[%s11] sm:$0x1]
    %v4542 = vperm.slane %v4540, 0
    %v4544 = vadd.f32 %v4508, %v4542
    %v4545 = vadd.f32 %v4509, %v4542
    %v4546 = vadd.f32 %v4510, %v4542
    %v4547 = vadd.f32 %v4511, %v4542
    %v4548 = vadd.f32 %v4512, %v4542
    %v4549 = vadd.f32 %v4513, %v4542
    %v4550 = vadd.f32 %v4514, %v4542
    %v4551 = vadd.f32 %v4515, %v4542
    %v4552 = vadd.f32 %v4516, %v4542
    %v4553 = vadd.f32 %v4517, %v4542
    %v4554 = vadd.f32 %v4518, %v4542
    %v4555 = vadd.f32 %v4519, %v4542
    %v4556 = vadd.f32 %v4520, %v4542
    %v4557 = vadd.f32 %v4521, %v4542
    %v4558 = vadd.f32 %v4522, %v4542
    %v4559 = vadd.f32 %v4523, %v4542
    %v4560 = vadd.f32 %v4524, %v4542
    %v4561 = vadd.f32 %v4525, %v4542
    %v4562 = vadd.f32 %v4526, %v4542
    %v4563 = vadd.f32 %v4527, %v4542
    %v4564 = vadd.f32 %v4528, %v4542
    %v4565 = vadd.f32 %v4529, %v4542
    %v4566 = vadd.f32 %v4530, %v4542
    %v4567 = vadd.f32 %v4531, %v4542
    %v4568 = vadd.f32 %v4532, %v4542
    %v4569 = vadd.f32 %v4533, %v4542
    %v4570 = vadd.f32 %v4534, %v4542
    %v4571 = vadd.f32 %v4535, %v4542
    %v4572 = vadd.f32 %v4536, %v4542
    %v4573 = vadd.f32 %v4537, %v4542
    %v4574 = vadd.f32 %v4538, %v4542
    %v4575 = vadd.f32 %v4539, %v4542
    %v4576 = vmax.f32 %v4544, 0.0
    %v4577 = vmax.f32 %v4545, 0.0
    %v4578 = vmax.f32 %v4546, 0.0
    %v4579 = vmax.f32 %v4547, 0.0
    %v4580 = vmax.f32 %v4548, 0.0
    %v4581 = vmax.f32 %v4549, 0.0
    %v4582 = vmax.f32 %v4550, 0.0
    %v4583 = vmax.f32 %v4551, 0.0
    %v4584 = vmax.f32 %v4552, 0.0
    %v4585 = vmax.f32 %v4553, 0.0
    %v4586 = vmax.f32 %v4554, 0.0
    %v4587 = vmax.f32 %v4555, 0.0
    %v4588 = vmax.f32 %v4556, 0.0
    %v4589 = vmax.f32 %v4557, 0.0
    %v4590 = vmax.f32 %v4558, 0.0
    %v4591 = vmax.f32 %v4559, 0.0
    %v4592 = vmax.f32 %v4560, 0.0
    %v4593 = vmax.f32 %v4561, 0.0
    %v4594 = vmax.f32 %v4562, 0.0
    %v4595 = vmax.f32 %v4563, 0.0
    %v4596 = vmax.f32 %v4564, 0.0
    %v4597 = vmax.f32 %v4565, 0.0
    %v4598 = vmax.f32 %v4566, 0.0
    %v4599 = vmax.f32 %v4567, 0.0
    %v4600 = vmax.f32 %v4568, 0.0
    %v4601 = vmax.f32 %v4569, 0.0
    %v4602 = vmax.f32 %v4570, 0.0
    %v4603 = vmax.f32 %v4571, 0.0
    %v4604 = vmax.f32 %v4572, 0.0
    %v4605 = vmax.f32 %v4573, 0.0
    %v4606 = vmax.f32 %v4574, 0.0
    %v4607 = vmax.f32 %v4575, 0.0
    %v4608 = vld [vmem:[%s13] sm:$0xff]
    %v4609 = vld [vmem:[%s13 + $0x8] sm:$0xff]
    %v4610 = vld [vmem:[%s13 + $0x10] sm:$0xff]
    %v4611 = vld [vmem:[%s13 + $0x18] sm:$0xff]
    %v4612 = vld [vmem:[%s13 + $0x20] sm:$0xff]
    %v4613 = vld [vmem:[%s13 + $0x28] sm:$0xff]
    %v4614 = vld [vmem:[%s13 + $0x30] sm:$0xff]
    %v4615 = vld [vmem:[%s13 + $0x38] sm:$0xff]
    %vm4616 = vcmask 261120
    %v4618 = vsel %vm4616, %v4584, 0
    %v4621 = vsel %vm4616, %v4585, 0
    %v4624 = vsel %vm4616, %v4586, 0
    %v4627 = vsel %vm4616, %v4587, 0
    %v4630 = vsel %vm4616, %v4588, 0
    %v4633 = vsel %vm4616, %v4589, 0
    %v4636 = vsel %vm4616, %v4590, 0
    %v4639 = vsel %vm4616, %v4591, 0
    %4641 = vmatpush.msra.mxu0 0.0
    %4642 = vmatpush.msra.mxu0 0.0
    %4643 = vmatpush.msra.mxu0 0.0
    %4644 = vmatpush.msra.mxu0 0.0
    %4645 = vmatpush.msra.mxu0 0.0
    %4646 = vmatpush.msra.mxu0 0.0
    %4647 = vmatpush.msra.mxu0 0.0
    %4648 = vmatpush.msra.mxu0 0.0
    %4649 = vmatpush.msra.mxu0 0.0
    %4650 = vmatpush.msra.mxu0 0.0
    %4651 = vmatpush.msra.mxu0 0.0
    %4652 = vmatpush.msra.mxu0 0.0
    %4653 = vmatpush.msra.mxu0 %v4615
    %4654 = vmatpush.msra.mxu0 %v4614
    %4655 = vmatpush.msra.mxu0 %v4613
    %4656 = vmatpush.msra.mxu0 %v4612
    %4657 = vmatmul.f32.gmra.mxu0 %v4618
    %v4658 = vpop.f32.mrf.mxu0
    %v4659 = vadd.f32 0.0, %v4658
    %4660 = vmatmul.f32.gmra.mxu0 %v4621
    %v4661 = vpop.f32.mrf.mxu0
    %v4662 = vadd.f32 0.0, %v4661
    %4663 = vmatmul.f32.gmra.mxu0 %v4624
    %v4664 = vpop.f32.mrf.mxu0
    %v4665 = vadd.f32 0.0, %v4664
    %4666 = vmatmul.f32.gmra.mxu0 %v4627
    %v4667 = vpop.f32.mrf.mxu0
    %v4668 = vadd.f32 0.0, %v4667
    %4669 = vmatmul.f32.gmra.mxu0 %v4630
    %v4670 = vpop.f32.mrf.mxu0
    %v4671 = vadd.f32 0.0, %v4670
    %4672 = vmatmul.f32.gmra.mxu0 %v4633
    %v4673 = vpop.f32.mrf.mxu0
    %v4674 = vadd.f32 0.0, %v4673
    %4675 = vmatmul.f32.gmra.mxu0 %v4636
    %v4676 = vpop.f32.mrf.mxu0
    %v4677 = vadd.f32 0.0, %v4676
    %4678 = vmatmul.f32.gmra.mxu0 %v4639
    %v4679 = vpop.f32.mrf.mxu0
    %v4680 = vadd.f32 0.0, %v4679
    %4681 = vdwg.mxu0
    %v4683 = vsel %vm4616, %v4576, 0
    %v4686 = vsel %vm4616, %v4577, 0
    %v4689 = vsel %vm4616, %v4578, 0
    %v4692 = vsel %vm4616, %v4579, 0
    %v4695 = vsel %vm4616, %v4580, 0
    %v4698 = vsel %vm4616, %v4581, 0
    %v4701 = vsel %vm4616, %v4582, 0
    %v4704 = vsel %vm4616, %v4583, 0
    %4706 = vmatpush.msra.mxu0 0.0
    %4707 = vmatpush.msra.mxu0 0.0
    %4708 = vmatpush.msra.mxu0 0.0
    %4709 = vmatpush.msra.mxu0 0.0
    %4710 = vmatpush.msra.mxu0 0.0
    %4711 = vmatpush.msra.mxu0 0.0
    %4712 = vmatpush.msra.mxu0 0.0
    %4713 = vmatpush.msra.mxu0 0.0
    %4714 = vmatpush.msra.mxu0 0.0
    %4715 = vmatpush.msra.mxu0 0.0
    %4716 = vmatpush.msra.mxu0 0.0
    %4717 = vmatpush.msra.mxu0 0.0
    %4718 = vmatpush.msra.mxu0 %v4611
    %4719 = vmatpush.msra.mxu0 %v4610
    %4720 = vmatpush.msra.mxu0 %v4609
    %4721 = vmatpush.msra.mxu0 %v4608
    %4722 = vmatmul.f32.gmra.mxu0 %v4683
    %v4723 = vpop.f32.mrf.mxu0
    %v4724 = vadd.f32 %v4659, %v4723
    %4725 = vmatmul.f32.gmra.mxu0 %v4686
    %v4726 = vpop.f32.mrf.mxu0
    %v4727 = vadd.f32 %v4662, %v4726
    %4728 = vmatmul.f32.gmra.mxu0 %v4689
    %v4729 = vpop.f32.mrf.mxu0
    %v4730 = vadd.f32 %v4665, %v4729
    %4731 = vmatmul.f32.gmra.mxu0 %v4692
    %v4732 = vpop.f32.mrf.mxu0
    %v4733 = vadd.f32 %v4668, %v4732
    %4734 = vmatmul.f32.gmra.mxu0 %v4695
    %v4735 = vpop.f32.mrf.mxu0
    %v4736 = vadd.f32 %v4671, %v4735
    %4737 = vmatmul.f32.gmra.mxu0 %v4698
    %v4738 = vpop.f32.mrf.mxu0
    %v4739 = vadd.f32 %v4674, %v4738
    %4740 = vmatmul.f32.gmra.mxu0 %v4701
    %v4741 = vpop.f32.mrf.mxu0
    %v4742 = vadd.f32 %v4677, %v4741
    %4743 = vmatmul.f32.gmra.mxu0 %v4704
    %v4744 = vpop.f32.mrf.mxu0
    %v4745 = vadd.f32 %v4680, %v4744
    %4746 = vdwg.mxu0
    %v4747 = vld [vmem:[%s13 + $0x40] sm:$0xff]
    %v4748 = vld [vmem:[%s13 + $0x48] sm:$0xff]
    %v4749 = vld [vmem:[%s13 + $0x50] sm:$0xff]
    %v4750 = vld [vmem:[%s13 + $0x58] sm:$0xff]
    %v4752 = vsel %vm4616, %v4592, 0
    %v4755 = vsel %vm4616, %v4593, 0
    %v4758 = vsel %vm4616, %v4594, 0
    %v4761 = vsel %vm4616, %v4595, 0
    %v4764 = vsel %vm4616, %v4596, 0
    %v4767 = vsel %vm4616, %v4597, 0
    %v4770 = vsel %vm4616, %v4598, 0
    %v4773 = vsel %vm4616, %v4599, 0
    %4775 = vmatpush.msra.mxu0 0.0
    %4776 = vmatpush.msra.mxu0 0.0
    %4777 = vmatpush.msra.mxu0 0.0
    %4778 = vmatpush.msra.mxu0 0.0
    %4779 = vmatpush.msra.mxu0 0.0
    %4780 = vmatpush.msra.mxu0 0.0
    %4781 = vmatpush.msra.mxu0 0.0
    %4782 = vmatpush.msra.mxu0 0.0
    %4783 = vmatpush.msra.mxu0 0.0
    %4784 = vmatpush.msra.mxu0 0.0
    %4785 = vmatpush.msra.mxu0 0.0
    %4786 = vmatpush.msra.mxu0 0.0
    %4787 = vmatpush.msra.mxu0 %v4750
    %4788 = vmatpush.msra.mxu0 %v4749
    %4789 = vmatpush.msra.mxu0 %v4748
    %4790 = vmatpush.msra.mxu0 %v4747
    %4791 = vmatmul.f32.gmra.mxu0 %v4752
    %v4792 = vpop.f32.mrf.mxu0
    %v4793 = vadd.f32 0.0, %v4792
    %4794 = vmatmul.f32.gmra.mxu0 %v4755
    %v4795 = vpop.f32.mrf.mxu0
    %v4796 = vadd.f32 0.0, %v4795
    %4797 = vmatmul.f32.gmra.mxu0 %v4758
    %v4798 = vpop.f32.mrf.mxu0
    %v4799 = vadd.f32 0.0, %v4798
    %4800 = vmatmul.f32.gmra.mxu0 %v4761
    %v4801 = vpop.f32.mrf.mxu0
    %v4802 = vadd.f32 0.0, %v4801
    %4803 = vmatmul.f32.gmra.mxu0 %v4764
    %v4804 = vpop.f32.mrf.mxu0
    %v4805 = vadd.f32 0.0, %v4804
    %4806 = vmatmul.f32.gmra.mxu0 %v4767
    %v4807 = vpop.f32.mrf.mxu0
    %v4808 = vadd.f32 0.0, %v4807
    %4809 = vmatmul.f32.gmra.mxu0 %v4770
    %v4810 = vpop.f32.mrf.mxu0
    %v4811 = vadd.f32 0.0, %v4810
    %4812 = vmatmul.f32.gmra.mxu0 %v4773
    %v4813 = vpop.f32.mrf.mxu0
    %v4814 = vadd.f32 0.0, %v4813
    %4815 = vdwg.mxu0
    %v4816 = vadd.f32 %v4724, %v4793
    %v4817 = vadd.f32 %v4727, %v4796
    %v4818 = vadd.f32 %v4730, %v4799
    %v4819 = vadd.f32 %v4733, %v4802
    %v4820 = vadd.f32 %v4736, %v4805
    %v4821 = vadd.f32 %v4739, %v4808
    %v4822 = vadd.f32 %v4742, %v4811
    %v4823 = vadd.f32 %v4745, %v4814
    %v4824 = vld [vmem:[%s13 + $0x60] sm:$0xff]
    %v4825 = vld [vmem:[%s13 + $0x68] sm:$0xff]
    %v4826 = vld [vmem:[%s13 + $0x70] sm:$0xff]
    %v4827 = vld [vmem:[%s13 + $0x78] sm:$0xff]
    %v4829 = vsel %vm4616, %v4600, 0
    %v4832 = vsel %vm4616, %v4601, 0
    %v4835 = vsel %vm4616, %v4602, 0
    %v4838 = vsel %vm4616, %v4603, 0
    %v4841 = vsel %vm4616, %v4604, 0
    %v4844 = vsel %vm4616, %v4605, 0
    %v4847 = vsel %vm4616, %v4606, 0
    %v4850 = vsel %vm4616, %v4607, 0
    %4852 = vmatpush.msra.mxu0 0.0
    %4853 = vmatpush.msra.mxu0 0.0
    %4854 = vmatpush.msra.mxu0 0.0
    %4855 = vmatpush.msra.mxu0 0.0
    %4856 = vmatpush.msra.mxu0 0.0
    %4857 = vmatpush.msra.mxu0 0.0
    %4858 = vmatpush.msra.mxu0 0.0
    %4859 = vmatpush.msra.mxu0 0.0
    %4860 = vmatpush.msra.mxu0 0.0
    %4861 = vmatpush.msra.mxu0 0.0
    %4862 = vmatpush.msra.mxu0 0.0
    %4863 = vmatpush.msra.mxu0 0.0
    %4864 = vmatpush.msra.mxu0 %v4827
    %4865 = vmatpush.msra.mxu0 %v4826
    %4866 = vmatpush.msra.mxu0 %v4825
    %4867 = vmatpush.msra.mxu0 %v4824
    %4868 = vmatmul.f32.gmra.mxu0 %v4829
    %v4869 = vpop.f32.mrf.mxu0
    %v4870 = vadd.f32 0.0, %v4869
    %4871 = vmatmul.f32.gmra.mxu0 %v4832
    %v4872 = vpop.f32.mrf.mxu0
    %v4873 = vadd.f32 0.0, %v4872
    %4874 = vmatmul.f32.gmra.mxu0 %v4835
    %v4875 = vpop.f32.mrf.mxu0
    %v4876 = vadd.f32 0.0, %v4875
    %4877 = vmatmul.f32.gmra.mxu0 %v4838
    %v4878 = vpop.f32.mrf.mxu0
    %v4879 = vadd.f32 0.0, %v4878
    %4880 = vmatmul.f32.gmra.mxu0 %v4841
    %v4881 = vpop.f32.mrf.mxu0
    %v4882 = vadd.f32 0.0, %v4881
    %4883 = vmatmul.f32.gmra.mxu0 %v4844
    %v4884 = vpop.f32.mrf.mxu0
    %v4885 = vadd.f32 0.0, %v4884
    %4886 = vmatmul.f32.gmra.mxu0 %v4847
    %v4887 = vpop.f32.mrf.mxu0
    %v4888 = vadd.f32 0.0, %v4887
    %4889 = vmatmul.f32.gmra.mxu0 %v4850
    %v4890 = vpop.f32.mrf.mxu0
    %v4891 = vadd.f32 0.0, %v4890
    %4892 = vdwg.mxu0
    %v4893 = vadd.f32 %v4816, %v4870
    %v4894 = vadd.f32 %v4817, %v4873
    %v4895 = vadd.f32 %v4818, %v4876
    %v4896 = vadd.f32 %v4819, %v4879
    %v4897 = vadd.f32 %v4820, %v4882
    %v4898 = vadd.f32 %v4821, %v4885
    %v4899 = vadd.f32 %v4822, %v4888
    %v4900 = vadd.f32 %v4823, %v4891
    %v4901 = vld [vmem:[%s15] sm:$0x1]
    %v4903 = vperm.slane %v4901, 0
    %v4905 = vadd.f32 %v4893, %v4903
    %v4906 = vadd.f32 %v4894, %v4903
    %v4907 = vadd.f32 %v4895, %v4903
    %v4908 = vadd.f32 %v4896, %v4903
    %v4909 = vadd.f32 %v4897, %v4903
    %v4910 = vadd.f32 %v4898, %v4903
    %v4911 = vadd.f32 %v4899, %v4903
    %v4912 = vadd.f32 %v4900, %v4903
    %v4913 = vmax.f32 %v4905, 0.0
    %v4914 = vmax.f32 %v4906, 0.0
    %v4915 = vmax.f32 %v4907, 0.0
    %v4916 = vmax.f32 %v4908, 0.0
    %v4917 = vmax.f32 %v4909, 0.0
    %v4918 = vmax.f32 %v4910, 0.0
    %v4919 = vmax.f32 %v4911, 0.0
    %v4920 = vmax.f32 %v4912, 0.0
    %v4921 = vld [vmem:[%s17] sm:$0x1]
    %v4922 = vperm.slane %v4921, 0
    %v4923 = vmul.f32 %v4913, %v4922
    %v4924 = vmul.f32 %v4914, %v4922
    %vm4925 = vcmask 195584
    %v4926 = vsel %vm4925, %v4923, 0.0
    %4927 = vadd.xlane.f32.xlu0 %v4926
    %v4928 = vpop.xlane.xlu0 %4927
    %v4929 = vsel %vm4925, %v4924, 0.0
    %4930 = vadd.xlane.f32.xlu0 %v4929
    %v4931 = vpop.xlane.xlu0 %4930
    %v4932 = vld [vmem:[%s17 + $0x1] sm:$0x1]
    %v4933 = vperm.slane %v4932, 0
    %v4934 = vmul.f32 %v4915, %v4933
    %v4935 = vmul.f32 %v4916, %v4933
    %v4936 = vsel %vm4925, %v4934, 0.0
    %4937 = vadd.xlane.f32.xlu0 %v4936
    %v4938 = vpop.xlane.xlu0 %4937
    %v4939 = vsel %vm4925, %v4935, 0.0
    %4940 = vadd.xlane.f32.xlu0 %v4939
    %v4941 = vpop.xlane.xlu0 %4940
    %v4942 = vadd.f32 %v4928, %v4938
    %v4943 = vadd.f32 %v4931, %v4941
    %v4944 = vld [vmem:[%s17 + $0x2] sm:$0x1]
    %v4945 = vperm.slane %v4944, 0
    %v4946 = vmul.f32 %v4917, %v4945
    %v4947 = vmul.f32 %v4918, %v4945
    %v4948 = vsel %vm4925, %v4946, 0.0
    %4949 = vadd.xlane.f32.xlu0 %v4948
    %v4950 = vpop.xlane.xlu0 %4949
    %v4951 = vsel %vm4925, %v4947, 0.0
    %4952 = vadd.xlane.f32.xlu0 %v4951
    %v4953 = vpop.xlane.xlu0 %4952
    %v4954 = vadd.f32 %v4942, %v4950
    %v4955 = vadd.f32 %v4943, %v4953
    %v4956 = vld [vmem:[%s17 + $0x3] sm:$0x1]
    %v4957 = vperm.slane %v4956, 0
    %v4958 = vmul.f32 %v4919, %v4957
    %v4959 = vmul.f32 %v4920, %v4957
    %v4960 = vsel %vm4925, %v4958, 0.0
    %4961 = vadd.xlane.f32.xlu0 %v4960
    %v4962 = vpop.xlane.xlu0 %4961
    %v4963 = vsel %vm4925, %v4959, 0.0
    %4964 = vadd.xlane.f32.xlu0 %v4963
    %v4965 = vpop.xlane.xlu0 %4964
    %v4966 = vadd.f32 %v4954, %v4962
    %v4967 = vadd.f32 %v4955, %v4965
    %v4968 = vld [vmem:[#allocation3] sm:$0x1]
    %v4970 = vperm.slane %v4968, 0
    %v4972 = vadd.f32 %v4966, %v4970
    %v4973 = vadd.f32 %v4967, %v4970
    %v4974 = vmax.f32 %v4972, 0.0
    %v4975 = vmax.f32 %v4973, 0.0
    %v4976 = vld [vmem:[%s21] sm:$0x1]
    %4978 = vset.pattern.permute.xlu0 0
    %4979 = vperm.xlu0 %4978, %v4974
    %v4980 = vpop.permute.xlu0 %4979
    %v4982 = vperm.slane %v4976, 0
    %v4983 = vmul.f32 %v4980, %v4982
    %v4984 = vld [vmem:[%s21 + $0x1] sm:$0x1]
    %v4985 = vperm.slane %v4984, 0
    %v4986 = vmul.f32 %v4980, %v4985
    %v4988 = vrot.slane %v4986, 4
    %v4990 = vadd.f32 %v4983, %v4988
    %v4991 = vld [vmem:[%s21 + $0x2] sm:$0x1]
    %4993 = vset.pattern.permute.xlu0 0
    %4994 = vperm.xlu0 %4993, %v4975
    %v4995 = vpop.permute.xlu0 %4994
    %v4997 = vperm.slane %v4991, 0
    %v4998 = vmul.f32 %v4995, %v4997
    %v4999 = vadd.f32 %v4990, %v4998
    %v5000 = vld [vmem:[%s21 + $0x3] sm:$0x1]
    %v5001 = vperm.slane %v5000, 0
    %v5002 = vmul.f32 %v4995, %v5001
    %v5004 = vrot.slane %v5002, 4
    %v5006 = vadd.f32 %v4999, %v5004
    %v5007 = vld [vmem:[%s23] sm:$0x1]
    %v5009 = vperm.slane %v5007, 0
    %v5011 = vadd.f32 %v5006, %v5009
    %v5012 = vld [vmem:[%s25] sm:$0xf]
    %v5013 = vadd.f32 %v5011, %v5012
    %s5014 = sld [smem:[#allocation2]]
    %v5015 = vlaneseq
    %v5016 = vshrl.u32 %v5015, 7
    %v5017 = vlaneseq
    %v5018 = vand.u32 %v5017, 127
    %vm5019 = vcmp.eq.s32.totalorder %v5016, %v5018
    %vm5020 = vcmp.eq.s32.totalorder %v5016, 4
    %v5021 = vstv %s5014
    %vm5022 = vcmp.eq.s32.totalorder %v5018, %v5021
    %vm5023 = vmand %vm5020, %vm5022
    %vm5024 = vmor %vm5019, %vm5023
    %v5025 = vsel %vm5024, 1.0, 0.0
    %vm5026 = vcmask 31744
    %v5028 = vsel %vm5026, %v5025, 0
    %vm5030 = vcmask 1043456
    %v5032 = vsel %vm5030, %v5013, 0
    %5034 = vmatpush.msra.mxu0 0.0
    %5035 = vmatpush.msra.mxu0 0.0
    %5036 = vmatpush.msra.mxu0 0.0
    %5037 = vmatpush.msra.mxu0 0.0
    %5038 = vmatpush.msra.mxu0 0.0
    %5039 = vmatpush.msra.mxu0 0.0
    %5040 = vmatpush.msra.mxu0 0.0
    %5041 = vmatpush.msra.mxu0 0.0
    %5042 = vmatpush.msra.mxu0 0.0
    %5043 = vmatpush.msra.mxu0 0.0
    %5044 = vmatpush.msra.mxu0 0.0
    %5045 = vmatpush.msra.mxu0 0.0
    %5046 = vmatpush.msra.mxu0 0.0
    %5047 = vmatpush.msra.mxu0 0.0
    %5048 = vmatpush.msra.mxu0 0.0
    %5049 = vmatpush.msra.mxu0 %v5032
    %5050 = vmatmul.f32.gmra.mxu0 %v5028
    %v5051 = vpop.f32.mrf.mxu0
    %v5052 = vadd.f32 0.0, %v5051
    %5053 = vdwg.mxu0
    %v5054 = vld [vmem:[%s27] sm:$0xff]
    %v5055 = vld [vmem:[%s27 + $0x8] sm:$0xff]
    %v5056 = vld [vmem:[%s27 + $0x10] sm:$0xff]
    %v5057 = vld [vmem:[%s27 + $0x18] sm:$0xff]
    %v5058 = vld [vmem:[%s27 + $0x20] sm:$0xff]
    %v5059 = vld [vmem:[%s29] sm:$0x1]
    %v5061 = vperm.slane %v5059, 0
    %vm5063 = vcmask 326656
    %v5065 = vsel %vm5063, %v5052, 0
    %5067 = vmatpush.msra.mxu0 0.0
    %5068 = vmatpush.msra.mxu0 0.0
    %5069 = vmatpush.msra.mxu0 0.0
    %5070 = vmatpush.msra.mxu0 0.0
    %5071 = vmatpush.msra.mxu0 0.0
    %5072 = vmatpush.msra.mxu0 0.0
    %5073 = vmatpush.msra.mxu0 0.0
    %5074 = vmatpush.msra.mxu0 0.0
    %5075 = vmatpush.msra.mxu0 0.0
    %5076 = vmatpush.msra.mxu0 0.0
    %5077 = vmatpush.msra.mxu0 0.0
    %5078 = vmatpush.msra.mxu0 %v5058
    %5079 = vmatpush.msra.mxu0 %v5057
    %5080 = vmatpush.msra.mxu0 %v5056
    %5081 = vmatpush.msra.mxu0 %v5055
    %5082 = vmatpush.msra.mxu0 %v5054
    %5083 = vmatmul.f32.gmra.mxu0 %v5065
    %v5084 = vpop.f32.mrf.mxu0
    %v5085 = vadd.f32 %v5061, %v5084
    %5086 = vdwg.mxu0
    %v5087 = vld [vmem:[%s31] sm:$0xff]
    %v5088 = vld [vmem:[%s31 + $0x8] sm:$0xff]
    %v5089 = vld [vmem:[%s31 + $0x10] sm:$0xff]
    %v5090 = vld [vmem:[%s31 + $0x18] sm:$0xff]
    %v5091 = vld [vmem:[%s31 + $0x20] sm:$0xff]
    %v5092 = vld [vmem:[%s33] sm:$0x1]
    %v5094 = vperm.slane %v5092, 0
    %5096 = vmatpush.msra.mxu0 0.0
    %5097 = vmatpush.msra.mxu0 0.0
    %5098 = vmatpush.msra.mxu0 0.0
    %5099 = vmatpush.msra.mxu0 0.0
    %5100 = vmatpush.msra.mxu0 0.0
    %5101 = vmatpush.msra.mxu0 0.0
    %5102 = vmatpush.msra.mxu0 0.0
    %5103 = vmatpush.msra.mxu0 0.0
    %5104 = vmatpush.msra.mxu0 0.0
    %5105 = vmatpush.msra.mxu0 0.0
    %5106 = vmatpush.msra.mxu0 0.0
    %5107 = vmatpush.msra.mxu0 %v5091
    %5108 = vmatpush.msra.mxu0 %v5090
    %5109 = vmatpush.msra.mxu0 %v5089
    %5110 = vmatpush.msra.mxu0 %v5088
    %5111 = vmatpush.msra.mxu0 %v5087
    %5112 = vmatmul.f32.gmra.mxu0 %v5065
    %v5113 = vpop.f32.mrf.mxu0
    %v5114 = vadd.f32 %v5094, %v5113
    %5115 = vdwg.mxu0
    %v5116 = vld [vmem:[%s35] sm:$0xff]
    %v5117 = vld [vmem:[%s35 + $0x8] sm:$0xff]
    %v5118 = vld [vmem:[%s35 + $0x10] sm:$0xff]
    %v5119 = vld [vmem:[%s35 + $0x18] sm:$0xff]
    %v5120 = vld [vmem:[%s35 + $0x20] sm:$0xff]
    %v5121 = vld [vmem:[%s37] sm:$0x1]
    %v5123 = vperm.slane %v5121, 0
    %5125 = vmatpush.msra.mxu0 0.0
    %5126 = vmatpush.msra.mxu0 0.0
    %5127 = vmatpush.msra.mxu0 0.0
    %5128 = vmatpush.msra.mxu0 0.0
    %5129 = vmatpush.msra.mxu0 0.0
    %5130 = vmatpush.msra.mxu0 0.0
    %5131 = vmatpush.msra.mxu0 0.0
    %5132 = vmatpush.msra.mxu0 0.0
    %5133 = vmatpush.msra.mxu0 0.0
    %5134 = vmatpush.msra.mxu0 0.0
    %5135 = vmatpush.msra.mxu0 0.0
    %5136 = vmatpush.msra.mxu0 %v5120
    %5137 = vmatpush.msra.mxu0 %v5119
    %5138 = vmatpush.msra.mxu0 %v5118
    %5139 = vmatpush.msra.mxu0 %v5117
    %5140 = vmatpush.msra.mxu0 %v5116
    %5141 = vmatmul.f32.gmra.mxu0 %v5065
    %v5142 = vpop.f32.mrf.mxu0
    %v5143 = vadd.f32 %v5123, %v5142
    %5144 = vdwg.mxu0
    %v5145 = vld [vmem:[%s39] sm:$0xff]
    %v5146 = vld [vmem:[%s39 + $0x8] sm:$0xff]
    %v5147 = vld [vmem:[%s39 + $0x10] sm:$0xff]
    %v5148 = vld [vmem:[%s39 + $0x18] sm:$0x1]
    %v5149 = vld [vmem:[%s41] sm:$0xff]
    %v5150 = vld [vmem:[%s41 + $0x8] sm:$0xff]
    %v5151 = vld [vmem:[%s41 + $0x10] sm:$0xff]
    %v5152 = vld [vmem:[%s41 + $0x18] sm:$0x1]
    %vm5153 = vcmask 39936
    %v5155 = vsel %vm5153, %v5145, 0
    %v5158 = vsel %vm5153, %v5146, 0
    %v5161 = vsel %vm5153, %v5147, 0
    %v5164 = vsel %vm5153, %v5148, 0
    %vm5166 = vcmask 1044480
    %v5168 = vsel %vm5166, %v5114, 0
    %5170 = vmatpush.msra.mxu0 0.0
    %5171 = vmatpush.msra.mxu0 0.0
    %5172 = vmatpush.msra.mxu0 0.0
    %5173 = vmatpush.msra.mxu0 0.0
    %5174 = vmatpush.msra.mxu0 0.0
    %5175 = vmatpush.msra.mxu0 0.0
    %5176 = vmatpush.msra.mxu0 0.0
    %5177 = vmatpush.msra.mxu0 0.0
    %5178 = vmatpush.msra.mxu0 0.0
    %5179 = vmatpush.msra.mxu0 0.0
    %5180 = vmatpush.msra.mxu0 0.0
    %5181 = vmatpush.msra.mxu0 0.0
    %5182 = vmatpush.msra.mxu0 0.0
    %5183 = vmatpush.msra.mxu0 0.0
    %5184 = vmatpush.msra.mxu0 0.0
    %5185 = vmatpush.msra.mxu0 %v5168
    %5186 = vmatmul.f32.gmra.mxu0 %v5155
    %v5187 = vpop.f32.mrf.mxu0
    %v5188 = vadd.f32 0.0, %v5187
    %5189 = vmatmul.f32.gmra.mxu0 %v5158
    %v5190 = vpop.f32.mrf.mxu0
    %v5191 = vadd.f32 0.0, %v5190
    %5192 = vmatmul.f32.gmra.mxu0 %v5161
    %v5193 = vpop.f32.mrf.mxu0
    %v5194 = vadd.f32 0.0, %v5193
    %5195 = vmatmul.f32.gmra.mxu0 %v5164
    %v5196 = vpop.f32.mrf.mxu0
    %v5197 = vadd.f32 0.0, %v5196
    %5198 = vdwg.mxu0
    %v5199 = vmul.f32 %v5188, %v5149
    %v5200 = vmul.f32 %v5191, %v5150
    %v5201 = vmul.f32 %v5194, %v5151
    %v5202 = vmul.f32 %v5197, %v5152
    %v5204 = vsel %vm5166, %v5143, 0
    %5206 = vmatpush.msra.mxu0 0.0
    %5207 = vmatpush.msra.mxu0 0.0
    %5208 = vmatpush.msra.mxu0 0.0
    %5209 = vmatpush.msra.mxu0 0.0
    %5210 = vmatpush.msra.mxu0 0.0
    %5211 = vmatpush.msra.mxu0 0.0
    %5212 = vmatpush.msra.mxu0 0.0
    %5213 = vmatpush.msra.mxu0 0.0
    %5214 = vmatpush.msra.mxu0 0.0
    %5215 = vmatpush.msra.mxu0 0.0
    %5216 = vmatpush.msra.mxu0 0.0
    %5217 = vmatpush.msra.mxu0 0.0
    %5218 = vmatpush.msra.mxu0 0.0
    %5219 = vmatpush.msra.mxu0 0.0
    %5220 = vmatpush.msra.mxu0 0.0
    %5221 = vmatpush.msra.mxu0 %v5204
    %5222 = vmatmul.f32.gmra.mxu0 %v5155
    %v5223 = vpop.f32.mrf.mxu0
    %v5224 = vadd.f32 0.0, %v5223
    %5225 = vmatmul.f32.gmra.mxu0 %v5158
    %v5226 = vpop.f32.mrf.mxu0
    %v5227 = vadd.f32 0.0, %v5226
    %5228 = vmatmul.f32.gmra.mxu0 %v5161
    %v5229 = vpop.f32.mrf.mxu0
    %v5230 = vadd.f32 0.0, %v5229
    %5231 = vmatmul.f32.gmra.mxu0 %v5164
    %v5232 = vpop.f32.mrf.mxu0
    %v5233 = vadd.f32 0.0, %v5232
    %5234 = vdwg.mxu0
    %v5235 = vmul.f32 %v5224, %v5149
    %v5236 = vmul.f32 %v5227, %v5150
    %v5237 = vmul.f32 %v5230, %v5151
    %v5238 = vmul.f32 %v5233, %v5152
    %v5240 = vsel %vm5063, %v5085, 0
    %v5243 = vsel %vm5063, %v5199, 0
    %v5246 = vsel %vm5063, %v5200, 0
    %v5249 = vsel %vm5063, %v5201, 0
    %v5252 = vsel %vm5063, %v5202, 0
    %5254 = vmatpush.xpose.msra.mxu0 0.0
    %5255 = vmatpush.xpose.msra.mxu0 0.0
    %5256 = vmatpush.xpose.msra.mxu0 0.0
    %5257 = vmatpush.xpose.msra.mxu0 0.0
    %5258 = vmatpush.xpose.msra.mxu0 0.0
    %5259 = vmatpush.xpose.msra.mxu0 0.0
    %5260 = vmatpush.xpose.msra.mxu0 0.0
    %5261 = vmatpush.xpose.msra.mxu0 0.0
    %5262 = vmatpush.xpose.msra.mxu0 0.0
    %5263 = vmatpush.xpose.msra.mxu0 0.0
    %5264 = vmatpush.xpose.msra.mxu0 0.0
    %5265 = vmatpush.xpose.msra.mxu0 0.0
    %5266 = vmatpush.xpose.msra.mxu0 %v5252
    %5267 = vmatpush.xpose.msra.mxu0 %v5249
    %5268 = vmatpush.xpose.msra.mxu0 %v5246
    %5269 = vmatpush.xpose.msra.mxu0 %v5243
    %5270 = vmatmul.f32.gmra.mxu0 %v5240
    %v5271 = vpop.f32.mrf.mxu0
    %v5272 = vadd.f32 0.0, %v5271
    %5273 = vdwg.mxu0
    %vm5274 = vcmask 200704
    %v5275 = vsel %vm5274, %v5272, -inf
    %5276 = vmax.xlane.f32.xlu0 %v5275
    %v5277 = vpop.xlane.xlu0 %5276
    %v5278 = vsub.f32 %v5272, %v5277
    %v5279 = vmul.f32 %v5278, 1.442695
    %v5280 = vpow.pop %v5279
    %vm5281 = vcmask 203776
    %v5283 = vsel %vm5281, %v5280, 0
    %vm5285 = vcmask 1040384
    %v5287 = vsel %vm5285, %v5152, 0
    %5289 = vmatpush.msra.mxu0 0.0
    %5290 = vmatpush.msra.mxu0 0.0
    %5291 = vmatpush.msra.mxu0 0.0
    %5292 = vmatpush.msra.mxu0 0.0
    %5293 = vmatpush.msra.mxu0 0.0
    %5294 = vmatpush.msra.mxu0 0.0
    %5295 = vmatpush.msra.mxu0 0.0
    %5296 = vmatpush.msra.mxu0 0.0
    %5297 = vmatpush.msra.mxu0 0.0
    %5298 = vmatpush.msra.mxu0 0.0
    %5299 = vmatpush.msra.mxu0 0.0
    %5300 = vmatpush.msra.mxu0 0.0
    %5301 = vmatpush.msra.mxu0 %v5287
    %5302 = vmatpush.msra.mxu0 %v5151
    %5303 = vmatpush.msra.mxu0 %v5150
    %5304 = vmatpush.msra.mxu0 %v5149
    %5305 = vmatmul.f32.gmra.mxu0 %v5283
    %v5306 = vpop.f32.mrf.mxu0
    %v5307 = vadd.f32 0.0, %v5306
    %5308 = vdwg.mxu0
    %v5310 = vsel %vm5285, %v5238, 0
    %5312 = vmatpush.msra.mxu0 0.0
    %5313 = vmatpush.msra.mxu0 0.0
    %5314 = vmatpush.msra.mxu0 0.0
    %5315 = vmatpush.msra.mxu0 0.0
    %5316 = vmatpush.msra.mxu0 0.0
    %5317 = vmatpush.msra.mxu0 0.0
    %5318 = vmatpush.msra.mxu0 0.0
    %5319 = vmatpush.msra.mxu0 0.0
    %5320 = vmatpush.msra.mxu0 0.0
    %5321 = vmatpush.msra.mxu0 0.0
    %5322 = vmatpush.msra.mxu0 0.0
    %5323 = vmatpush.msra.mxu0 0.0
    %5324 = vmatpush.msra.mxu0 %v5310
    %5325 = vmatpush.msra.mxu0 %v5237
    %5326 = vmatpush.msra.mxu0 %v5236
    %5327 = vmatpush.msra.mxu0 %v5235
    %5328 = vmatmul.f32.gmra.mxu0 %v5283
    %v5329 = vpop.f32.mrf.mxu0
    %v5330 = vadd.f32 0.0, %v5329
    %5331 = vdwg.mxu0
    %v5332 = vrcp.pop %v5307
    %v5333 = vmul.f32 %v5330, %v5332
    %v5334 = vld [vmem:[%s43] sm:$0xff]
    %v5335 = vld [vmem:[%s43 + $0x8] sm:$0xff]
    %v5336 = vld [vmem:[%s43 + $0x10] sm:$0xff]
    %v5337 = vld [vmem:[%s43 + $0x18] sm:$0xff]
    %v5338 = vld [vmem:[%s43 + $0x20] sm:$0xff]
    %v5339 = vld [vmem:[%s45] sm:$0x1]
    %v5341 = vperm.slane %v5339, 0
    %v5344 = vsel %vm5063, %v5333, 0
    %5346 = vmatpush.msra.mxu0 0.0
    %5347 = vmatpush.msra.mxu0 0.0
    %5348 = vmatpush.msra.mxu0 0.0
    %5349 = vmatpush.msra.mxu0 0.0
    %5350 = vmatpush.msra.mxu0 0.0
    %5351 = vmatpush.msra.mxu0 0.0
    %5352 = vmatpush.msra.mxu0 0.0
    %5353 = vmatpush.msra.mxu0 0.0
    %5354 = vmatpush.msra.mxu0 0.0
    %5355 = vmatpush.msra.mxu0 0.0
    %5356 = vmatpush.msra.mxu0 0.0
    %5357 = vmatpush.msra.mxu0 %v5338
    %5358 = vmatpush.msra.mxu0 %v5337
    %5359 = vmatpush.msra.mxu0 %v5336
    %5360 = vmatpush.msra.mxu0 %v5335
    %5361 = vmatpush.msra.mxu0 %v5334
    %5362 = vmatmul.f32.gmra.mxu0 %v5344
    %v5363 = vpop.f32.mrf.mxu0
    %v5364 = vadd.f32 %v5341, %v5363
    %5365 = vdwg.mxu0
    %v5366 = vadd.f32 %v5052, %v5364
    %v5367 = vld [vmem:[%s47] sm:$0x1]
    %v5368 = vld [vmem:[%s49] sm:$0x1]
    %vm5369 = vcmask 323584
    %v5370 = vsel %vm5369, %v5366, 0.0
    %5371 = vadd.xlane.f32.xlu0 %v5370
    %v5372 = vpop.xlane.xlu0 %5371
    %v5373 = vrcp.pop 40.0
    %v5374 = vmul.f32 40.0, %v5373
    %v5375 = vsub.f32 1.0, %v5374
    %v5376 = vmul.f32 %v5373, %v5375
    %v5377 = vadd.f32 %v5373, %v5376
    %vm5378 = vweird.f32 %v5373
    %v5379 = vsel %vm5378, %v5373, %v5377
    %v5380 = vmul.f32 %v5372, %v5379
    %v5381 = vsub.f32 %v5366, %v5380
    %v5382 = vmul.f32 %v5381, %v5381
    %v5383 = vsel %vm5369, %v5382, 0.0
    %5384 = vadd.xlane.f32.xlu0 %v5383
    %v5385 = vpop.xlane.xlu0 %5384
    %v5386 = vmul.f32 %v5385, %v5379
    %v5387 = vadd.f32 %v5386, 1e-05
    %v5388 = vrsqrt.pop %v5387
    %v5389 = vmul.f32 %v5388, %v5387
    %v5390 = vmul.f32 %v5389, %v5388
    %v5391 = vmul.f32 0.5, %v5390
    %v5392 = vsub.f32 1.5, %v5391
    %v5393 = vmul.f32 %v5388, %v5392
    %vm5394 = vweird.f32 %v5387
    %vm5395 = vweird.f32 %v5388
    %vm5396 = vmor %vm5394, %vm5395
    %v5397 = vsel %vm5396, %v5388, %v5393
    %v5398 = vmul.f32 %v5381, %v5397
    %v5400 = vperm.slane %v5367, 0
    %v5402 = vmul.f32 %v5398, %v5400
    %v5404 = vperm.slane %v5368, 0
    %v5406 = vadd.f32 %v5402, %v5404
    %v5407 = vld [vmem:[%s51] sm:$0xff]
    %v5408 = vld [vmem:[%s51 + $0x8] sm:$0xff]
    %v5409 = vld [vmem:[%s51 + $0x10] sm:$0xff]
    %v5410 = vld [vmem:[%s51 + $0x18] sm:$0xff]
    %v5411 = vld [vmem:[%s51 + $0x20] sm:$0xff]
    %v5412 = vld [vmem:[%s53] sm:$0x1]
    %v5414 = vperm.slane %v5412, 0
    %v5417 = vsel %vm5063, %v5406, 0
    %5419 = vmatpush.msra.mxu0 0.0
    %5420 = vmatpush.msra.mxu0 0.0
    %5421 = vmatpush.msra.mxu0 0.0
    %5422 = vmatpush.msra.mxu0 0.0
    %5423 = vmatpush.msra.mxu0 0.0
    %5424 = vmatpush.msra.mxu0 0.0
    %5425 = vmatpush.msra.mxu0 0.0
    %5426 = vmatpush.msra.mxu0 0.0
    %5427 = vmatpush.msra.mxu0 0.0
    %5428 = vmatpush.msra.mxu0 0.0
    %5429 = vmatpush.msra.mxu0 0.0
    %5430 = vmatpush.msra.mxu0 %v5411
    %5431 = vmatpush.msra.mxu0 %v5410
    %5432 = vmatpush.msra.mxu0 %v5409
    %5433 = vmatpush.msra.mxu0 %v5408
    %5434 = vmatpush.msra.mxu0 %v5407
    %5435 = vmatmul.f32.gmra.mxu0 %v5417
    %v5436 = vpop.f32.mrf.mxu0
    %v5437 = vadd.f32 %v5414, %v5436
    %5438 = vdwg.mxu0
    %v5439 = vmax.f32 %v5437, 0.0
    %v5440 = vld [vmem:[%s55] sm:$0xff]
    %v5441 = vld [vmem:[%s55 + $0x8] sm:$0xff]
    %v5442 = vld [vmem:[%s55 + $0x10] sm:$0xff]
    %v5443 = vld [vmem:[%s55 + $0x18] sm:$0xff]
    %v5444 = vld [vmem:[%s55 + $0x20] sm:$0xff]
    %v5445 = vld [vmem:[%s55 + $0x28] sm:$0xff]
    %v5446 = vld [vmem:[%s55 + $0x30] sm:$0xff]
    %v5447 = vld [vmem:[%s55 + $0x38] sm:$0xff]
    %v5448 = vld [vmem:[%s57] sm:$0x1]
    %v5450 = vperm.slane %v5448, 0
    %v5453 = vsel %vm1895, %v5439, 0
    %5455 = vmatpush.msra.mxu0 0.0
    %5456 = vmatpush.msra.mxu0 0.0
    %5457 = vmatpush.msra.mxu0 0.0
    %5458 = vmatpush.msra.mxu0 0.0
    %5459 = vmatpush.msra.mxu0 0.0
    %5460 = vmatpush.msra.mxu0 0.0
    %5461 = vmatpush.msra.mxu0 0.0
    %5462 = vmatpush.msra.mxu0 0.0
    %5463 = vmatpush.msra.mxu0 %v5447
    %5464 = vmatpush.msra.mxu0 %v5446
    %5465 = vmatpush.msra.mxu0 %v5445
    %5466 = vmatpush.msra.mxu0 %v5444
    %5467 = vmatpush.msra.mxu0 %v5443
    %5468 = vmatpush.msra.mxu0 %v5442
    %5469 = vmatpush.msra.mxu0 %v5441
    %5470 = vmatpush.msra.mxu0 %v5440
    %5471 = vmatmul.f32.gmra.mxu0 %v5453
    %v5472 = vpop.f32.mrf.mxu0
    %v5473 = vadd.f32 %v5450, %v5472
    %5474 = vdwg.mxu0
    %v5475 = vadd.f32 %v5406, %v5473
    %v5476 = vld [vmem:[%s59] sm:$0x1]
    %v5477 = vld [vmem:[%s61] sm:$0x1]
    %v5478 = vsel %vm5369, %v5475, 0.0
    %5479 = vadd.xlane.f32.xlu0 %v5478
    %v5480 = vpop.xlane.xlu0 %5479
    %v5481 = vmul.f32 %v5480, %v5379
    %v5482 = vsub.f32 %v5475, %v5481
    %v5483 = vmul.f32 %v5482, %v5482
    %v5484 = vsel %vm5369, %v5483, 0.0
    %5485 = vadd.xlane.f32.xlu0 %v5484
    %v5486 = vpop.xlane.xlu0 %5485
    %v5487 = vmul.f32 %v5486, %v5379
    %v5488 = vadd.f32 %v5487, 1e-05
    %v5489 = vrsqrt.pop %v5488
    %v5490 = vmul.f32 %v5489, %v5488
    %v5491 = vmul.f32 %v5490, %v5489
    %v5492 = vmul.f32 0.5, %v5491
    %v5493 = vsub.f32 1.5, %v5492
    %v5494 = vmul.f32 %v5489, %v5493
    %vm5495 = vweird.f32 %v5488
    %vm5496 = vweird.f32 %v5489
    %vm5497 = vmor %vm5495, %vm5496
    %v5498 = vsel %vm5497, %v5489, %v5494
    %v5499 = vmul.f32 %v5482, %v5498
    %v5501 = vperm.slane %v5476, 0
    %v5503 = vmul.f32 %v5499, %v5501
    %v5505 = vperm.slane %v5477, 0
    %v5507 = vadd.f32 %v5503, %v5505
    %v5508 = vld [vmem:[%s63] sm:$0xff]
    %v5509 = vld [vmem:[%s63 + $0x8] sm:$0xff]
    %v5510 = vld [vmem:[%s63 + $0x10] sm:$0xff]
    %v5511 = vld [vmem:[%s63 + $0x18] sm:$0xff]
    %v5512 = vld [vmem:[%s63 + $0x20] sm:$0xff]
    %v5513 = vld [vmem:[%s65] sm:$0x1]
    %v5515 = vrot.slane %v5507, 4
    %v5516 = vsel %vm5063, %v5515, 0
    %5518 = vmatpush.msra.mxu0 0.0
    %5519 = vmatpush.msra.mxu0 0.0
    %5520 = vmatpush.msra.mxu0 0.0
    %5521 = vmatpush.msra.mxu0 0.0
    %5522 = vmatpush.msra.mxu0 0.0
    %5523 = vmatpush.msra.mxu0 0.0
    %5524 = vmatpush.msra.mxu0 0.0
    %5525 = vmatpush.msra.mxu0 0.0
    %5526 = vmatpush.msra.mxu0 0.0
    %5527 = vmatpush.msra.mxu0 0.0
    %5528 = vmatpush.msra.mxu0 0.0
    %5529 = vmatpush.msra.mxu0 %v5512
    %5530 = vmatpush.msra.mxu0 %v5511
    %5531 = vmatpush.msra.mxu0 %v5510
    %5532 = vmatpush.msra.mxu0 %v5509
    %5533 = vmatpush.msra.mxu0 %v5508
    %5534 = vmatmul.f32.gmra.mxu0 %v5516
    %v5535 = vpop.f32.mrf.mxu0
    %v5536 = vadd.f32 %v5513, %v5535
    %5537 = vdwg.mxu0
    %v5538 = vxor.u32 %v5536, 2147483648
    %v5539 = vmul.f32 %v5538, 1.442695
    %v5540 = vpow.pop %v5539
    %v5541 = vadd.f32 %v5540, 1.0
    %v5542 = vrcp.pop %v5541
    %v5543 = vmul.f32 %v5541, %v5542
    %v5544 = vsub.f32 1.0, %v5543
    %v5545 = vmul.f32 %v5542, %v5544
    %v5546 = vadd.f32 %v5542, %v5545
    %vm5547 = vweird.f32 %v5541
    %vm5548 = vweird.f32 %v5542
    %vm5549 = vmor %vm5547, %vm5548
    %v5550 = vsel %vm5549, %v5542, %v5546
    %v5551 = vand.u32 2147483647, %v5541
    %vm5552 = vcmp.eq.f32.partialorder %v5551, 8.507059e+37
    %v5553 = vand.u32 %v5541, 2147483648
    %v5554 = vor.u32 1.1754944e-38, %v5553
    %v5555 = vsel %vm5552, %v5554, %v5550
    %v5556 = vmul.f32 1.0, %v5555
    %vm5557 = vcmask 57344
    %5558 = vst.msk [vmem:[#allocation4] sm:$0x1] %vm5557, %v5556
    // Predicated region
    $region134: #{rpn_forward.1} parent=1 // pred_check
      _
    $region135: #{rpn_forward.1} parent=1 // pred_check_branch
      %5560 = sbr.rel (0) target = $region137
    $region136: #{rpn_forward.1} parent=1 // pred_region
      %5562 = vsyncadd [#allocation5], 0
      %s5564 = sshll.u32 [#allocation4], 4
      %s5565 = int_to_ptr.vmem [resolvable:$true] %s5564
      %s5566 = sshll.u32 %s67, 4
      %s5567 = int_to_ptr.hbm [resolvable:$true] %s5566
      %5569 = dma.vmem_to_hbm [thread:$0]  %s5565, 16, %s5567, [#allocation5]
    $region137: #{rpn_forward.1} parent=1 // pred_fallthru
      _
    // Predicated region
    $region138: #{rpn_forward.1} parent=1 // pred_check
      _
    $region139: #{rpn_forward.1} parent=1 // pred_check_branch
      %5571 = sbr.rel (0) target = $region141
    $region140: #{rpn_forward.1} parent=1 // pred_region
      %5573 = dma.done [#allocation5], 16
    $region141: #{rpn_forward.1} parent=1 // pred_fallthru
      _
    %5574 = vsyncpa [#allocation5], 1

</llo_original>
